<compile_context>
chip_gen: v7x
topology: tpu7x:2x2x1
jax: 0.10.0
libtpu: 0.0.40
codegen_flags: <defaults>
</compile_context>

<pallas_src>
import numpy as np
import jax
import jax.numpy as jnp
from jax.experimental import pallas as pl
from jax.experimental.pallas import tpu as pltpu


# ----------------------------------------------------------------------------
# Static LeNet geometry (input must be 3x32x32 for the 16*5*5 flatten).
# ----------------------------------------------------------------------------
CIN, H_IN, W_IN = 3, 32, 32
C1, K1 = 6, 5
H1O, W1O = H_IN - K1 + 1, W_IN - K1 + 1          # 28, 28  (conv1 out)
H1P, W1P = H1O // 2, W1O // 2                    # 14, 14  (pool1 out)
C2, K2 = 16, 5
H2O, W2O = H1P - K2 + 1, W1P - K2 + 1            # 10, 10  (conv2 out)
H2P, W2P = H2O // 2, W2O // 2                    # 5, 5    (pool2 out)
NFC1, NFC2 = 120, 84
NFLAT = C2 * H2P * W2P                           # 400


# ----------------------------------------------------------------------------
# One fused Pallas kernel for the whole forward pass (entire batch at once).
# ----------------------------------------------------------------------------
def _lenet_fused_kernel(x_ref, m1e_ref, m1o_ref, s1e_ref, s1o_ref, b1_ref,
                        m2e_ref, m2o_ref, s2e_ref, s2o_ref, b2_ref,
                        w1fc_ref, b1fc_ref, w2fc_ref, b2fc_ref,
                        w3fc_ref, b3fc_ref,
                        out_ref, patch1, p1_scr, patch2, flat_scr):
    f32 = jnp.float32
    B = x_ref.shape[0]

    def mm(a, b):
        return jnp.dot(a, b, preferred_element_type=f32)

    # ---- conv1 (5x5, 3->6) + bias + ReLU + 2x2 max-pool ---------------------
    # Batched im2col over (cin, kh); rows stacked sample-major (b*H1O + oh):
    #   patch1[b*H1O + oh, (ci*K1+i)*W_IN + w] = x[b, ci, oh+i, w]
    for b in range(B):
        for ci in range(CIN):
            for i in range(K1):
                patch1[pl.ds(b * H1O, H1O), pl.ds((ci * K1 + i) * W_IN, W_IN)] = \
                    x_ref[b, ci, pl.ds(i, H1O), :]
    patch = patch1[...]                                             # (B*28, 480)
    # even / odd output columns -> width pooling is a free elementwise max
    ycol = jnp.maximum(mm(patch, m1e_ref[...]), mm(patch, m1o_ref[...]))   # (B*28, 84)
    # row pooling + reorder to (spatial-major, batch-minor) via 0/1 selection
    pooled = jnp.maximum(mm(s1e_ref[...], ycol), mm(s1o_ref[...], ycol))   # (B*14, 84)
    p1_scr[...] = jnp.maximum(pooled + b1_ref[...], 0.0)   # rows r*B+b, lanes co*14+s

    # ---- conv2 (5x5, 6->16) + bias + ReLU + 2x2 max-pool --------------------
    # Because p1 rows are spatial-major, the im2col needs only C1*K2 = 30
    # contiguous block copies TOTAL (independent of batch size):
    #   patch2[oh2*B + b, (ci*K2+i)*W1P + w] = p1[(oh2+i)*B + b, ci*W1P + w]
    for ci in range(C1):
        for i in range(K2):
            patch2[:, pl.ds((ci * K2 + i) * W1P, W1P)] = \
                p1_scr[pl.ds(i * B, H2O * B), pl.ds(ci * W1P, W1P)]
    patch = patch2[...]                                             # (B*10, 420)
    ycol = jnp.maximum(mm(patch, m2e_ref[...]), mm(patch, m2o_ref[...]))   # (B*10, 80)
    pooled = jnp.maximum(mm(s2e_ref[...], ycol), mm(s2o_ref[...], ycol))   # (B*5, 80)
    p2 = jnp.maximum(pooled + b2_ref[...], 0.0)             # rows r2*B+b, lanes c*5+s

    # ---- flatten to (B, 400) matching torch .view order (weights permuted) --
    for r in range(H2P):
        flat_scr[:, pl.ds(r * (C2 * W2P), C2 * W2P)] = p2[r * B:(r + 1) * B, :]

    # ---- fc1 + ReLU, fc2 + ReLU, fc3  (one matmul each for the batch) -------
    h = jnp.maximum(mm(flat_scr[...], w1fc_ref[...]) + b1fc_ref[...], 0.0)  # (B, 120)
    h = jnp.maximum(mm(h, w2fc_ref[...]) + b2fc_ref[...], 0.0)              # (B, 84)
    out_ref[...] = (mm(h, w3fc_ref[...]) + b3fc_ref[...]).astype(out_ref.dtype)


# ----------------------------------------------------------------------------
# One-time parameter preparation (block-Toeplitz conv matrices, permuted /
# pre-transposed FC weights, broadcast bias rows).
# ----------------------------------------------------------------------------
def _conv_pool_matrices(w, w_in):
    """w: (Cout, Cin, kh, kw).  Returns (M_even, M_odd), each of shape
    (Cin*kh*w_in, Cout*Wp) with Wp = (w_in-kw+1)//2, such that
    (patch @ M_parity)[oh, co*Wp + s] = conv(x, w)[co, oh, 2*s + parity]
    where patch[oh, (ci*kh+i)*w_in + w_] = x[ci, oh+i, w_]."""
    cout, cin, kh, kw = w.shape
    wo = w_in - kw + 1
    wp = wo // 2

    def build(parity):
        wi = jnp.arange(w_in)[:, None]                  # (w_in, 1)
        ow = 2 * jnp.arange(wp)[None, :] + parity       # (1, wp)
        j = wi - ow                                     # (w_in, wp)
        valid = (j >= 0) & (j < kw)
        jc = jnp.clip(j, 0, kw - 1)
        wt = jnp.transpose(w, (1, 2, 3, 0))             # (cin, kh, kw, cout)
        g = wt[:, :, jc, :]                             # (cin, kh, w_in, wp, cout)
        g = jnp.where(valid[None, None, :, :, None], g, 0.0)
        g = jnp.transpose(g, (0, 1, 2, 4, 3))           # (cin, kh, w_in, cout, wp)
        return g.reshape(cin * kh * w_in, cout * wp)

    return build(0), build(1)


def _pool1_select(B):
    """conv1 rows are sample-major (b*H1O+oh); pooled rows are r*B+b."""
    rows = np.arange(H1P * B)
    r, b = rows // B, rows % B
    cols = np.arange(H1O * B)
    se = (cols[None, :] == (b * H1O + 2 * r)[:, None]).astype(np.float32)
    so = (cols[None, :] == (b * H1O + 2 * r + 1)[:, None]).astype(np.float32)
    return jnp.asarray(se), jnp.asarray(so)


def _pool2_select(B):
    """conv2 rows are spatial-major (oh2*B+b); pooled rows are r2*B+b."""
    rows = np.arange(H2P * B)
    r, b = rows // B, rows % B
    cols = np.arange(H2O * B)
    se = (cols[None, :] == (2 * r * B + b)[:, None]).astype(np.float32)
    so = (cols[None, :] == ((2 * r + 1) * B + b)[:, None]).astype(np.float32)
    return jnp.asarray(se), jnp.asarray(so)


def prepare_lenet_params(params):
    f32 = jnp.float32
    m1e, m1o = _conv_pool_matrices(params["conv1_w"].astype(f32), W_IN)   # (480, 84)
    m2e, m2o = _conv_pool_matrices(params["conv2_w"].astype(f32), W1P)    # (420, 80)

    # fc1 weight: torch flatten index = c*25 + r*5 + s; kernel flatten index
    # is r*80 + c*5 + s  ->  permute once to (r, c, s, out) and flatten.
    w1 = params["fc1_w"].astype(f32).reshape(NFC1, C2, H2P, W2P)   # (out, c, r, s)
    w1fc = jnp.transpose(w1, (2, 1, 3, 0)).reshape(NFLAT, NFC1)    # (400, 120)

    return dict(
        m1e=m1e, m1o=m1o,
        b1row=jnp.repeat(params["conv1_b"].astype(f32), W1P)[None, :],    # (1, 84)
        m2e=m2e, m2o=m2o,
        b2row=jnp.repeat(params["conv2_b"].astype(f32), W2P)[None, :],    # (1, 80)
        w1fc=w1fc, b1fc=params["fc1_b"].astype(f32)[None, :],
        w2fc=params["fc2_w"].astype(f32).T, b2fc=params["fc2_b"].astype(f32)[None, :],
        w3fc=params["fc3_w"].astype(f32).T, b3fc=params["fc3_b"].astype(f32)[None, :],
    )


# ----------------------------------------------------------------------------
# Forward = a single pallas_call; everything lives in VMEM.
# ----------------------------------------------------------------------------
def lenet_forward(prepared, x):
    x = x.astype(jnp.float32)
    B = x.shape[0]
    nc = prepared["b3fc"].shape[-1]

    s1e, s1o = _pool1_select(B)          # (B*14, B*28) 0/1 constants
    s2e, s2o = _pool2_select(B)          # (B*5,  B*10)

    ops = [x,
           prepared["m1e"], prepared["m1o"], s1e, s1o, prepared["b1row"],
           prepared["m2e"], prepared["m2o"], s2e, s2o, prepared["b2row"],
           prepared["w1fc"], prepared["b1fc"],
           prepared["w2fc"], prepared["b2fc"],
           prepared["w3fc"], prepared["b3fc"]]

    def full_spec(a):
        nd = a.ndim
        return pl.BlockSpec(a.shape, lambda i, _nd=nd: (0,) * _nd)

    return pl.pallas_call(
        _lenet_fused_kernel,
        out_shape=jax.ShapeDtypeStruct((B, nc), jnp.float32),
        grid=(1,),
        in_specs=[full_spec(a) for a in ops],
        out_specs=pl.BlockSpec((B, nc), lambda i: (0, 0)),
        scratch_shapes=[
            pltpu.VMEM((B * H1O, CIN * K1 * W_IN), jnp.float32),   # patch1 (B*28, 480)
            pltpu.VMEM((B * H1P, C1 * W1P), jnp.float32),          # pooled1 (B*14, 84)
            pltpu.VMEM((B * H2O, C1 * K2 * W1P), jnp.float32),     # patch2 (B*10, 420)
            pltpu.VMEM((B, NFLAT), jnp.float32),                   # flat   (B, 400)
        ],
        compiler_params=pltpu.CompilerParams(dimension_semantics=("arbitrary",)),
    )(*ops)


# ----------------------------------------------------------------------------
# Deterministic synthetic params and a pure-JAX reference for correctness.
# ----------------------------------------------------------------------------
def init_lenet_params(key, num_classes=10):
    ks = jax.random.split(key, 10)

    def u(k, shape, fan_in):
        bound = 1.0 / jnp.sqrt(fan_in)
        return jax.random.uniform(k, shape, jnp.float32, -bound, bound)

    return {
        "conv1_w": u(ks[0], (6, 3, 5, 5), 3 * 5 * 5),
        "conv1_b": u(ks[1], (6,), 3 * 5 * 5),
        "conv2_w": u(ks[2], (16, 6, 5, 5), 6 * 5 * 5),
        "conv2_b": u(ks[3], (16,), 6 * 5 * 5),
        "fc1_w": u(ks[4], (120, 400), 400),
        "fc1_b": u(ks[5], (120,), 400),
        "fc2_w": u(ks[6], (84, 120), 120),
        "fc2_b": u(ks[7], (84,), 120),
        "fc3_w": u(ks[8], (num_classes, 84), 84),
        "fc3_b": u(ks[9], (num_classes,), 84),
    }


def lenet_reference(params, x):
    def conv(x, w, b):
        y = jax.lax.conv_general_dilated(
            x, w, (1, 1), "VALID", dimension_numbers=("NCHW", "OIHW", "NCHW"))
        return jax.nn.relu(y + b[None, :, None, None])

    def pool(x):
        B, C, H, W = x.shape
        return jnp.max(x.reshape(B, C, H // 2, 2, W // 2, 2), axis=(3, 5))

    x = pool(conv(x, params["conv1_w"], params["conv1_b"]))
    x = pool(conv(x, params["conv2_w"], params["conv2_b"]))
    x = x.reshape(x.shape[0], 400)
    x = jax.nn.relu(x @ params["fc1_w"].T + params["fc1_b"])
    x = jax.nn.relu(x @ params["fc2_w"].T + params["fc2_b"])
    return x @ params["fc3_w"].T + params["fc3_b"]


if __name__ == "__main__":
    key = jax.random.PRNGKey(0)
    k_param, k_x = jax.random.split(key)
    params = init_lenet_params(k_param, num_classes=10)
    prepared = prepare_lenet_params(params)            # one-time weight prep
    # LeNet as defined requires 3x32x32 spatial input (16*5*5 flatten).
    x = jax.random.normal(k_x, (2, 3, 32, 32), dtype=jnp.float32)

    fwd = jax.jit(lenet_forward)
    out = jax.block_until_ready(fwd(prepared, x))
    ref = jax.block_until_ready(lenet_reference(params, x))

    assert out.shape == (2, 10), out.shape
    max_err = float(jnp.max(jnp.abs(out - ref)))
    assert jnp.allclose(out, ref, atol=1e-3, rtol=1e-3), max_err
    print("KERNEL_OK")
</pallas_src>

<mosaic_0001>
module attributes {stable_mosaic.version = 11 : i64} {
  func.func @_lenet_fused_kernel(%arg0: i32, %arg1: memref<2x3x32x32xf32, #tpu.memory_space<vmem>>, %arg2: memref<480x84xf32, #tpu.memory_space<vmem>>, %arg3: memref<480x84xf32, #tpu.memory_space<vmem>>, %arg4: memref<28x56xf32, #tpu.memory_space<vmem>>, %arg5: memref<28x56xf32, #tpu.memory_space<vmem>>, %arg6: memref<1x84xf32, #tpu.memory_space<vmem>>, %arg7: memref<420x80xf32, #tpu.memory_space<vmem>>, %arg8: memref<420x80xf32, #tpu.memory_space<vmem>>, %arg9: memref<10x20xf32, #tpu.memory_space<vmem>>, %arg10: memref<10x20xf32, #tpu.memory_space<vmem>>, %arg11: memref<1x80xf32, #tpu.memory_space<vmem>>, %arg12: memref<400x120xf32, #tpu.memory_space<vmem>>, %arg13: memref<1x120xf32, #tpu.memory_space<vmem>>, %arg14: memref<120x84xf32, #tpu.memory_space<vmem>>, %arg15: memref<1x84xf32, #tpu.memory_space<vmem>>, %arg16: memref<84x10xf32, #tpu.memory_space<vmem>>, %arg17: memref<1x10xf32, #tpu.memory_space<vmem>>, %arg18: memref<2x10xf32, #tpu.memory_space<vmem>>, %arg19: memref<56x480xf32, #tpu.memory_space<vmem>>, %arg20: memref<28x84xf32, #tpu.memory_space<vmem>>, %arg21: memref<20x420xf32, #tpu.memory_space<vmem>>, %arg22: memref<2x400xf32, #tpu.memory_space<vmem>>) attributes {dimension_semantics = [#tpu.dimension_semantics<arbitrary>], iteration_bounds = array<i64: 1>, scalar_prefetch = 0 : i64, scratch_operands = 4 : i64, tpu.core_type = #tpu.core_type<tc>, window_params = [{pipeline_mode = #tpu.pipeline_mode<synchronous>, transform_indices = @transform_0, window_bounds = array<i64: 2, 3, 32, 32>}, {pipeline_mode = #tpu.pipeline_mode<synchronous>, transform_indices = @transform_1, window_bounds = array<i64: 480, 84>}, {pipeline_mode = #tpu.pipeline_mode<synchronous>, transform_indices = @transform_2, window_bounds = array<i64: 480, 84>}, {pipeline_mode = #tpu.pipeline_mode<synchronous>, transform_indices = @transform_3, window_bounds = array<i64: 28, 56>}, {pipeline_mode = #tpu.pipeline_mode<synchronous>, transform_indices = @transform_4, window_bounds = array<i64: 28, 56>}, {pipeline_mode = #tpu.pipeline_mode<synchronous>, transform_indices = @transform_5, window_bounds = array<i64: 1, 84>}, {pipeline_mode = #tpu.pipeline_mode<synchronous>, transform_indices = @transform_6, window_bounds = array<i64: 420, 80>}, {pipeline_mode = #tpu.pipeline_mode<synchronous>, transform_indices = @transform_7, window_bounds = array<i64: 420, 80>}, {pipeline_mode = #tpu.pipeline_mode<synchronous>, transform_indices = @transform_8, window_bounds = array<i64: 10, 20>}, {pipeline_mode = #tpu.pipeline_mode<synchronous>, transform_indices = @transform_9, window_bounds = array<i64: 10, 20>}, {pipeline_mode = #tpu.pipeline_mode<synchronous>, transform_indices = @transform_10, window_bounds = array<i64: 1, 80>}, {pipeline_mode = #tpu.pipeline_mode<synchronous>, transform_indices = @transform_11, window_bounds = array<i64: 400, 120>}, {pipeline_mode = #tpu.pipeline_mode<synchronous>, transform_indices = @transform_12, window_bounds = array<i64: 1, 120>}, {pipeline_mode = #tpu.pipeline_mode<synchronous>, transform_indices = @transform_13, window_bounds = array<i64: 120, 84>}, {pipeline_mode = #tpu.pipeline_mode<synchronous>, transform_indices = @transform_14, window_bounds = array<i64: 1, 84>}, {pipeline_mode = #tpu.pipeline_mode<synchronous>, transform_indices = @transform_15, window_bounds = array<i64: 84, 10>}, {pipeline_mode = #tpu.pipeline_mode<synchronous>, transform_indices = @transform_16, window_bounds = array<i64: 1, 10>}, {pipeline_mode = #tpu.pipeline_mode<synchronous>, transform_indices = @transform_17, window_bounds = array<i64: 2, 10>}]} {
    %c0 = arith.constant 0 : index
    %c0_0 = arith.constant 0 : index
    %c0_1 = arith.constant 0 : index
    %c0_2 = arith.constant 0 : index
    %0 = vector.load %arg1[%c0, %c0_0, %c0_1, %c0_2] : memref<2x3x32x32xf32, #tpu.memory_space<vmem>>, vector<1x1x28x32xf32>
    %1 = vector.shape_cast %0 : vector<1x1x28x32xf32> to vector<28x32xf32>
    %c0_3 = arith.constant 0 : index
    %c0_4 = arith.constant 0 : index
    %2 = vector.load %arg19[%c0_3, %c0_4] : memref<56x480xf32, #tpu.memory_space<vmem>>, vector<28x32xf32>
    tpu.vector_store %arg19[%c0_3, %c0_4], %1 {strides = array<i32>} : memref<56x480xf32, #tpu.memory_space<vmem>>, vector<28x32xf32>,
    %c0_5 = arith.constant 0 : index
    %c0_6 = arith.constant 0 : index
    %c1 = arith.constant 1 : index
    %c0_7 = arith.constant 0 : index
    %3 = vector.load %arg1[%c0_5, %c0_6, %c1, %c0_7] : memref<2x3x32x32xf32, #tpu.memory_space<vmem>>, vector<1x1x28x32xf32>
    %4 = vector.shape_cast %3 : vector<1x1x28x32xf32> to vector<28x32xf32>
    %c0_8 = arith.constant 0 : index
    %c32 = arith.constant 32 : index
    %5 = vector.load %arg19[%c0_8, %c32] : memref<56x480xf32, #tpu.memory_space<vmem>>, vector<28x32xf32>
    tpu.vector_store %arg19[%c0_8, %c32], %4 {strides = array<i32>} : memref<56x480xf32, #tpu.memory_space<vmem>>, vector<28x32xf32>,
    %c0_9 = arith.constant 0 : index
    %c0_10 = arith.constant 0 : index
    %c2 = arith.constant 2 : index
    %c0_11 = arith.constant 0 : index
    %6 = vector.load %arg1[%c0_9, %c0_10, %c2, %c0_11] : memref<2x3x32x32xf32, #tpu.memory_space<vmem>>, vector<1x1x28x32xf32>
    %7 = vector.shape_cast %6 : vector<1x1x28x32xf32> to vector<28x32xf32>
    %c0_12 = arith.constant 0 : index
    %c64 = arith.constant 64 : index
    %8 = vector.load %arg19[%c0_12, %c64] : memref<56x480xf32, #tpu.memory_space<vmem>>, vector<28x32xf32>
    tpu.vector_store %arg19[%c0_12, %c64], %7 {strides = array<i32>} : memref<56x480xf32, #tpu.memory_space<vmem>>, vector<28x32xf32>,
    %c0_13 = arith.constant 0 : index
    %c0_14 = arith.constant 0 : index
    %c3 = arith.constant 3 : index
    %c0_15 = arith.constant 0 : index
    %9 = vector.load %arg1[%c0_13, %c0_14, %c3, %c0_15] : memref<2x3x32x32xf32, #tpu.memory_space<vmem>>, vector<1x1x28x32xf32>
    %10 = vector.shape_cast %9 : vector<1x1x28x32xf32> to vector<28x32xf32>
    %c0_16 = arith.constant 0 : index
    %c96 = arith.constant 96 : index
    %11 = vector.load %arg19[%c0_16, %c96] : memref<56x480xf32, #tpu.memory_space<vmem>>, vector<28x32xf32>
    tpu.vector_store %arg19[%c0_16, %c96], %10 {strides = array<i32>} : memref<56x480xf32, #tpu.memory_space<vmem>>, vector<28x32xf32>,
    %c0_17 = arith.constant 0 : index
    %c0_18 = arith.constant 0 : index
    %c4 = arith.constant 4 : index
    %c0_19 = arith.constant 0 : index
    %12 = vector.load %arg1[%c0_17, %c0_18, %c4, %c0_19] : memref<2x3x32x32xf32, #tpu.memory_space<vmem>>, vector<1x1x28x32xf32>
    %13 = vector.shape_cast %12 : vector<1x1x28x32xf32> to vector<28x32xf32>
    %c0_20 = arith.constant 0 : index
    %c128 = arith.constant 128 : index
    %14 = vector.load %arg19[%c0_20, %c128] : memref<56x480xf32, #tpu.memory_space<vmem>>, vector<28x32xf32>
    tpu.vector_store %arg19[%c0_20, %c128], %13 {strides = array<i32>} : memref<56x480xf32, #tpu.memory_space<vmem>>, vector<28x32xf32>,
    %c0_21 = arith.constant 0 : index
    %c1_22 = arith.constant 1 : index
    %c0_23 = arith.constant 0 : index
    %c0_24 = arith.constant 0 : index
    %15 = vector.load %arg1[%c0_21, %c1_22, %c0_23, %c0_24] : memref<2x3x32x32xf32, #tpu.memory_space<vmem>>, vector<1x1x28x32xf32>
    %16 = vector.shape_cast %15 : vector<1x1x28x32xf32> to vector<28x32xf32>
    %c0_25 = arith.constant 0 : index
    %c160 = arith.constant 160 : index
    %17 = vector.load %arg19[%c0_25, %c160] : memref<56x480xf32, #tpu.memory_space<vmem>>, vector<28x32xf32>
    tpu.vector_store %arg19[%c0_25, %c160], %16 {strides = array<i32>} : memref<56x480xf32, #tpu.memory_space<vmem>>, vector<28x32xf32>,
    %c0_26 = arith.constant 0 : index
    %c1_27 = arith.constant 1 : index
    %c1_28 = arith.constant 1 : index
    %c0_29 = arith.constant 0 : index
    %18 = vector.load %arg1[%c0_26, %c1_27, %c1_28, %c0_29] : memref<2x3x32x32xf32, #tpu.memory_space<vmem>>, vector<1x1x28x32xf32>
    %19 = vector.shape_cast %18 : vector<1x1x28x32xf32> to vector<28x32xf32>
    %c0_30 = arith.constant 0 : index
    %c192 = arith.constant 192 : index
    %20 = vector.load %arg19[%c0_30, %c192] : memref<56x480xf32, #tpu.memory_space<vmem>>, vector<28x32xf32>
    tpu.vector_store %arg19[%c0_30, %c192], %19 {strides = array<i32>} : memref<56x480xf32, #tpu.memory_space<vmem>>, vector<28x32xf32>,
    %c0_31 = arith.constant 0 : index
    %c1_32 = arith.constant 1 : index
    %c2_33 = arith.constant 2 : index
    %c0_34 = arith.constant 0 : index
    %21 = vector.load %arg1[%c0_31, %c1_32, %c2_33, %c0_34] : memref<2x3x32x32xf32, #tpu.memory_space<vmem>>, vector<1x1x28x32xf32>
    %22 = vector.shape_cast %21 : vector<1x1x28x32xf32> to vector<28x32xf32>
    %c0_35 = arith.constant 0 : index
    %c224 = arith.constant 224 : index
    %23 = vector.load %arg19[%c0_35, %c224] : memref<56x480xf32, #tpu.memory_space<vmem>>, vector<28x32xf32>
    tpu.vector_store %arg19[%c0_35, %c224], %22 {strides = array<i32>} : memref<56x480xf32, #tpu.memory_space<vmem>>, vector<28x32xf32>,
    %c0_36 = arith.constant 0 : index
    %c1_37 = arith.constant 1 : index
    %c3_38 = arith.constant 3 : index
    %c0_39 = arith.constant 0 : index
    %24 = vector.load %arg1[%c0_36, %c1_37, %c3_38, %c0_39] : memref<2x3x32x32xf32, #tpu.memory_space<vmem>>, vector<1x1x28x32xf32>
    %25 = vector.shape_cast %24 : vector<1x1x28x32xf32> to vector<28x32xf32>
    %c0_40 = arith.constant 0 : index
    %c256 = arith.constant 256 : index
    %26 = vector.load %arg19[%c0_40, %c256] : memref<56x480xf32, #tpu.memory_space<vmem>>, vector<28x32xf32>
    tpu.vector_store %arg19[%c0_40, %c256], %25 {strides = array<i32>} : memref<56x480xf32, #tpu.memory_space<vmem>>, vector<28x32xf32>,
    %c0_41 = arith.constant 0 : index
    %c1_42 = arith.constant 1 : index
    %c4_43 = arith.constant 4 : index
    %c0_44 = arith.constant 0 : index
    %27 = vector.load %arg1[%c0_41, %c1_42, %c4_43, %c0_44] : memref<2x3x32x32xf32, #tpu.memory_space<vmem>>, vector<1x1x28x32xf32>
    %28 = vector.shape_cast %27 : vector<1x1x28x32xf32> to vector<28x32xf32>
    %c0_45 = arith.constant 0 : index
    %c288 = arith.constant 288 : index
    %29 = vector.load %arg19[%c0_45, %c288] : memref<56x480xf32, #tpu.memory_space<vmem>>, vector<28x32xf32>
    tpu.vector_store %arg19[%c0_45, %c288], %28 {strides = array<i32>} : memref<56x480xf32, #tpu.memory_space<vmem>>, vector<28x32xf32>,
    %c0_46 = arith.constant 0 : index
    %c2_47 = arith.constant 2 : index
    %c0_48 = arith.constant 0 : index
    %c0_49 = arith.constant 0 : index
    %30 = vector.load %arg1[%c0_46, %c2_47, %c0_48, %c0_49] : memref<2x3x32x32xf32, #tpu.memory_space<vmem>>, vector<1x1x28x32xf32>
    %31 = vector.shape_cast %30 : vector<1x1x28x32xf32> to vector<28x32xf32>
    %c0_50 = arith.constant 0 : index
    %c320 = arith.constant 320 : index
    %32 = vector.load %arg19[%c0_50, %c320] : memref<56x480xf32, #tpu.memory_space<vmem>>, vector<28x32xf32>
    tpu.vector_store %arg19[%c0_50, %c320], %31 {strides = array<i32>} : memref<56x480xf32, #tpu.memory_space<vmem>>, vector<28x32xf32>,
    %c0_51 = arith.constant 0 : index
    %c2_52 = arith.constant 2 : index
    %c1_53 = arith.constant 1 : index
    %c0_54 = arith.constant 0 : index
    %33 = vector.load %arg1[%c0_51, %c2_52, %c1_53, %c0_54] : memref<2x3x32x32xf32, #tpu.memory_space<vmem>>, vector<1x1x28x32xf32>
    %34 = vector.shape_cast %33 : vector<1x1x28x32xf32> to vector<28x32xf32>
    %c0_55 = arith.constant 0 : index
    %c352 = arith.constant 352 : index
    %35 = vector.load %arg19[%c0_55, %c352] : memref<56x480xf32, #tpu.memory_space<vmem>>, vector<28x32xf32>
    tpu.vector_store %arg19[%c0_55, %c352], %34 {strides = array<i32>} : memref<56x480xf32, #tpu.memory_space<vmem>>, vector<28x32xf32>,
    %c0_56 = arith.constant 0 : index
    %c2_57 = arith.constant 2 : index
    %c2_58 = arith.constant 2 : index
    %c0_59 = arith.constant 0 : index
    %36 = vector.load %arg1[%c0_56, %c2_57, %c2_58, %c0_59] : memref<2x3x32x32xf32, #tpu.memory_space<vmem>>, vector<1x1x28x32xf32>
    %37 = vector.shape_cast %36 : vector<1x1x28x32xf32> to vector<28x32xf32>
    %c0_60 = arith.constant 0 : index
    %c384 = arith.constant 384 : index
    %38 = vector.load %arg19[%c0_60, %c384] : memref<56x480xf32, #tpu.memory_space<vmem>>, vector<28x32xf32>
    tpu.vector_store %arg19[%c0_60, %c384], %37 {strides = array<i32>} : memref<56x480xf32, #tpu.memory_space<vmem>>, vector<28x32xf32>,
    %c0_61 = arith.constant 0 : index
    %c2_62 = arith.constant 2 : index
    %c3_63 = arith.constant 3 : index
    %c0_64 = arith.constant 0 : index
    %39 = vector.load %arg1[%c0_61, %c2_62, %c3_63, %c0_64] : memref<2x3x32x32xf32, #tpu.memory_space<vmem>>, vector<1x1x28x32xf32>
    %40 = vector.shape_cast %39 : vector<1x1x28x32xf32> to vector<28x32xf32>
    %c0_65 = arith.constant 0 : index
    %c416 = arith.constant 416 : index
    %41 = vector.load %arg19[%c0_65, %c416] : memref<56x480xf32, #tpu.memory_space<vmem>>, vector<28x32xf32>
    tpu.vector_store %arg19[%c0_65, %c416], %40 {strides = array<i32>} : memref<56x480xf32, #tpu.memory_space<vmem>>, vector<28x32xf32>,
    %c0_66 = arith.constant 0 : index
    %c2_67 = arith.constant 2 : index
    %c4_68 = arith.constant 4 : index
    %c0_69 = arith.constant 0 : index
    %42 = vector.load %arg1[%c0_66, %c2_67, %c4_68, %c0_69] : memref<2x3x32x32xf32, #tpu.memory_space<vmem>>, vector<1x1x28x32xf32>
    %43 = vector.shape_cast %42 : vector<1x1x28x32xf32> to vector<28x32xf32>
    %c0_70 = arith.constant 0 : index
    %c448 = arith.constant 448 : index
    %44 = vector.load %arg19[%c0_70, %c448] : memref<56x480xf32, #tpu.memory_space<vmem>>, vector<28x32xf32>
    tpu.vector_store %arg19[%c0_70, %c448], %43 {strides = array<i32>} : memref<56x480xf32, #tpu.memory_space<vmem>>, vector<28x32xf32>,
    %c1_71 = arith.constant 1 : index
    %c0_72 = arith.constant 0 : index
    %c0_73 = arith.constant 0 : index
    %c0_74 = arith.constant 0 : index
    %45 = vector.load %arg1[%c1_71, %c0_72, %c0_73, %c0_74] : memref<2x3x32x32xf32, #tpu.memory_space<vmem>>, vector<1x1x28x32xf32>
    %46 = vector.shape_cast %45 : vector<1x1x28x32xf32> to vector<28x32xf32>
    %c28 = arith.constant 28 : index
    %c0_75 = arith.constant 0 : index
    %47 = vector.load %arg19[%c28, %c0_75] : memref<56x480xf32, #tpu.memory_space<vmem>>, vector<28x32xf32>
    tpu.vector_store %arg19[%c28, %c0_75], %46 {strides = array<i32>} : memref<56x480xf32, #tpu.memory_space<vmem>>, vector<28x32xf32>,
    %c1_76 = arith.constant 1 : index
    %c0_77 = arith.constant 0 : index
    %c1_78 = arith.constant 1 : index
    %c0_79 = arith.constant 0 : index
    %48 = vector.load %arg1[%c1_76, %c0_77, %c1_78, %c0_79] : memref<2x3x32x32xf32, #tpu.memory_space<vmem>>, vector<1x1x28x32xf32>
    %49 = vector.shape_cast %48 : vector<1x1x28x32xf32> to vector<28x32xf32>
    %c28_80 = arith.constant 28 : index
    %c32_81 = arith.constant 32 : index
    %50 = vector.load %arg19[%c28_80, %c32_81] : memref<56x480xf32, #tpu.memory_space<vmem>>, vector<28x32xf32>
    tpu.vector_store %arg19[%c28_80, %c32_81], %49 {strides = array<i32>} : memref<56x480xf32, #tpu.memory_space<vmem>>, vector<28x32xf32>,
    %c1_82 = arith.constant 1 : index
    %c0_83 = arith.constant 0 : index
    %c2_84 = arith.constant 2 : index
    %c0_85 = arith.constant 0 : index
    %51 = vector.load %arg1[%c1_82, %c0_83, %c2_84, %c0_85] : memref<2x3x32x32xf32, #tpu.memory_space<vmem>>, vector<1x1x28x32xf32>
    %52 = vector.shape_cast %51 : vector<1x1x28x32xf32> to vector<28x32xf32>
    %c28_86 = arith.constant 28 : index
    %c64_87 = arith.constant 64 : index
    %53 = vector.load %arg19[%c28_86, %c64_87] : memref<56x480xf32, #tpu.memory_space<vmem>>, vector<28x32xf32>
    tpu.vector_store %arg19[%c28_86, %c64_87], %52 {strides = array<i32>} : memref<56x480xf32, #tpu.memory_space<vmem>>, vector<28x32xf32>,
    %c1_88 = arith.constant 1 : index
    %c0_89 = arith.constant 0 : index
    %c3_90 = arith.constant 3 : index
    %c0_91 = arith.constant 0 : index
    %54 = vector.load %arg1[%c1_88, %c0_89, %c3_90, %c0_91] : memref<2x3x32x32xf32, #tpu.memory_space<vmem>>, vector<1x1x28x32xf32>
    %55 = vector.shape_cast %54 : vector<1x1x28x32xf32> to vector<28x32xf32>
    %c28_92 = arith.constant 28 : index
    %c96_93 = arith.constant 96 : index
    %56 = vector.load %arg19[%c28_92, %c96_93] : memref<56x480xf32, #tpu.memory_space<vmem>>, vector<28x32xf32>
    tpu.vector_store %arg19[%c28_92, %c96_93], %55 {strides = array<i32>} : memref<56x480xf32, #tpu.memory_space<vmem>>, vector<28x32xf32>,
    %c1_94 = arith.constant 1 : index
    %c0_95 = arith.constant 0 : index
    %c4_96 = arith.constant 4 : index
    %c0_97 = arith.constant 0 : index
    %57 = vector.load %arg1[%c1_94, %c0_95, %c4_96, %c0_97] : memref<2x3x32x32xf32, #tpu.memory_space<vmem>>, vector<1x1x28x32xf32>
    %58 = vector.shape_cast %57 : vector<1x1x28x32xf32> to vector<28x32xf32>
    %c28_98 = arith.constant 28 : index
    %c128_99 = arith.constant 128 : index
    %59 = vector.load %arg19[%c28_98, %c128_99] : memref<56x480xf32, #tpu.memory_space<vmem>>, vector<28x32xf32>
    tpu.vector_store %arg19[%c28_98, %c128_99], %58 {strides = array<i32>} : memref<56x480xf32, #tpu.memory_space<vmem>>, vector<28x32xf32>,
    %c1_100 = arith.constant 1 : index
    %c1_101 = arith.constant 1 : index
    %c0_102 = arith.constant 0 : index
    %c0_103 = arith.constant 0 : index
    %60 = vector.load %arg1[%c1_100, %c1_101, %c0_102, %c0_103] : memref<2x3x32x32xf32, #tpu.memory_space<vmem>>, vector<1x1x28x32xf32>
    %61 = vector.shape_cast %60 : vector<1x1x28x32xf32> to vector<28x32xf32>
    %c28_104 = arith.constant 28 : index
    %c160_105 = arith.constant 160 : index
    %62 = vector.load %arg19[%c28_104, %c160_105] : memref<56x480xf32, #tpu.memory_space<vmem>>, vector<28x32xf32>
    tpu.vector_store %arg19[%c28_104, %c160_105], %61 {strides = array<i32>} : memref<56x480xf32, #tpu.memory_space<vmem>>, vector<28x32xf32>,
    %c1_106 = arith.constant 1 : index
    %c1_107 = arith.constant 1 : index
    %c1_108 = arith.constant 1 : index
    %c0_109 = arith.constant 0 : index
    %63 = vector.load %arg1[%c1_106, %c1_107, %c1_108, %c0_109] : memref<2x3x32x32xf32, #tpu.memory_space<vmem>>, vector<1x1x28x32xf32>
    %64 = vector.shape_cast %63 : vector<1x1x28x32xf32> to vector<28x32xf32>
    %c28_110 = arith.constant 28 : index
    %c192_111 = arith.constant 192 : index
    %65 = vector.load %arg19[%c28_110, %c192_111] : memref<56x480xf32, #tpu.memory_space<vmem>>, vector<28x32xf32>
    tpu.vector_store %arg19[%c28_110, %c192_111], %64 {strides = array<i32>} : memref<56x480xf32, #tpu.memory_space<vmem>>, vector<28x32xf32>,
    %c1_112 = arith.constant 1 : index
    %c1_113 = arith.constant 1 : index
    %c2_114 = arith.constant 2 : index
    %c0_115 = arith.constant 0 : index
    %66 = vector.load %arg1[%c1_112, %c1_113, %c2_114, %c0_115] : memref<2x3x32x32xf32, #tpu.memory_space<vmem>>, vector<1x1x28x32xf32>
    %67 = vector.shape_cast %66 : vector<1x1x28x32xf32> to vector<28x32xf32>
    %c28_116 = arith.constant 28 : index
    %c224_117 = arith.constant 224 : index
    %68 = vector.load %arg19[%c28_116, %c224_117] : memref<56x480xf32, #tpu.memory_space<vmem>>, vector<28x32xf32>
    tpu.vector_store %arg19[%c28_116, %c224_117], %67 {strides = array<i32>} : memref<56x480xf32, #tpu.memory_space<vmem>>, vector<28x32xf32>,
    %c1_118 = arith.constant 1 : index
    %c1_119 = arith.constant 1 : index
    %c3_120 = arith.constant 3 : index
    %c0_121 = arith.constant 0 : index
    %69 = vector.load %arg1[%c1_118, %c1_119, %c3_120, %c0_121] : memref<2x3x32x32xf32, #tpu.memory_space<vmem>>, vector<1x1x28x32xf32>
    %70 = vector.shape_cast %69 : vector<1x1x28x32xf32> to vector<28x32xf32>
    %c28_122 = arith.constant 28 : index
    %c256_123 = arith.constant 256 : index
    %71 = vector.load %arg19[%c28_122, %c256_123] : memref<56x480xf32, #tpu.memory_space<vmem>>, vector<28x32xf32>
    tpu.vector_store %arg19[%c28_122, %c256_123], %70 {strides = array<i32>} : memref<56x480xf32, #tpu.memory_space<vmem>>, vector<28x32xf32>,
    %c1_124 = arith.constant 1 : index
    %c1_125 = arith.constant 1 : index
    %c4_126 = arith.constant 4 : index
    %c0_127 = arith.constant 0 : index
    %72 = vector.load %arg1[%c1_124, %c1_125, %c4_126, %c0_127] : memref<2x3x32x32xf32, #tpu.memory_space<vmem>>, vector<1x1x28x32xf32>
    %73 = vector.shape_cast %72 : vector<1x1x28x32xf32> to vector<28x32xf32>
    %c28_128 = arith.constant 28 : index
    %c288_129 = arith.constant 288 : index
    %74 = vector.load %arg19[%c28_128, %c288_129] : memref<56x480xf32, #tpu.memory_space<vmem>>, vector<28x32xf32>
    tpu.vector_store %arg19[%c28_128, %c288_129], %73 {strides = array<i32>} : memref<56x480xf32, #tpu.memory_space<vmem>>, vector<28x32xf32>,
    %c1_130 = arith.constant 1 : index
    %c2_131 = arith.constant 2 : index
    %c0_132 = arith.constant 0 : index
    %c0_133 = arith.constant 0 : index
    %75 = vector.load %arg1[%c1_130, %c2_131, %c0_132, %c0_133] : memref<2x3x32x32xf32, #tpu.memory_space<vmem>>, vector<1x1x28x32xf32>
    %76 = vector.shape_cast %75 : vector<1x1x28x32xf32> to vector<28x32xf32>
    %c28_134 = arith.constant 28 : index
    %c320_135 = arith.constant 320 : index
    %77 = vector.load %arg19[%c28_134, %c320_135] : memref<56x480xf32, #tpu.memory_space<vmem>>, vector<28x32xf32>
    tpu.vector_store %arg19[%c28_134, %c320_135], %76 {strides = array<i32>} : memref<56x480xf32, #tpu.memory_space<vmem>>, vector<28x32xf32>,
    %c1_136 = arith.constant 1 : index
    %c2_137 = arith.constant 2 : index
    %c1_138 = arith.constant 1 : index
    %c0_139 = arith.constant 0 : index
    %78 = vector.load %arg1[%c1_136, %c2_137, %c1_138, %c0_139] : memref<2x3x32x32xf32, #tpu.memory_space<vmem>>, vector<1x1x28x32xf32>
    %79 = vector.shape_cast %78 : vector<1x1x28x32xf32> to vector<28x32xf32>
    %c28_140 = arith.constant 28 : index
    %c352_141 = arith.constant 352 : index
    %80 = vector.load %arg19[%c28_140, %c352_141] : memref<56x480xf32, #tpu.memory_space<vmem>>, vector<28x32xf32>
    tpu.vector_store %arg19[%c28_140, %c352_141], %79 {strides = array<i32>} : memref<56x480xf32, #tpu.memory_space<vmem>>, vector<28x32xf32>,
    %c1_142 = arith.constant 1 : index
    %c2_143 = arith.constant 2 : index
    %c2_144 = arith.constant 2 : index
    %c0_145 = arith.constant 0 : index
    %81 = vector.load %arg1[%c1_142, %c2_143, %c2_144, %c0_145] : memref<2x3x32x32xf32, #tpu.memory_space<vmem>>, vector<1x1x28x32xf32>
    %82 = vector.shape_cast %81 : vector<1x1x28x32xf32> to vector<28x32xf32>
    %c28_146 = arith.constant 28 : index
    %c384_147 = arith.constant 384 : index
    %83 = vector.load %arg19[%c28_146, %c384_147] : memref<56x480xf32, #tpu.memory_space<vmem>>, vector<28x32xf32>
    tpu.vector_store %arg19[%c28_146, %c384_147], %82 {strides = array<i32>} : memref<56x480xf32, #tpu.memory_space<vmem>>, vector<28x32xf32>,
    %c1_148 = arith.constant 1 : index
    %c2_149 = arith.constant 2 : index
    %c3_150 = arith.constant 3 : index
    %c0_151 = arith.constant 0 : index
    %84 = vector.load %arg1[%c1_148, %c2_149, %c3_150, %c0_151] : memref<2x3x32x32xf32, #tpu.memory_space<vmem>>, vector<1x1x28x32xf32>
    %85 = vector.shape_cast %84 : vector<1x1x28x32xf32> to vector<28x32xf32>
    %c28_152 = arith.constant 28 : index
    %c416_153 = arith.constant 416 : index
    %86 = vector.load %arg19[%c28_152, %c416_153] : memref<56x480xf32, #tpu.memory_space<vmem>>, vector<28x32xf32>
    tpu.vector_store %arg19[%c28_152, %c416_153], %85 {strides = array<i32>} : memref<56x480xf32, #tpu.memory_space<vmem>>, vector<28x32xf32>,
    %c1_154 = arith.constant 1 : index
    %c2_155 = arith.constant 2 : index
    %c4_156 = arith.constant 4 : index
    %c0_157 = arith.constant 0 : index
    %87 = vector.load %arg1[%c1_154, %c2_155, %c4_156, %c0_157] : memref<2x3x32x32xf32, #tpu.memory_space<vmem>>, vector<1x1x28x32xf32>
    %88 = vector.shape_cast %87 : vector<1x1x28x32xf32> to vector<28x32xf32>
    %c28_158 = arith.constant 28 : index
    %c448_159 = arith.constant 448 : index
    %89 = vector.load %arg19[%c28_158, %c448_159] : memref<56x480xf32, #tpu.memory_space<vmem>>, vector<28x32xf32>
    tpu.vector_store %arg19[%c28_158, %c448_159], %88 {strides = array<i32>} : memref<56x480xf32, #tpu.memory_space<vmem>>, vector<28x32xf32>,
    %c0_160 = arith.constant 0 : index
    %c0_161 = arith.constant 0 : index
    %90 = vector.load %arg19[%c0_160, %c0_161] : memref<56x480xf32, #tpu.memory_space<vmem>>, vector<56x480xf32>
    %c0_162 = arith.constant 0 : index
    %c0_163 = arith.constant 0 : index
    %91 = vector.load %arg2[%c0_162, %c0_163] : memref<480x84xf32, #tpu.memory_space<vmem>>, vector<480x84xf32>
    %cst = arith.constant dense<0.000000e+00> : vector<56x84xf32>
    %92 = tpu.matmul %90, %91, %cst {dimension_numbers = #tpu.dot_dimension_numbers<[1], [0], [0], [1], [0, 0, 1, 1], [], []>} : vector<56x480xf32>, vector<480x84xf32>, vector<56x84xf32> -> vector<56x84xf32>
    %c0_164 = arith.constant 0 : index
    %c0_165 = arith.constant 0 : index
    %93 = vector.load %arg3[%c0_164, %c0_165] : memref<480x84xf32, #tpu.memory_space<vmem>>, vector<480x84xf32>
    %cst_166 = arith.constant dense<0.000000e+00> : vector<56x84xf32>
    %94 = tpu.matmul %90, %93, %cst_166 {dimension_numbers = #tpu.dot_dimension_numbers<[1], [0], [0], [1], [0, 0, 1, 1], [], []>} : vector<56x480xf32>, vector<480x84xf32>, vector<56x84xf32> -> vector<56x84xf32>
    %95 = arith.maximumf %92, %94 : vector<56x84xf32>
    %c0_167 = arith.constant 0 : index
    %c0_168 = arith.constant 0 : index
    %96 = vector.load %arg4[%c0_167, %c0_168] : memref<28x56xf32, #tpu.memory_space<vmem>>, vector<28x56xf32>
    %cst_169 = arith.constant dense<0.000000e+00> : vector<28x84xf32>
    %97 = tpu.matmul %96, %95, %cst_169 {dimension_numbers = #tpu.dot_dimension_numbers<[1], [0], [0], [1], [0, 0, 1, 1], [], []>} : vector<28x56xf32>, vector<56x84xf32>, vector<28x84xf32> -> vector<28x84xf32>
    %c0_170 = arith.constant 0 : index
    %c0_171 = arith.constant 0 : index
    %98 = vector.load %arg5[%c0_170, %c0_171] : memref<28x56xf32, #tpu.memory_space<vmem>>, vector<28x56xf32>
    %cst_172 = arith.constant dense<0.000000e+00> : vector<28x84xf32>
    %99 = tpu.matmul %98, %95, %cst_172 {dimension_numbers = #tpu.dot_dimension_numbers<[1], [0], [0], [1], [0, 0, 1, 1], [], []>} : vector<28x56xf32>, vector<56x84xf32>, vector<28x84xf32> -> vector<28x84xf32>
    %100 = arith.maximumf %97, %99 : vector<28x84xf32>
    %c0_173 = arith.constant 0 : index
    %c0_174 = arith.constant 0 : index
    %101 = vector.load %arg6[%c0_173, %c0_174] : memref<1x84xf32, #tpu.memory_space<vmem>>, vector<1x84xf32>
    %102 = vector.broadcast %101 : vector<1x84xf32> to vector<28x84xf32>
    %103 = arith.addf %100, %102 : vector<28x84xf32>
    %cst_175 = arith.constant 0.000000e+00 : f32
    %104 = vector.broadcast %cst_175 : f32 to vector<28x84xf32>
    %105 = arith.maximumf %103, %104 : vector<28x84xf32>
    %c0_176 = arith.constant 0 : index
    %c0_177 = arith.constant 0 : index
    %106 = vector.load %arg20[%c0_176, %c0_177] : memref<28x84xf32, #tpu.memory_space<vmem>>, vector<28x84xf32>
    tpu.vector_store %arg20[%c0_176, %c0_177], %105 {strides = array<i32>} : memref<28x84xf32, #tpu.memory_space<vmem>>, vector<28x84xf32>,
    %c0_178 = arith.constant 0 : index
    %c0_179 = arith.constant 0 : index
    %107 = vector.load %arg20[%c0_178, %c0_179] : memref<28x84xf32, #tpu.memory_space<vmem>>, vector<20x14xf32>
    %c0_180 = arith.constant 0 : index
    %c0_181 = arith.constant 0 : index
    %108 = vector.load %arg21[%c0_180, %c0_181] : memref<20x420xf32, #tpu.memory_space<vmem>>, vector<20x14xf32>
    tpu.vector_store %arg21[%c0_180, %c0_181], %107 {strides = array<i32>} : memref<20x420xf32, #tpu.memory_space<vmem>>, vector<20x14xf32>,
    %c2_182 = arith.constant 2 : index
    %c0_183 = arith.constant 0 : index
    %109 = vector.load %arg20[%c2_182, %c0_183] : memref<28x84xf32, #tpu.memory_space<vmem>>, vector<20x14xf32>
    %c0_184 = arith.constant 0 : index
    %c14 = arith.constant 14 : index
    %110 = vector.load %arg21[%c0_184, %c14] : memref<20x420xf32, #tpu.memory_space<vmem>>, vector<20x14xf32>
    tpu.vector_store %arg21[%c0_184, %c14], %109 {strides = array<i32>} : memref<20x420xf32, #tpu.memory_space<vmem>>, vector<20x14xf32>,
    %c4_185 = arith.constant 4 : index
    %c0_186 = arith.constant 0 : index
    %111 = vector.load %arg20[%c4_185, %c0_186] : memref<28x84xf32, #tpu.memory_space<vmem>>, vector<20x14xf32>
    %c0_187 = arith.constant 0 : index
    %c28_188 = arith.constant 28 : index
    %112 = vector.load %arg21[%c0_187, %c28_188] : memref<20x420xf32, #tpu.memory_space<vmem>>, vector<20x14xf32>
    tpu.vector_store %arg21[%c0_187, %c28_188], %111 {strides = array<i32>} : memref<20x420xf32, #tpu.memory_space<vmem>>, vector<20x14xf32>,
    %c6 = arith.constant 6 : index
    %c0_189 = arith.constant 0 : index
    %113 = vector.load %arg20[%c6, %c0_189] : memref<28x84xf32, #tpu.memory_space<vmem>>, vector<20x14xf32>
    %c0_190 = arith.constant 0 : index
    %c42 = arith.constant 42 : index
    %114 = vector.load %arg21[%c0_190, %c42] : memref<20x420xf32, #tpu.memory_space<vmem>>, vector<20x14xf32>
    tpu.vector_store %arg21[%c0_190, %c42], %113 {strides = array<i32>} : memref<20x420xf32, #tpu.memory_space<vmem>>, vector<20x14xf32>,
    %c8 = arith.constant 8 : index
    %c0_191 = arith.constant 0 : index
    %115 = vector.load %arg20[%c8, %c0_191] : memref<28x84xf32, #tpu.memory_space<vmem>>, vector<20x14xf32>
    %c0_192 = arith.constant 0 : index
    %c56 = arith.constant 56 : index
    %116 = vector.load %arg21[%c0_192, %c56] : memref<20x420xf32, #tpu.memory_space<vmem>>, vector<20x14xf32>
    tpu.vector_store %arg21[%c0_192, %c56], %115 {strides = array<i32>} : memref<20x420xf32, #tpu.memory_space<vmem>>, vector<20x14xf32>,
    %c0_193 = arith.constant 0 : index
    %c14_194 = arith.constant 14 : index
    %117 = vector.load %arg20[%c0_193, %c14_194] : memref<28x84xf32, #tpu.memory_space<vmem>>, vector<20x14xf32>
    %c0_195 = arith.constant 0 : index
    %c70 = arith.constant 70 : index
    %118 = vector.load %arg21[%c0_195, %c70] : memref<20x420xf32, #tpu.memory_space<vmem>>, vector<20x14xf32>
    tpu.vector_store %arg21[%c0_195, %c70], %117 {strides = array<i32>} : memref<20x420xf32, #tpu.memory_space<vmem>>, vector<20x14xf32>,
    %c2_196 = arith.constant 2 : index
    %c14_197 = arith.constant 14 : index
    %119 = vector.load %arg20[%c2_196, %c14_197] : memref<28x84xf32, #tpu.memory_space<vmem>>, vector<20x14xf32>
    %c0_198 = arith.constant 0 : index
    %c84 = arith.constant 84 : index
    %120 = vector.load %arg21[%c0_198, %c84] : memref<20x420xf32, #tpu.memory_space<vmem>>, vector<20x14xf32>
    tpu.vector_store %arg21[%c0_198, %c84], %119 {strides = array<i32>} : memref<20x420xf32, #tpu.memory_space<vmem>>, vector<20x14xf32>,
    %c4_199 = arith.constant 4 : index
    %c14_200 = arith.constant 14 : index
    %121 = vector.load %arg20[%c4_199, %c14_200] : memref<28x84xf32, #tpu.memory_space<vmem>>, vector<20x14xf32>
    %c0_201 = arith.constant 0 : index
    %c98 = arith.constant 98 : index
    %122 = vector.load %arg21[%c0_201, %c98] : memref<20x420xf32, #tpu.memory_space<vmem>>, vector<20x14xf32>
    tpu.vector_store %arg21[%c0_201, %c98], %121 {strides = array<i32>} : memref<20x420xf32, #tpu.memory_space<vmem>>, vector<20x14xf32>,
    %c6_202 = arith.constant 6 : index
    %c14_203 = arith.constant 14 : index
    %123 = vector.load %arg20[%c6_202, %c14_203] : memref<28x84xf32, #tpu.memory_space<vmem>>, vector<20x14xf32>
    %c0_204 = arith.constant 0 : index
    %c112 = arith.constant 112 : index
    %124 = vector.load %arg21[%c0_204, %c112] : memref<20x420xf32, #tpu.memory_space<vmem>>, vector<20x14xf32>
    tpu.vector_store %arg21[%c0_204, %c112], %123 {strides = array<i32>} : memref<20x420xf32, #tpu.memory_space<vmem>>, vector<20x14xf32>,
    %c8_205 = arith.constant 8 : index
    %c14_206 = arith.constant 14 : index
    %125 = vector.load %arg20[%c8_205, %c14_206] : memref<28x84xf32, #tpu.memory_space<vmem>>, vector<20x14xf32>
    %c0_207 = arith.constant 0 : index
    %c126 = arith.constant 126 : index
    %126 = vector.load %arg21[%c0_207, %c126] : memref<20x420xf32, #tpu.memory_space<vmem>>, vector<20x14xf32>
    tpu.vector_store %arg21[%c0_207, %c126], %125 {strides = array<i32>} : memref<20x420xf32, #tpu.memory_space<vmem>>, vector<20x14xf32>,
    %c0_208 = arith.constant 0 : index
    %c28_209 = arith.constant 28 : index
    %127 = vector.load %arg20[%c0_208, %c28_209] : memref<28x84xf32, #tpu.memory_space<vmem>>, vector<20x14xf32>
    %c0_210 = arith.constant 0 : index
    %c140 = arith.constant 140 : index
    %128 = vector.load %arg21[%c0_210, %c140] : memref<20x420xf32, #tpu.memory_space<vmem>>, vector<20x14xf32>
    tpu.vector_store %arg21[%c0_210, %c140], %127 {strides = array<i32>} : memref<20x420xf32, #tpu.memory_space<vmem>>, vector<20x14xf32>,
    %c2_211 = arith.constant 2 : index
    %c28_212 = arith.constant 28 : index
    %129 = vector.load %arg20[%c2_211, %c28_212] : memref<28x84xf32, #tpu.memory_space<vmem>>, vector<20x14xf32>
    %c0_213 = arith.constant 0 : index
    %c154 = arith.constant 154 : index
    %130 = vector.load %arg21[%c0_213, %c154] : memref<20x420xf32, #tpu.memory_space<vmem>>, vector<20x14xf32>
    tpu.vector_store %arg21[%c0_213, %c154], %129 {strides = array<i32>} : memref<20x420xf32, #tpu.memory_space<vmem>>, vector<20x14xf32>,
    %c4_214 = arith.constant 4 : index
    %c28_215 = arith.constant 28 : index
    %131 = vector.load %arg20[%c4_214, %c28_215] : memref<28x84xf32, #tpu.memory_space<vmem>>, vector<20x14xf32>
    %c0_216 = arith.constant 0 : index
    %c168 = arith.constant 168 : index
    %132 = vector.load %arg21[%c0_216, %c168] : memref<20x420xf32, #tpu.memory_space<vmem>>, vector<20x14xf32>
    tpu.vector_store %arg21[%c0_216, %c168], %131 {strides = array<i32>} : memref<20x420xf32, #tpu.memory_space<vmem>>, vector<20x14xf32>,
    %c6_217 = arith.constant 6 : index
    %c28_218 = arith.constant 28 : index
    %133 = vector.load %arg20[%c6_217, %c28_218] : memref<28x84xf32, #tpu.memory_space<vmem>>, vector<20x14xf32>
    %c0_219 = arith.constant 0 : index
    %c182 = arith.constant 182 : index
    %134 = vector.load %arg21[%c0_219, %c182] : memref<20x420xf32, #tpu.memory_space<vmem>>, vector<20x14xf32>
    tpu.vector_store %arg21[%c0_219, %c182], %133 {strides = array<i32>} : memref<20x420xf32, #tpu.memory_space<vmem>>, vector<20x14xf32>,
    %c8_220 = arith.constant 8 : index
    %c28_221 = arith.constant 28 : index
    %135 = vector.load %arg20[%c8_220, %c28_221] : memref<28x84xf32, #tpu.memory_space<vmem>>, vector<20x14xf32>
    %c0_222 = arith.constant 0 : index
    %c196 = arith.constant 196 : index
    %136 = vector.load %arg21[%c0_222, %c196] : memref<20x420xf32, #tpu.memory_space<vmem>>, vector<20x14xf32>
    tpu.vector_store %arg21[%c0_222, %c196], %135 {strides = array<i32>} : memref<20x420xf32, #tpu.memory_space<vmem>>, vector<20x14xf32>,
    %c0_223 = arith.constant 0 : index
    %c42_224 = arith.constant 42 : index
    %137 = vector.load %arg20[%c0_223, %c42_224] : memref<28x84xf32, #tpu.memory_space<vmem>>, vector<20x14xf32>
    %c0_225 = arith.constant 0 : index
    %c210 = arith.constant 210 : index
    %138 = vector.load %arg21[%c0_225, %c210] : memref<20x420xf32, #tpu.memory_space<vmem>>, vector<20x14xf32>
    tpu.vector_store %arg21[%c0_225, %c210], %137 {strides = array<i32>} : memref<20x420xf32, #tpu.memory_space<vmem>>, vector<20x14xf32>,
    %c2_226 = arith.constant 2 : index
    %c42_227 = arith.constant 42 : index
    %139 = vector.load %arg20[%c2_226, %c42_227] : memref<28x84xf32, #tpu.memory_space<vmem>>, vector<20x14xf32>
    %c0_228 = arith.constant 0 : index
    %c224_229 = arith.constant 224 : index
    %140 = vector.load %arg21[%c0_228, %c224_229] : memref<20x420xf32, #tpu.memory_space<vmem>>, vector<20x14xf32>
    tpu.vector_store %arg21[%c0_228, %c224_229], %139 {strides = array<i32>} : memref<20x420xf32, #tpu.memory_space<vmem>>, vector<20x14xf32>,
    %c4_230 = arith.constant 4 : index
    %c42_231 = arith.constant 42 : index
    %141 = vector.load %arg20[%c4_230, %c42_231] : memref<28x84xf32, #tpu.memory_space<vmem>>, vector<20x14xf32>
    %c0_232 = arith.constant 0 : index
    %c238 = arith.constant 238 : index
    %142 = vector.load %arg21[%c0_232, %c238] : memref<20x420xf32, #tpu.memory_space<vmem>>, vector<20x14xf32>
    tpu.vector_store %arg21[%c0_232, %c238], %141 {strides = array<i32>} : memref<20x420xf32, #tpu.memory_space<vmem>>, vector<20x14xf32>,
    %c6_233 = arith.constant 6 : index
    %c42_234 = arith.constant 42 : index
    %143 = vector.load %arg20[%c6_233, %c42_234] : memref<28x84xf32, #tpu.memory_space<vmem>>, vector<20x14xf32>
    %c0_235 = arith.constant 0 : index
    %c252 = arith.constant 252 : index
    %144 = vector.load %arg21[%c0_235, %c252] : memref<20x420xf32, #tpu.memory_space<vmem>>, vector<20x14xf32>
    tpu.vector_store %arg21[%c0_235, %c252], %143 {strides = array<i32>} : memref<20x420xf32, #tpu.memory_space<vmem>>, vector<20x14xf32>,
    %c8_236 = arith.constant 8 : index
    %c42_237 = arith.constant 42 : index
    %145 = vector.load %arg20[%c8_236, %c42_237] : memref<28x84xf32, #tpu.memory_space<vmem>>, vector<20x14xf32>
    %c0_238 = arith.constant 0 : index
    %c266 = arith.constant 266 : index
    %146 = vector.load %arg21[%c0_238, %c266] : memref<20x420xf32, #tpu.memory_space<vmem>>, vector<20x14xf32>
    tpu.vector_store %arg21[%c0_238, %c266], %145 {strides = array<i32>} : memref<20x420xf32, #tpu.memory_space<vmem>>, vector<20x14xf32>,
    %c0_239 = arith.constant 0 : index
    %c56_240 = arith.constant 56 : index
    %147 = vector.load %arg20[%c0_239, %c56_240] : memref<28x84xf32, #tpu.memory_space<vmem>>, vector<20x14xf32>
    %c0_241 = arith.constant 0 : index
    %c280 = arith.constant 280 : index
    %148 = vector.load %arg21[%c0_241, %c280] : memref<20x420xf32, #tpu.memory_space<vmem>>, vector<20x14xf32>
    tpu.vector_store %arg21[%c0_241, %c280], %147 {strides = array<i32>} : memref<20x420xf32, #tpu.memory_space<vmem>>, vector<20x14xf32>,
    %c2_242 = arith.constant 2 : index
    %c56_243 = arith.constant 56 : index
    %149 = vector.load %arg20[%c2_242, %c56_243] : memref<28x84xf32, #tpu.memory_space<vmem>>, vector<20x14xf32>
    %c0_244 = arith.constant 0 : index
    %c294 = arith.constant 294 : index
    %150 = vector.load %arg21[%c0_244, %c294] : memref<20x420xf32, #tpu.memory_space<vmem>>, vector<20x14xf32>
    tpu.vector_store %arg21[%c0_244, %c294], %149 {strides = array<i32>} : memref<20x420xf32, #tpu.memory_space<vmem>>, vector<20x14xf32>,
    %c4_245 = arith.constant 4 : index
    %c56_246 = arith.constant 56 : index
    %151 = vector.load %arg20[%c4_245, %c56_246] : memref<28x84xf32, #tpu.memory_space<vmem>>, vector<20x14xf32>
    %c0_247 = arith.constant 0 : index
    %c308 = arith.constant 308 : index
    %152 = vector.load %arg21[%c0_247, %c308] : memref<20x420xf32, #tpu.memory_space<vmem>>, vector<20x14xf32>
    tpu.vector_store %arg21[%c0_247, %c308], %151 {strides = array<i32>} : memref<20x420xf32, #tpu.memory_space<vmem>>, vector<20x14xf32>,
    %c6_248 = arith.constant 6 : index
    %c56_249 = arith.constant 56 : index
    %153 = vector.load %arg20[%c6_248, %c56_249] : memref<28x84xf32, #tpu.memory_space<vmem>>, vector<20x14xf32>
    %c0_250 = arith.constant 0 : index
    %c322 = arith.constant 322 : index
    %154 = vector.load %arg21[%c0_250, %c322] : memref<20x420xf32, #tpu.memory_space<vmem>>, vector<20x14xf32>
    tpu.vector_store %arg21[%c0_250, %c322], %153 {strides = array<i32>} : memref<20x420xf32, #tpu.memory_space<vmem>>, vector<20x14xf32>,
    %c8_251 = arith.constant 8 : index
    %c56_252 = arith.constant 56 : index
    %155 = vector.load %arg20[%c8_251, %c56_252] : memref<28x84xf32, #tpu.memory_space<vmem>>, vector<20x14xf32>
    %c0_253 = arith.constant 0 : index
    %c336 = arith.constant 336 : index
    %156 = vector.load %arg21[%c0_253, %c336] : memref<20x420xf32, #tpu.memory_space<vmem>>, vector<20x14xf32>
    tpu.vector_store %arg21[%c0_253, %c336], %155 {strides = array<i32>} : memref<20x420xf32, #tpu.memory_space<vmem>>, vector<20x14xf32>,
    %c0_254 = arith.constant 0 : index
    %c70_255 = arith.constant 70 : index
    %157 = vector.load %arg20[%c0_254, %c70_255] : memref<28x84xf32, #tpu.memory_space<vmem>>, vector<20x14xf32>
    %c0_256 = arith.constant 0 : index
    %c350 = arith.constant 350 : index
    %158 = vector.load %arg21[%c0_256, %c350] : memref<20x420xf32, #tpu.memory_space<vmem>>, vector<20x14xf32>
    tpu.vector_store %arg21[%c0_256, %c350], %157 {strides = array<i32>} : memref<20x420xf32, #tpu.memory_space<vmem>>, vector<20x14xf32>,
    %c2_257 = arith.constant 2 : index
    %c70_258 = arith.constant 70 : index
    %159 = vector.load %arg20[%c2_257, %c70_258] : memref<28x84xf32, #tpu.memory_space<vmem>>, vector<20x14xf32>
    %c0_259 = arith.constant 0 : index
    %c364 = arith.constant 364 : index
    %160 = vector.load %arg21[%c0_259, %c364] : memref<20x420xf32, #tpu.memory_space<vmem>>, vector<20x14xf32>
    tpu.vector_store %arg21[%c0_259, %c364], %159 {strides = array<i32>} : memref<20x420xf32, #tpu.memory_space<vmem>>, vector<20x14xf32>,
    %c4_260 = arith.constant 4 : index
    %c70_261 = arith.constant 70 : index
    %161 = vector.load %arg20[%c4_260, %c70_261] : memref<28x84xf32, #tpu.memory_space<vmem>>, vector<20x14xf32>
    %c0_262 = arith.constant 0 : index
    %c378 = arith.constant 378 : index
    %162 = vector.load %arg21[%c0_262, %c378] : memref<20x420xf32, #tpu.memory_space<vmem>>, vector<20x14xf32>
    tpu.vector_store %arg21[%c0_262, %c378], %161 {strides = array<i32>} : memref<20x420xf32, #tpu.memory_space<vmem>>, vector<20x14xf32>,
    %c6_263 = arith.constant 6 : index
    %c70_264 = arith.constant 70 : index
    %163 = vector.load %arg20[%c6_263, %c70_264] : memref<28x84xf32, #tpu.memory_space<vmem>>, vector<20x14xf32>
    %c0_265 = arith.constant 0 : index
    %c392 = arith.constant 392 : index
    %164 = vector.load %arg21[%c0_265, %c392] : memref<20x420xf32, #tpu.memory_space<vmem>>, vector<20x14xf32>
    tpu.vector_store %arg21[%c0_265, %c392], %163 {strides = array<i32>} : memref<20x420xf32, #tpu.memory_space<vmem>>, vector<20x14xf32>,
    %c8_266 = arith.constant 8 : index
    %c70_267 = arith.constant 70 : index
    %165 = vector.load %arg20[%c8_266, %c70_267] : memref<28x84xf32, #tpu.memory_space<vmem>>, vector<20x14xf32>
    %c0_268 = arith.constant 0 : index
    %c406 = arith.constant 406 : index
    %166 = vector.load %arg21[%c0_268, %c406] : memref<20x420xf32, #tpu.memory_space<vmem>>, vector<20x14xf32>
    tpu.vector_store %arg21[%c0_268, %c406], %165 {strides = array<i32>} : memref<20x420xf32, #tpu.memory_space<vmem>>, vector<20x14xf32>,
    %c0_269 = arith.constant 0 : index
    %c0_270 = arith.constant 0 : index
    %167 = vector.load %arg21[%c0_269, %c0_270] : memref<20x420xf32, #tpu.memory_space<vmem>>, vector<20x420xf32>
    %c0_271 = arith.constant 0 : index
    %c0_272 = arith.constant 0 : index
    %168 = vector.load %arg7[%c0_271, %c0_272] : memref<420x80xf32, #tpu.memory_space<vmem>>, vector<420x80xf32>
    %cst_273 = arith.constant dense<0.000000e+00> : vector<20x80xf32>
    %169 = tpu.matmul %167, %168, %cst_273 {dimension_numbers = #tpu.dot_dimension_numbers<[1], [0], [0], [1], [0, 0, 1, 1], [], []>} : vector<20x420xf32>, vector<420x80xf32>, vector<20x80xf32> -> vector<20x80xf32>
    %c0_274 = arith.constant 0 : index
    %c0_275 = arith.constant 0 : index
    %170 = vector.load %arg8[%c0_274, %c0_275] : memref<420x80xf32, #tpu.memory_space<vmem>>, vector<420x80xf32>
    %cst_276 = arith.constant dense<0.000000e+00> : vector<20x80xf32>
    %171 = tpu.matmul %167, %170, %cst_276 {dimension_numbers = #tpu.dot_dimension_numbers<[1], [0], [0], [1], [0, 0, 1, 1], [], []>} : vector<20x420xf32>, vector<420x80xf32>, vector<20x80xf32> -> vector<20x80xf32>
    %172 = arith.maximumf %169, %171 : vector<20x80xf32>
    %c0_277 = arith.constant 0 : index
    %c0_278 = arith.constant 0 : index
    %173 = vector.load %arg9[%c0_277, %c0_278] : memref<10x20xf32, #tpu.memory_space<vmem>>, vector<10x20xf32>
    %cst_279 = arith.constant dense<0.000000e+00> : vector<10x80xf32>
    %174 = tpu.matmul %173, %172, %cst_279 {dimension_numbers = #tpu.dot_dimension_numbers<[1], [0], [0], [1], [0, 0, 1, 1], [], []>} : vector<10x20xf32>, vector<20x80xf32>, vector<10x80xf32> -> vector<10x80xf32>
    %c0_280 = arith.constant 0 : index
    %c0_281 = arith.constant 0 : index
    %175 = vector.load %arg10[%c0_280, %c0_281] : memref<10x20xf32, #tpu.memory_space<vmem>>, vector<10x20xf32>
    %cst_282 = arith.constant dense<0.000000e+00> : vector<10x80xf32>
    %176 = tpu.matmul %175, %172, %cst_282 {dimension_numbers = #tpu.dot_dimension_numbers<[1], [0], [0], [1], [0, 0, 1, 1], [], []>} : vector<10x20xf32>, vector<20x80xf32>, vector<10x80xf32> -> vector<10x80xf32>
    %177 = arith.maximumf %174, %176 : vector<10x80xf32>
    %c0_283 = arith.constant 0 : index
    %c0_284 = arith.constant 0 : index
    %178 = vector.load %arg11[%c0_283, %c0_284] : memref<1x80xf32, #tpu.memory_space<vmem>>, vector<1x80xf32>
    %179 = vector.broadcast %178 : vector<1x80xf32> to vector<10x80xf32>
    %180 = arith.addf %177, %179 : vector<10x80xf32>
    %cst_285 = arith.constant 0.000000e+00 : f32
    %181 = vector.broadcast %cst_285 : f32 to vector<10x80xf32>
    %182 = arith.maximumf %180, %181 : vector<10x80xf32>
    %183 = vector.extract_strided_slice %182 {offsets = [0, 0], sizes = [2, 80], strides = [1, 1]} : vector<10x80xf32> to vector<2x80xf32>
    %c0_286 = arith.constant 0 : index
    %c0_287 = arith.constant 0 : index
    %184 = vector.load %arg22[%c0_286, %c0_287] : memref<2x400xf32, #tpu.memory_space<vmem>>, vector<2x80xf32>
    tpu.vector_store %arg22[%c0_286, %c0_287], %183 {strides = array<i32>} : memref<2x400xf32, #tpu.memory_space<vmem>>, vector<2x80xf32>,
    %185 = vector.extract_strided_slice %182 {offsets = [2, 0], sizes = [2, 80], strides = [1, 1]} : vector<10x80xf32> to vector<2x80xf32>
    %c0_288 = arith.constant 0 : index
    %c80 = arith.constant 80 : index
    %186 = vector.load %arg22[%c0_288, %c80] : memref<2x400xf32, #tpu.memory_space<vmem>>, vector<2x80xf32>
    tpu.vector_store %arg22[%c0_288, %c80], %185 {strides = array<i32>} : memref<2x400xf32, #tpu.memory_space<vmem>>, vector<2x80xf32>,
    %187 = vector.extract_strided_slice %182 {offsets = [4, 0], sizes = [2, 80], strides = [1, 1]} : vector<10x80xf32> to vector<2x80xf32>
    %c0_289 = arith.constant 0 : index
    %c160_290 = arith.constant 160 : index
    %188 = vector.load %arg22[%c0_289, %c160_290] : memref<2x400xf32, #tpu.memory_space<vmem>>, vector<2x80xf32>
    tpu.vector_store %arg22[%c0_289, %c160_290], %187 {strides = array<i32>} : memref<2x400xf32, #tpu.memory_space<vmem>>, vector<2x80xf32>,
    %189 = vector.extract_strided_slice %182 {offsets = [6, 0], sizes = [2, 80], strides = [1, 1]} : vector<10x80xf32> to vector<2x80xf32>
    %c0_291 = arith.constant 0 : index
    %c240 = arith.constant 240 : index
    %190 = vector.load %arg22[%c0_291, %c240] : memref<2x400xf32, #tpu.memory_space<vmem>>, vector<2x80xf32>
    tpu.vector_store %arg22[%c0_291, %c240], %189 {strides = array<i32>} : memref<2x400xf32, #tpu.memory_space<vmem>>, vector<2x80xf32>,
    %191 = vector.extract_strided_slice %182 {offsets = [8, 0], sizes = [2, 80], strides = [1, 1]} : vector<10x80xf32> to vector<2x80xf32>
    %c0_292 = arith.constant 0 : index
    %c320_293 = arith.constant 320 : index
    %192 = vector.load %arg22[%c0_292, %c320_293] : memref<2x400xf32, #tpu.memory_space<vmem>>, vector<2x80xf32>
    tpu.vector_store %arg22[%c0_292, %c320_293], %191 {strides = array<i32>} : memref<2x400xf32, #tpu.memory_space<vmem>>, vector<2x80xf32>,
    %c0_294 = arith.constant 0 : index
    %c0_295 = arith.constant 0 : index
    %193 = vector.load %arg22[%c0_294, %c0_295] : memref<2x400xf32, #tpu.memory_space<vmem>>, vector<2x400xf32>
    %c0_296 = arith.constant 0 : index
    %c0_297 = arith.constant 0 : index
    %194 = vector.load %arg12[%c0_296, %c0_297] : memref<400x120xf32, #tpu.memory_space<vmem>>, vector<400x120xf32>
    %cst_298 = arith.constant dense<0.000000e+00> : vector<2x120xf32>
    %195 = tpu.matmul %193, %194, %cst_298 {dimension_numbers = #tpu.dot_dimension_numbers<[1], [0], [0], [1], [0, 0, 1, 1], [], []>} : vector<2x400xf32>, vector<400x120xf32>, vector<2x120xf32> -> vector<2x120xf32>
    %c0_299 = arith.constant 0 : index
    %c0_300 = arith.constant 0 : index
    %196 = vector.load %arg13[%c0_299, %c0_300] : memref<1x120xf32, #tpu.memory_space<vmem>>, vector<1x120xf32>
    %197 = vector.broadcast %196 : vector<1x120xf32> to vector<2x120xf32>
    %198 = arith.addf %195, %197 : vector<2x120xf32>
    %cst_301 = arith.constant 0.000000e+00 : f32
    %199 = vector.broadcast %cst_301 : f32 to vector<2x120xf32>
    %200 = arith.maximumf %198, %199 : vector<2x120xf32>
    %c0_302 = arith.constant 0 : index
    %c0_303 = arith.constant 0 : index
    %201 = vector.load %arg14[%c0_302, %c0_303] : memref<120x84xf32, #tpu.memory_space<vmem>>, vector<120x84xf32>
    %cst_304 = arith.constant dense<0.000000e+00> : vector<2x84xf32>
    %202 = tpu.matmul %200, %201, %cst_304 {dimension_numbers = #tpu.dot_dimension_numbers<[1], [0], [0], [1], [0, 0, 1, 1], [], []>} : vector<2x120xf32>, vector<120x84xf32>, vector<2x84xf32> -> vector<2x84xf32>
    %c0_305 = arith.constant 0 : index
    %c0_306 = arith.constant 0 : index
    %203 = vector.load %arg15[%c0_305, %c0_306] : memref<1x84xf32, #tpu.memory_space<vmem>>, vector<1x84xf32>
    %204 = vector.broadcast %203 : vector<1x84xf32> to vector<2x84xf32>
    %205 = arith.addf %202, %204 : vector<2x84xf32>
    %cst_307 = arith.constant 0.000000e+00 : f32
    %206 = vector.broadcast %cst_307 : f32 to vector<2x84xf32>
    %207 = arith.maximumf %205, %206 : vector<2x84xf32>
    %c0_308 = arith.constant 0 : index
    %c0_309 = arith.constant 0 : index
    %208 = vector.load %arg16[%c0_308, %c0_309] : memref<84x10xf32, #tpu.memory_space<vmem>>, vector<84x10xf32>
    %cst_310 = arith.constant dense<0.000000e+00> : vector<2x10xf32>
    %209 = tpu.matmul %207, %208, %cst_310 {dimension_numbers = #tpu.dot_dimension_numbers<[1], [0], [0], [1], [0, 0, 1, 1], [], []>} : vector<2x84xf32>, vector<84x10xf32>, vector<2x10xf32> -> vector<2x10xf32>
    %c0_311 = arith.constant 0 : index
    %c0_312 = arith.constant 0 : index
    %210 = vector.load %arg17[%c0_311, %c0_312] : memref<1x10xf32, #tpu.memory_space<vmem>>, vector<1x10xf32>
    %211 = vector.broadcast %210 : vector<1x10xf32> to vector<2x10xf32>
    %212 = arith.addf %209, %211 : vector<2x10xf32>
    %c0_313 = arith.constant 0 : index
    %c0_314 = arith.constant 0 : index
    %213 = vector.load %arg18[%c0_313, %c0_314] : memref<2x10xf32, #tpu.memory_space<vmem>>, vector<2x10xf32>
    tpu.vector_store %arg18[%c0_313, %c0_314], %212 {strides = array<i32>} : memref<2x10xf32, #tpu.memory_space<vmem>>, vector<2x10xf32>,
    return
  }
  func.func @transform_0(%arg0: i32) -> (i32, i32, i32, i32) {
    %c0_i32 = arith.constant 0 : i32
    %c0_i32_0 = arith.constant 0 : i32
    %c0_i32_1 = arith.constant 0 : i32
    %c0_i32_2 = arith.constant 0 : i32
    %c0_i32_3 = arith.constant 0 : i32
    return %c0_i32, %c0_i32_0, %c0_i32_1, %c0_i32_2 : i32, i32, i32, i32
  }
  func.func @transform_1(%arg0: i32) -> (i32, i32) {
    %c0_i32 = arith.constant 0 : i32
    %c0_i32_0 = arith.constant 0 : i32
    %c0_i32_1 = arith.constant 0 : i32
    return %c0_i32, %c0_i32_0 : i32, i32
  }
  func.func @transform_2(%arg0: i32) -> (i32, i32) {
    %c0_i32 = arith.constant 0 : i32
    %c0_i32_0 = arith.constant 0 : i32
    %c0_i32_1 = arith.constant 0 : i32
    return %c0_i32, %c0_i32_0 : i32, i32
  }
  func.func @transform_3(%arg0: i32) -> (i32, i32) {
    %c0_i32 = arith.constant 0 : i32
    %c0_i32_0 = arith.constant 0 : i32
    %c0_i32_1 = arith.constant 0 : i32
    return %c0_i32, %c0_i32_0 : i32, i32
  }
  func.func @transform_4(%arg0: i32) -> (i32, i32) {
    %c0_i32 = arith.constant 0 : i32
    %c0_i32_0 = arith.constant 0 : i32
    %c0_i32_1 = arith.constant 0 : i32
    return %c0_i32, %c0_i32_0 : i32, i32
  }
  func.func @transform_5(%arg0: i32) -> (i32, i32) {
    %c0_i32 = arith.constant 0 : i32
    %c0_i32_0 = arith.constant 0 : i32
    %c0_i32_1 = arith.constant 0 : i32
    return %c0_i32, %c0_i32_0 : i32, i32
  }
  func.func @transform_6(%arg0: i32) -> (i32, i32) {
    %c0_i32 = arith.constant 0 : i32
    %c0_i32_0 = arith.constant 0 : i32
    %c0_i32_1 = arith.constant 0 : i32
    return %c0_i32, %c0_i32_0 : i32, i32
  }
  func.func @transform_7(%arg0: i32) -> (i32, i32) {
    %c0_i32 = arith.constant 0 : i32
    %c0_i32_0 = arith.constant 0 : i32
    %c0_i32_1 = arith.constant 0 : i32
    return %c0_i32, %c0_i32_0 : i32, i32
  }
  func.func @transform_8(%arg0: i32) -> (i32, i32) {
    %c0_i32 = arith.constant 0 : i32
    %c0_i32_0 = arith.constant 0 : i32
    %c0_i32_1 = arith.constant 0 : i32
    return %c0_i32, %c0_i32_0 : i32, i32
  }
  func.func @transform_9(%arg0: i32) -> (i32, i32) {
    %c0_i32 = arith.constant 0 : i32
    %c0_i32_0 = arith.constant 0 : i32
    %c0_i32_1 = arith.constant 0 : i32
    return %c0_i32, %c0_i32_0 : i32, i32
  }
  func.func @transform_10(%arg0: i32) -> (i32, i32) {
    %c0_i32 = arith.constant 0 : i32
    %c0_i32_0 = arith.constant 0 : i32
    %c0_i32_1 = arith.constant 0 : i32
    return %c0_i32, %c0_i32_0 : i32, i32
  }
  func.func @transform_11(%arg0: i32) -> (i32, i32) {
    %c0_i32 = arith.constant 0 : i32
    %c0_i32_0 = arith.constant 0 : i32
    %c0_i32_1 = arith.constant 0 : i32
    return %c0_i32, %c0_i32_0 : i32, i32
  }
  func.func @transform_12(%arg0: i32) -> (i32, i32) {
    %c0_i32 = arith.constant 0 : i32
    %c0_i32_0 = arith.constant 0 : i32
    %c0_i32_1 = arith.constant 0 : i32
    return %c0_i32, %c0_i32_0 : i32, i32
  }
  func.func @transform_13(%arg0: i32) -> (i32, i32) {
    %c0_i32 = arith.constant 0 : i32
    %c0_i32_0 = arith.constant 0 : i32
    %c0_i32_1 = arith.constant 0 : i32
    return %c0_i32, %c0_i32_0 : i32, i32
  }
  func.func @transform_14(%arg0: i32) -> (i32, i32) {
    %c0_i32 = arith.constant 0 : i32
    %c0_i32_0 = arith.constant 0 : i32
    %c0_i32_1 = arith.constant 0 : i32
    return %c0_i32, %c0_i32_0 : i32, i32
  }
  func.func @transform_15(%arg0: i32) -> (i32, i32) {
    %c0_i32 = arith.constant 0 : i32
    %c0_i32_0 = arith.constant 0 : i32
    %c0_i32_1 = arith.constant 0 : i32
    return %c0_i32, %c0_i32_0 : i32, i32
  }
  func.func @transform_16(%arg0: i32) -> (i32, i32) {
    %c0_i32 = arith.constant 0 : i32
    %c0_i32_0 = arith.constant 0 : i32
    %c0_i32_1 = arith.constant 0 : i32
    return %c0_i32, %c0_i32_0 : i32, i32
  }
  func.func @transform_17(%arg0: i32) -> (i32, i32) {
    %c0_i32 = arith.constant 0 : i32
    %c0_i32_0 = arith.constant 0 : i32
    %c0_i32_1 = arith.constant 0 : i32
    return %c0_i32, %c0_i32_0 : i32, i32
  }
}

</mosaic_0001>

<llo_original>
// kernel: lenet_forward.1
$region0: #{lenet_forward.1}
  #allocation0 [shape = 'u32[]', space=smem, size = 0x4, offset = 0x4, fixed_abs, tag = 'smem constant byte address 0x4 - core index']
  #allocation1 [shape = 'u32[144,128]{1,0:T(1,128)}', space=vmem, size = 0x12000, scoped, tag = 'internal scratch']
  #allocation2 [shape = 'f32[56,480]{1,0:T(8,128)}', space=vmem, size = 0x1c000, scoped, tag = 'scratch operand']
  #allocation3 [shape = 'f32[28,84]{1,0:T(8,128)}', space=vmem, size = 0x4000, scoped, tag = 'scratch operand']
  #allocation4 [shape = 'f32[20,420]{1,0:T(8,128)}', space=vmem, size = 0xc000, scoped, tag = 'scratch operand']
  #allocation5 [shape = 'f32[2,400]{1,0:T(2,128)}', space=vmem, size = 0x1000, scoped, tag = 'scratch operand']
  %s0 = inlined_call_operand.vmem [shape: f32[2,3,32,32], index: 0, kind: input, shape index: {}]
  %s1 = inlined_call_operand.vmem [shape: f32[480,84], index: 1, kind: input, shape index: {}]
  %s2 = inlined_call_operand.vmem [shape: f32[480,84], index: 2, kind: input, shape index: {}]
  %s3 = inlined_call_operand.vmem [shape: f32[28,56], index: 3, kind: input, shape index: {}]
  %s4 = inlined_call_operand.vmem [shape: f32[28,56], index: 4, kind: input, shape index: {}]
  %s5 = inlined_call_operand.vmem [shape: f32[1,84], index: 5, kind: input, shape index: {}]
  %s6 = inlined_call_operand.vmem [shape: f32[420,80], index: 6, kind: input, shape index: {}]
  %s7 = inlined_call_operand.vmem [shape: f32[420,80], index: 7, kind: input, shape index: {}]
  %s8 = inlined_call_operand.vmem [shape: f32[10,20], index: 8, kind: input, shape index: {}]
  %s9 = inlined_call_operand.vmem [shape: f32[10,20], index: 9, kind: input, shape index: {}]
  %s10 = inlined_call_operand.vmem [shape: f32[1,80], index: 10, kind: input, shape index: {}]
  %s11 = inlined_call_operand.vmem [shape: f32[400,120], index: 11, kind: input, shape index: {}]
  %s12 = inlined_call_operand.vmem [shape: f32[1,120], index: 12, kind: input, shape index: {}]
  %s13 = inlined_call_operand.vmem [shape: f32[120,84], index: 13, kind: input, shape index: {}]
  %s14 = inlined_call_operand.vmem [shape: f32[1,84], index: 14, kind: input, shape index: {}]
  %s15 = inlined_call_operand.vmem [shape: f32[84,10], index: 15, kind: input, shape index: {}]
  %s16 = inlined_call_operand.vmem [shape: f32[1,10], index: 16, kind: input, shape index: {}]
  %s17 = inlined_call_operand.hbm [shape: f32[2,10], index: 17, kind: output, shape index: {}]
  %s18 = sld [smem:[#allocation0]]
  $region78: #{lenet_forward.1} parent=0
    _
  %s20 = ssub.s32 1, %s18
  %s21 = scalar_select 0, %s20, %s18
  $region1: #{lenet_forward.1} parent=0
    #allocation6 [shape = 'u8[1024]{0}', space=vmem, size = 0x400, scoped, tag = 'output window, operand 0, single buffered']
    #allocation7 [shape = 's32[1]{0}', space=sflag, size = 0x4, scoped, tag = 'scoped memory for lenet_forward.1']
    %22 = vsyncpa [#allocation7], 0
    // Predicated region
    $region2: #{lenet_forward.1} parent=1 // pred_check
      _
    $region3: #{lenet_forward.1} parent=1 // pred_check_branch
      %24 = sbr.rel (0) target = $region5
    $region4: #{lenet_forward.1} parent=1 // pred_region
      _
    $region5: #{lenet_forward.1} parent=1 // pred_fallthru
      _
    // Predicated region
    $region6: #{lenet_forward.1} parent=1 // pred_check
      _
    $region7: #{lenet_forward.1} parent=1 // pred_check_branch
      %26 = sbr.rel (0) target = $region9
    $region8: #{lenet_forward.1} parent=1 // pred_region
      _
    $region9: #{lenet_forward.1} parent=1 // pred_fallthru
      _
    // Predicated region
    $region10: #{lenet_forward.1} parent=1 // pred_check
      _
    $region11: #{lenet_forward.1} parent=1 // pred_check_branch
      %28 = sbr.rel (0) target = $region13
    $region12: #{lenet_forward.1} parent=1 // pred_region
      _
    $region13: #{lenet_forward.1} parent=1 // pred_fallthru
      _
    // Predicated region
    $region14: #{lenet_forward.1} parent=1 // pred_check
      _
    $region15: #{lenet_forward.1} parent=1 // pred_check_branch
      %30 = sbr.rel (0) target = $region17
    $region16: #{lenet_forward.1} parent=1 // pred_region
      _
    $region17: #{lenet_forward.1} parent=1 // pred_fallthru
      _
    // Predicated region
    $region18: #{lenet_forward.1} parent=1 // pred_check
      _
    $region19: #{lenet_forward.1} parent=1 // pred_check_branch
      %32 = sbr.rel (0) target = $region21
    $region20: #{lenet_forward.1} parent=1 // pred_region
      _
    $region21: #{lenet_forward.1} parent=1 // pred_fallthru
      _
    // Predicated region
    $region22: #{lenet_forward.1} parent=1 // pred_check
      _
    $region23: #{lenet_forward.1} parent=1 // pred_check_branch
      %34 = sbr.rel (0) target = $region25
    $region24: #{lenet_forward.1} parent=1 // pred_region
      _
    $region25: #{lenet_forward.1} parent=1 // pred_fallthru
      _
    // Predicated region
    $region26: #{lenet_forward.1} parent=1 // pred_check
      _
    $region27: #{lenet_forward.1} parent=1 // pred_check_branch
      %36 = sbr.rel (0) target = $region29
    $region28: #{lenet_forward.1} parent=1 // pred_region
      _
    $region29: #{lenet_forward.1} parent=1 // pred_fallthru
      _
    // Predicated region
    $region30: #{lenet_forward.1} parent=1 // pred_check
      _
    $region31: #{lenet_forward.1} parent=1 // pred_check_branch
      %38 = sbr.rel (0) target = $region33
    $region32: #{lenet_forward.1} parent=1 // pred_region
      _
    $region33: #{lenet_forward.1} parent=1 // pred_fallthru
      _
    // Predicated region
    $region34: #{lenet_forward.1} parent=1 // pred_check
      _
    $region35: #{lenet_forward.1} parent=1 // pred_check_branch
      %40 = sbr.rel (0) target = $region37
    $region36: #{lenet_forward.1} parent=1 // pred_region
      _
    $region37: #{lenet_forward.1} parent=1 // pred_fallthru
      _
    // Predicated region
    $region38: #{lenet_forward.1} parent=1 // pred_check
      _
    $region39: #{lenet_forward.1} parent=1 // pred_check_branch
      %42 = sbr.rel (0) target = $region41
    $region40: #{lenet_forward.1} parent=1 // pred_region
      _
    $region41: #{lenet_forward.1} parent=1 // pred_fallthru
      _
    // Predicated region
    $region42: #{lenet_forward.1} parent=1 // pred_check
      _
    $region43: #{lenet_forward.1} parent=1 // pred_check_branch
      %44 = sbr.rel (0) target = $region45
    $region44: #{lenet_forward.1} parent=1 // pred_region
      _
    $region45: #{lenet_forward.1} parent=1 // pred_fallthru
      _
    // Predicated region
    $region46: #{lenet_forward.1} parent=1 // pred_check
      _
    $region47: #{lenet_forward.1} parent=1 // pred_check_branch
      %46 = sbr.rel (0) target = $region49
    $region48: #{lenet_forward.1} parent=1 // pred_region
      _
    $region49: #{lenet_forward.1} parent=1 // pred_fallthru
      _
    // Predicated region
    $region50: #{lenet_forward.1} parent=1 // pred_check
      _
    $region51: #{lenet_forward.1} parent=1 // pred_check_branch
      %48 = sbr.rel (0) target = $region53
    $region52: #{lenet_forward.1} parent=1 // pred_region
      _
    $region53: #{lenet_forward.1} parent=1 // pred_fallthru
      _
    // Predicated region
    $region54: #{lenet_forward.1} parent=1 // pred_check
      _
    $region55: #{lenet_forward.1} parent=1 // pred_check_branch
      %50 = sbr.rel (0) target = $region57
    $region56: #{lenet_forward.1} parent=1 // pred_region
      _
    $region57: #{lenet_forward.1} parent=1 // pred_fallthru
      _
    // Predicated region
    $region58: #{lenet_forward.1} parent=1 // pred_check
      _
    $region59: #{lenet_forward.1} parent=1 // pred_check_branch
      %52 = sbr.rel (0) target = $region61
    $region60: #{lenet_forward.1} parent=1 // pred_region
      _
    $region61: #{lenet_forward.1} parent=1 // pred_fallthru
      _
    // Predicated region
    $region62: #{lenet_forward.1} parent=1 // pred_check
      _
    $region63: #{lenet_forward.1} parent=1 // pred_check_branch
      %54 = sbr.rel (0) target = $region65
    $region64: #{lenet_forward.1} parent=1 // pred_region
      _
    $region65: #{lenet_forward.1} parent=1 // pred_fallthru
      _
    // Predicated region
    $region66: #{lenet_forward.1} parent=1 // pred_check
      _
    $region67: #{lenet_forward.1} parent=1 // pred_check_branch
      %56 = sbr.rel (0) target = $region69
    $region68: #{lenet_forward.1} parent=1 // pred_region
      _
    $region69: #{lenet_forward.1} parent=1 // pred_fallthru
      _
    %v57 = vld [vmem:[%s0] sm:$0xff]
    %v58 = vld [vmem:[%s0 + $0x8] sm:$0xff]
    %v59 = vld [vmem:[%s0 + $0x10] sm:$0xff]
    %v60 = vld [vmem:[%s0 + $0x18] sm:$0xf]
    %vm61 = vcmask 261120
    %62 = vst.msk [vmem:[#allocation2] sm:$0xff] %vm61, %v57
    %63 = vst.msk [vmem:[#allocation2 + $0x20] sm:$0xff] %vm61, %v58
    %64 = vst.msk [vmem:[#allocation2 + $0x40] sm:$0xff] %vm61, %v59
    %vm65 = vcmask 257024
    %66 = vst.msk [vmem:[#allocation2 + $0x60] sm:$0xf] %vm65, %v60
    %v67 = vld [vmem:[%s0 + $0x1] sm:$0xff]
    %v68 = vld [vmem:[%s0 + $0x9] sm:$0xff]
    %v69 = vld [vmem:[%s0 + $0x11] sm:$0xff]
    %v70 = vld [vmem:[%s0 + $0x19] sm:$0xf]
    %75 = vrot.lane.b32.xlu0 %v67, 32
    %v76 = vpop.permute.xlu0 %75
    %77 = vrot.lane.b32.xlu0 %v68, 32
    %v78 = vpop.permute.xlu0 %77
    %79 = vrot.lane.b32.xlu0 %v69, 32
    %v80 = vpop.permute.xlu0 %79
    %81 = vrot.lane.b32.xlu0 %v70, 32
    %v82 = vpop.permute.xlu0 %81
    %vm87 = vcmask 523520
    %88 = vst.msk [vmem:[#allocation2] sm:$0xff] %vm87, %v76
    %89 = vst.msk [vmem:[#allocation2 + $0x20] sm:$0xff] %vm87, %v78
    %90 = vst.msk [vmem:[#allocation2 + $0x40] sm:$0xff] %vm87, %v80
    %vm91 = vcmask 519424
    %92 = vst.msk [vmem:[#allocation2 + $0x60] sm:$0xf] %vm91, %v82
    %v93 = vld [vmem:[%s0 + $0x2] sm:$0xff]
    %v94 = vld [vmem:[%s0 + $0xa] sm:$0xff]
    %v95 = vld [vmem:[%s0 + $0x12] sm:$0xff]
    %v96 = vld [vmem:[%s0 + $0x1a] sm:$0xf]
    %101 = vrot.lane.b32.xlu0 %v93, 64
    %v102 = vpop.permute.xlu0 %101
    %103 = vrot.lane.b32.xlu0 %v94, 64
    %v104 = vpop.permute.xlu0 %103
    %105 = vrot.lane.b32.xlu0 %v95, 64
    %v106 = vpop.permute.xlu0 %105
    %107 = vrot.lane.b32.xlu0 %v96, 64
    %v108 = vpop.permute.xlu0 %107
    %vm113 = vcmask 785920
    %114 = vst.msk [vmem:[#allocation2] sm:$0xff] %vm113, %v102
    %115 = vst.msk [vmem:[#allocation2 + $0x20] sm:$0xff] %vm113, %v104
    %116 = vst.msk [vmem:[#allocation2 + $0x40] sm:$0xff] %vm113, %v106
    %vm117 = vcmask 781824
    %118 = vst.msk [vmem:[#allocation2 + $0x60] sm:$0xf] %vm117, %v108
    %v119 = vld [vmem:[%s0 + $0x3] sm:$0xff]
    %v120 = vld [vmem:[%s0 + $0xb] sm:$0xff]
    %v121 = vld [vmem:[%s0 + $0x13] sm:$0xff]
    %v122 = vld [vmem:[%s0 + $0x1b] sm:$0xf]
    %127 = vrot.lane.b32.xlu0 %v119, 96
    %v128 = vpop.permute.xlu0 %127
    %129 = vrot.lane.b32.xlu0 %v120, 96
    %v130 = vpop.permute.xlu0 %129
    %131 = vrot.lane.b32.xlu0 %v121, 96
    %v132 = vpop.permute.xlu0 %131
    %133 = vrot.lane.b32.xlu0 %v122, 96
    %v134 = vpop.permute.xlu0 %133
    %vm139 = vcmask 1048320
    %140 = vst.msk [vmem:[#allocation2] sm:$0xff] %vm139, %v128
    %141 = vst.msk [vmem:[#allocation2 + $0x20] sm:$0xff] %vm139, %v130
    %142 = vst.msk [vmem:[#allocation2 + $0x40] sm:$0xff] %vm139, %v132
    %vm143 = vcmask 1044224
    %144 = vst.msk [vmem:[#allocation2 + $0x60] sm:$0xf] %vm143, %v134
    %v145 = vld [vmem:[%s0 + $0x4] sm:$0xff]
    %v146 = vld [vmem:[%s0 + $0xc] sm:$0xff]
    %v147 = vld [vmem:[%s0 + $0x14] sm:$0xff]
    %v148 = vld [vmem:[%s0 + $0x1c] sm:$0xf]
    %149 = vst.msk [vmem:[#allocation2 + $0x8] sm:$0xff] %vm61, %v145
    %150 = vst.msk [vmem:[#allocation2 + $0x28] sm:$0xff] %vm61, %v146
    %151 = vst.msk [vmem:[#allocation2 + $0x48] sm:$0xff] %vm61, %v147
    %152 = vst.msk [vmem:[#allocation2 + $0x68] sm:$0xf] %vm65, %v148
    %s153 = scalar_lea.vmem %s0, 32
    %v154 = vld [vmem:[%s153] sm:$0xff]
    %v155 = vld [vmem:[%s153 + $0x8] sm:$0xff]
    %v156 = vld [vmem:[%s153 + $0x10] sm:$0xff]
    %v157 = vld [vmem:[%s153 + $0x18] sm:$0xf]
    %162 = vrot.lane.b32.xlu0 %v154, 32
    %v163 = vpop.permute.xlu0 %162
    %164 = vrot.lane.b32.xlu0 %v155, 32
    %v165 = vpop.permute.xlu0 %164
    %166 = vrot.lane.b32.xlu0 %v156, 32
    %v167 = vpop.permute.xlu0 %166
    %168 = vrot.lane.b32.xlu0 %v157, 32
    %v169 = vpop.permute.xlu0 %168
    %174 = vst.msk [vmem:[#allocation2 + $0x8] sm:$0xff] %vm87, %v163
    %175 = vst.msk [vmem:[#allocation2 + $0x28] sm:$0xff] %vm87, %v165
    %176 = vst.msk [vmem:[#allocation2 + $0x48] sm:$0xff] %vm87, %v167
    %177 = vst.msk [vmem:[#allocation2 + $0x68] sm:$0xf] %vm91, %v169
    %v178 = vld [vmem:[%s153 + $0x1] sm:$0xff]
    %v179 = vld [vmem:[%s153 + $0x9] sm:$0xff]
    %v180 = vld [vmem:[%s153 + $0x11] sm:$0xff]
    %v181 = vld [vmem:[%s153 + $0x19] sm:$0xf]
    %186 = vrot.lane.b32.xlu0 %v178, 64
    %v187 = vpop.permute.xlu0 %186
    %188 = vrot.lane.b32.xlu0 %v179, 64
    %v189 = vpop.permute.xlu0 %188
    %190 = vrot.lane.b32.xlu0 %v180, 64
    %v191 = vpop.permute.xlu0 %190
    %192 = vrot.lane.b32.xlu0 %v181, 64
    %v193 = vpop.permute.xlu0 %192
    %198 = vst.msk [vmem:[#allocation2 + $0x8] sm:$0xff] %vm113, %v187
    %199 = vst.msk [vmem:[#allocation2 + $0x28] sm:$0xff] %vm113, %v189
    %200 = vst.msk [vmem:[#allocation2 + $0x48] sm:$0xff] %vm113, %v191
    %201 = vst.msk [vmem:[#allocation2 + $0x68] sm:$0xf] %vm117, %v193
    %v202 = vld [vmem:[%s153 + $0x2] sm:$0xff]
    %v203 = vld [vmem:[%s153 + $0xa] sm:$0xff]
    %v204 = vld [vmem:[%s153 + $0x12] sm:$0xff]
    %v205 = vld [vmem:[%s153 + $0x1a] sm:$0xf]
    %210 = vrot.lane.b32.xlu0 %v202, 96
    %v211 = vpop.permute.xlu0 %210
    %212 = vrot.lane.b32.xlu0 %v203, 96
    %v213 = vpop.permute.xlu0 %212
    %214 = vrot.lane.b32.xlu0 %v204, 96
    %v215 = vpop.permute.xlu0 %214
    %216 = vrot.lane.b32.xlu0 %v205, 96
    %v217 = vpop.permute.xlu0 %216
    %222 = vst.msk [vmem:[#allocation2 + $0x8] sm:$0xff] %vm139, %v211
    %223 = vst.msk [vmem:[#allocation2 + $0x28] sm:$0xff] %vm139, %v213
    %224 = vst.msk [vmem:[#allocation2 + $0x48] sm:$0xff] %vm139, %v215
    %225 = vst.msk [vmem:[#allocation2 + $0x68] sm:$0xf] %vm143, %v217
    %v226 = vld [vmem:[%s153 + $0x3] sm:$0xff]
    %v227 = vld [vmem:[%s153 + $0xb] sm:$0xff]
    %v228 = vld [vmem:[%s153 + $0x13] sm:$0xff]
    %v229 = vld [vmem:[%s153 + $0x1b] sm:$0xf]
    %230 = vst.msk [vmem:[#allocation2 + $0x10] sm:$0xff] %vm61, %v226
    %231 = vst.msk [vmem:[#allocation2 + $0x30] sm:$0xff] %vm61, %v227
    %232 = vst.msk [vmem:[#allocation2 + $0x50] sm:$0xff] %vm61, %v228
    %233 = vst.msk [vmem:[#allocation2 + $0x70] sm:$0xf] %vm65, %v229
    %v234 = vld [vmem:[%s153 + $0x4] sm:$0xff]
    %v235 = vld [vmem:[%s153 + $0xc] sm:$0xff]
    %v236 = vld [vmem:[%s153 + $0x14] sm:$0xff]
    %v237 = vld [vmem:[%s153 + $0x1c] sm:$0xf]
    %242 = vrot.lane.b32.xlu0 %v234, 32
    %v243 = vpop.permute.xlu0 %242
    %244 = vrot.lane.b32.xlu0 %v235, 32
    %v245 = vpop.permute.xlu0 %244
    %246 = vrot.lane.b32.xlu0 %v236, 32
    %v247 = vpop.permute.xlu0 %246
    %248 = vrot.lane.b32.xlu0 %v237, 32
    %v249 = vpop.permute.xlu0 %248
    %254 = vst.msk [vmem:[#allocation2 + $0x10] sm:$0xff] %vm87, %v243
    %255 = vst.msk [vmem:[#allocation2 + $0x30] sm:$0xff] %vm87, %v245
    %256 = vst.msk [vmem:[#allocation2 + $0x50] sm:$0xff] %vm87, %v247
    %257 = vst.msk [vmem:[#allocation2 + $0x70] sm:$0xf] %vm91, %v249
    %s258 = scalar_lea.vmem %s0, 64
    %v259 = vld [vmem:[%s258] sm:$0xff]
    %v260 = vld [vmem:[%s258 + $0x8] sm:$0xff]
    %v261 = vld [vmem:[%s258 + $0x10] sm:$0xff]
    %v262 = vld [vmem:[%s258 + $0x18] sm:$0xf]
    %267 = vrot.lane.b32.xlu0 %v259, 64
    %v268 = vpop.permute.xlu0 %267
    %269 = vrot.lane.b32.xlu0 %v260, 64
    %v270 = vpop.permute.xlu0 %269
    %271 = vrot.lane.b32.xlu0 %v261, 64
    %v272 = vpop.permute.xlu0 %271
    %273 = vrot.lane.b32.xlu0 %v262, 64
    %v274 = vpop.permute.xlu0 %273
    %279 = vst.msk [vmem:[#allocation2 + $0x10] sm:$0xff] %vm113, %v268
    %280 = vst.msk [vmem:[#allocation2 + $0x30] sm:$0xff] %vm113, %v270
    %281 = vst.msk [vmem:[#allocation2 + $0x50] sm:$0xff] %vm113, %v272
    %282 = vst.msk [vmem:[#allocation2 + $0x70] sm:$0xf] %vm117, %v274
    %v283 = vld [vmem:[%s258 + $0x1] sm:$0xff]
    %v284 = vld [vmem:[%s258 + $0x9] sm:$0xff]
    %v285 = vld [vmem:[%s258 + $0x11] sm:$0xff]
    %v286 = vld [vmem:[%s258 + $0x19] sm:$0xf]
    %291 = vrot.lane.b32.xlu0 %v283, 96
    %v292 = vpop.permute.xlu0 %291
    %293 = vrot.lane.b32.xlu0 %v284, 96
    %v294 = vpop.permute.xlu0 %293
    %295 = vrot.lane.b32.xlu0 %v285, 96
    %v296 = vpop.permute.xlu0 %295
    %297 = vrot.lane.b32.xlu0 %v286, 96
    %v298 = vpop.permute.xlu0 %297
    %303 = vst.msk [vmem:[#allocation2 + $0x10] sm:$0xff] %vm139, %v292
    %304 = vst.msk [vmem:[#allocation2 + $0x30] sm:$0xff] %vm139, %v294
    %305 = vst.msk [vmem:[#allocation2 + $0x50] sm:$0xff] %vm139, %v296
    %306 = vst.msk [vmem:[#allocation2 + $0x70] sm:$0xf] %vm143, %v298
    %v307 = vld [vmem:[%s258 + $0x2] sm:$0xff]
    %v308 = vld [vmem:[%s258 + $0xa] sm:$0xff]
    %v309 = vld [vmem:[%s258 + $0x12] sm:$0xff]
    %v310 = vld [vmem:[%s258 + $0x1a] sm:$0xf]
    %311 = vst.msk [vmem:[#allocation2 + $0x18] sm:$0xff] %vm61, %v307
    %312 = vst.msk [vmem:[#allocation2 + $0x38] sm:$0xff] %vm61, %v308
    %313 = vst.msk [vmem:[#allocation2 + $0x58] sm:$0xff] %vm61, %v309
    %314 = vst.msk [vmem:[#allocation2 + $0x78] sm:$0xf] %vm65, %v310
    %v315 = vld [vmem:[%s258 + $0x3] sm:$0xff]
    %v316 = vld [vmem:[%s258 + $0xb] sm:$0xff]
    %v317 = vld [vmem:[%s258 + $0x13] sm:$0xff]
    %v318 = vld [vmem:[%s258 + $0x1b] sm:$0xf]
    %323 = vrot.lane.b32.xlu0 %v315, 32
    %v324 = vpop.permute.xlu0 %323
    %325 = vrot.lane.b32.xlu0 %v316, 32
    %v326 = vpop.permute.xlu0 %325
    %327 = vrot.lane.b32.xlu0 %v317, 32
    %v328 = vpop.permute.xlu0 %327
    %329 = vrot.lane.b32.xlu0 %v318, 32
    %v330 = vpop.permute.xlu0 %329
    %335 = vst.msk [vmem:[#allocation2 + $0x18] sm:$0xff] %vm87, %v324
    %336 = vst.msk [vmem:[#allocation2 + $0x38] sm:$0xff] %vm87, %v326
    %337 = vst.msk [vmem:[#allocation2 + $0x58] sm:$0xff] %vm87, %v328
    %338 = vst.msk [vmem:[#allocation2 + $0x78] sm:$0xf] %vm91, %v330
    %v339 = vld [vmem:[%s258 + $0x4] sm:$0xff]
    %v340 = vld [vmem:[%s258 + $0xc] sm:$0xff]
    %v341 = vld [vmem:[%s258 + $0x14] sm:$0xff]
    %v342 = vld [vmem:[%s258 + $0x1c] sm:$0xf]
    %347 = vrot.lane.b32.xlu0 %v339, 64
    %v348 = vpop.permute.xlu0 %347
    %349 = vrot.lane.b32.xlu0 %v340, 64
    %v350 = vpop.permute.xlu0 %349
    %351 = vrot.lane.b32.xlu0 %v341, 64
    %v352 = vpop.permute.xlu0 %351
    %353 = vrot.lane.b32.xlu0 %v342, 64
    %v354 = vpop.permute.xlu0 %353
    %359 = vst.msk [vmem:[#allocation2 + $0x18] sm:$0xff] %vm113, %v348
    %360 = vst.msk [vmem:[#allocation2 + $0x38] sm:$0xff] %vm113, %v350
    %361 = vst.msk [vmem:[#allocation2 + $0x58] sm:$0xff] %vm113, %v352
    %362 = vst.msk [vmem:[#allocation2 + $0x78] sm:$0xf] %vm117, %v354
    %s363 = scalar_lea.vmem %s0, 96
    %v364 = vld [vmem:[%s363] sm:$0xff]
    %v365 = vld [vmem:[%s363 + $0x8] sm:$0xff]
    %v366 = vld [vmem:[%s363 + $0x10] sm:$0xff]
    %v367 = vld [vmem:[%s363 + $0x18] sm:$0xf]
    %vm372 = vcmask 1043456
    %v373 = vrot.slane %v364, 4
    %v374 = vrot.slane %v365, 4
    %v375 = vsel %vm372, %v373, %v374
    %v376 = vrot.slane %v366, 4
    %v377 = vsel %vm372, %v374, %v376
    %v378 = vrot.slane %v367, 4
    %v379 = vsel %vm372, %v376, %v378
    %vm384 = vcmask 261124
    %385 = vst.msk [vmem:[#allocation2 + $0x60] sm:$0xf0] %vm384, %v373
    %386 = vst.msk [vmem:[#allocation2 + $0x80] sm:$0xff] %vm61, %v375
    %387 = vst.msk [vmem:[#allocation2 + $0xa0] sm:$0xff] %vm61, %v377
    %388 = vst.msk [vmem:[#allocation2 + $0xc0] sm:$0xff] %vm61, %v379
    %v389 = vld [vmem:[%s363 + $0x1] sm:$0xff]
    %v390 = vld [vmem:[%s363 + $0x9] sm:$0xff]
    %v391 = vld [vmem:[%s363 + $0x11] sm:$0xff]
    %v392 = vld [vmem:[%s363 + $0x19] sm:$0xf]
    %v397 = vrot.slane %v389, 4
    %v398 = vrot.slane %v390, 4
    %v399 = vsel %vm372, %v397, %v398
    %v400 = vrot.slane %v391, 4
    %v401 = vsel %vm372, %v398, %v400
    %v402 = vrot.slane %v392, 4
    %v403 = vsel %vm372, %v400, %v402
    %404 = vrot.lane.b32.xlu0 %v397, 32
    %v405 = vpop.permute.xlu0 %404
    %406 = vrot.lane.b32.xlu0 %v399, 32
    %v407 = vpop.permute.xlu0 %406
    %408 = vrot.lane.b32.xlu0 %v401, 32
    %v409 = vpop.permute.xlu0 %408
    %410 = vrot.lane.b32.xlu0 %v403, 32
    %v411 = vpop.permute.xlu0 %410
    %vm416 = vcmask 523524
    %417 = vst.msk [vmem:[#allocation2 + $0x60] sm:$0xf0] %vm416, %v405
    %418 = vst.msk [vmem:[#allocation2 + $0x80] sm:$0xff] %vm87, %v407
    %419 = vst.msk [vmem:[#allocation2 + $0xa0] sm:$0xff] %vm87, %v409
    %420 = vst.msk [vmem:[#allocation2 + $0xc0] sm:$0xff] %vm87, %v411
    %v421 = vld [vmem:[%s363 + $0x2] sm:$0xff]
    %v422 = vld [vmem:[%s363 + $0xa] sm:$0xff]
    %v423 = vld [vmem:[%s363 + $0x12] sm:$0xff]
    %v424 = vld [vmem:[%s363 + $0x1a] sm:$0xf]
    %v429 = vrot.slane %v421, 4
    %v430 = vrot.slane %v422, 4
    %v431 = vsel %vm372, %v429, %v430
    %v432 = vrot.slane %v423, 4
    %v433 = vsel %vm372, %v430, %v432
    %v434 = vrot.slane %v424, 4
    %v435 = vsel %vm372, %v432, %v434
    %436 = vrot.lane.b32.xlu0 %v429, 64
    %v437 = vpop.permute.xlu0 %436
    %438 = vrot.lane.b32.xlu0 %v431, 64
    %v439 = vpop.permute.xlu0 %438
    %440 = vrot.lane.b32.xlu0 %v433, 64
    %v441 = vpop.permute.xlu0 %440
    %442 = vrot.lane.b32.xlu0 %v435, 64
    %v443 = vpop.permute.xlu0 %442
    %vm448 = vcmask 785924
    %449 = vst.msk [vmem:[#allocation2 + $0x60] sm:$0xf0] %vm448, %v437
    %450 = vst.msk [vmem:[#allocation2 + $0x80] sm:$0xff] %vm113, %v439
    %451 = vst.msk [vmem:[#allocation2 + $0xa0] sm:$0xff] %vm113, %v441
    %452 = vst.msk [vmem:[#allocation2 + $0xc0] sm:$0xff] %vm113, %v443
    %v453 = vld [vmem:[%s363 + $0x3] sm:$0xff]
    %v454 = vld [vmem:[%s363 + $0xb] sm:$0xff]
    %v455 = vld [vmem:[%s363 + $0x13] sm:$0xff]
    %v456 = vld [vmem:[%s363 + $0x1b] sm:$0xf]
    %v461 = vrot.slane %v453, 4
    %v462 = vrot.slane %v454, 4
    %v463 = vsel %vm372, %v461, %v462
    %v464 = vrot.slane %v455, 4
    %v465 = vsel %vm372, %v462, %v464
    %v466 = vrot.slane %v456, 4
    %v467 = vsel %vm372, %v464, %v466
    %468 = vrot.lane.b32.xlu0 %v461, 96
    %v469 = vpop.permute.xlu0 %468
    %470 = vrot.lane.b32.xlu0 %v463, 96
    %v471 = vpop.permute.xlu0 %470
    %472 = vrot.lane.b32.xlu0 %v465, 96
    %v473 = vpop.permute.xlu0 %472
    %474 = vrot.lane.b32.xlu0 %v467, 96
    %v475 = vpop.permute.xlu0 %474
    %vm480 = vcmask 1048324
    %481 = vst.msk [vmem:[#allocation2 + $0x60] sm:$0xf0] %vm480, %v469
    %482 = vst.msk [vmem:[#allocation2 + $0x80] sm:$0xff] %vm139, %v471
    %483 = vst.msk [vmem:[#allocation2 + $0xa0] sm:$0xff] %vm139, %v473
    %484 = vst.msk [vmem:[#allocation2 + $0xc0] sm:$0xff] %vm139, %v475
    %v485 = vld [vmem:[%s363 + $0x4] sm:$0xff]
    %v486 = vld [vmem:[%s363 + $0xc] sm:$0xff]
    %v487 = vld [vmem:[%s363 + $0x14] sm:$0xff]
    %v488 = vld [vmem:[%s363 + $0x1c] sm:$0xf]
    %v493 = vrot.slane %v485, 4
    %v494 = vrot.slane %v486, 4
    %v495 = vsel %vm372, %v493, %v494
    %v496 = vrot.slane %v487, 4
    %v497 = vsel %vm372, %v494, %v496
    %v498 = vrot.slane %v488, 4
    %v499 = vsel %vm372, %v496, %v498
    %504 = vst.msk [vmem:[#allocation2 + $0x68] sm:$0xf0] %vm384, %v493
    %505 = vst.msk [vmem:[#allocation2 + $0x88] sm:$0xff] %vm61, %v495
    %506 = vst.msk [vmem:[#allocation2 + $0xa8] sm:$0xff] %vm61, %v497
    %507 = vst.msk [vmem:[#allocation2 + $0xc8] sm:$0xff] %vm61, %v499
    %s508 = scalar_lea.vmem %s0, 128
    %v509 = vld [vmem:[%s508] sm:$0xff]
    %v510 = vld [vmem:[%s508 + $0x8] sm:$0xff]
    %v511 = vld [vmem:[%s508 + $0x10] sm:$0xff]
    %v512 = vld [vmem:[%s508 + $0x18] sm:$0xf]
    %v517 = vrot.slane %v509, 4
    %v518 = vrot.slane %v510, 4
    %v519 = vsel %vm372, %v517, %v518
    %v520 = vrot.slane %v511, 4
    %v521 = vsel %vm372, %v518, %v520
    %v522 = vrot.slane %v512, 4
    %v523 = vsel %vm372, %v520, %v522
    %524 = vrot.lane.b32.xlu0 %v517, 32
    %v525 = vpop.permute.xlu0 %524
    %526 = vrot.lane.b32.xlu0 %v519, 32
    %v527 = vpop.permute.xlu0 %526
    %528 = vrot.lane.b32.xlu0 %v521, 32
    %v529 = vpop.permute.xlu0 %528
    %530 = vrot.lane.b32.xlu0 %v523, 32
    %v531 = vpop.permute.xlu0 %530
    %536 = vst.msk [vmem:[#allocation2 + $0x68] sm:$0xf0] %vm416, %v525
    %537 = vst.msk [vmem:[#allocation2 + $0x88] sm:$0xff] %vm87, %v527
    %538 = vst.msk [vmem:[#allocation2 + $0xa8] sm:$0xff] %vm87, %v529
    %539 = vst.msk [vmem:[#allocation2 + $0xc8] sm:$0xff] %vm87, %v531
    %v540 = vld [vmem:[%s508 + $0x1] sm:$0xff]
    %v541 = vld [vmem:[%s508 + $0x9] sm:$0xff]
    %v542 = vld [vmem:[%s508 + $0x11] sm:$0xff]
    %v543 = vld [vmem:[%s508 + $0x19] sm:$0xf]
    %v548 = vrot.slane %v540, 4
    %v549 = vrot.slane %v541, 4
    %v550 = vsel %vm372, %v548, %v549
    %v551 = vrot.slane %v542, 4
    %v552 = vsel %vm372, %v549, %v551
    %v553 = vrot.slane %v543, 4
    %v554 = vsel %vm372, %v551, %v553
    %555 = vrot.lane.b32.xlu0 %v548, 64
    %v556 = vpop.permute.xlu0 %555
    %557 = vrot.lane.b32.xlu0 %v550, 64
    %v558 = vpop.permute.xlu0 %557
    %559 = vrot.lane.b32.xlu0 %v552, 64
    %v560 = vpop.permute.xlu0 %559
    %561 = vrot.lane.b32.xlu0 %v554, 64
    %v562 = vpop.permute.xlu0 %561
    %567 = vst.msk [vmem:[#allocation2 + $0x68] sm:$0xf0] %vm448, %v556
    %568 = vst.msk [vmem:[#allocation2 + $0x88] sm:$0xff] %vm113, %v558
    %569 = vst.msk [vmem:[#allocation2 + $0xa8] sm:$0xff] %vm113, %v560
    %570 = vst.msk [vmem:[#allocation2 + $0xc8] sm:$0xff] %vm113, %v562
    %v571 = vld [vmem:[%s508 + $0x2] sm:$0xff]
    %v572 = vld [vmem:[%s508 + $0xa] sm:$0xff]
    %v573 = vld [vmem:[%s508 + $0x12] sm:$0xff]
    %v574 = vld [vmem:[%s508 + $0x1a] sm:$0xf]
    %v579 = vrot.slane %v571, 4
    %v580 = vrot.slane %v572, 4
    %v581 = vsel %vm372, %v579, %v580
    %v582 = vrot.slane %v573, 4
    %v583 = vsel %vm372, %v580, %v582
    %v584 = vrot.slane %v574, 4
    %v585 = vsel %vm372, %v582, %v584
    %586 = vrot.lane.b32.xlu0 %v579, 96
    %v587 = vpop.permute.xlu0 %586
    %588 = vrot.lane.b32.xlu0 %v581, 96
    %v589 = vpop.permute.xlu0 %588
    %590 = vrot.lane.b32.xlu0 %v583, 96
    %v591 = vpop.permute.xlu0 %590
    %592 = vrot.lane.b32.xlu0 %v585, 96
    %v593 = vpop.permute.xlu0 %592
    %598 = vst.msk [vmem:[#allocation2 + $0x68] sm:$0xf0] %vm480, %v587
    %599 = vst.msk [vmem:[#allocation2 + $0x88] sm:$0xff] %vm139, %v589
    %600 = vst.msk [vmem:[#allocation2 + $0xa8] sm:$0xff] %vm139, %v591
    %601 = vst.msk [vmem:[#allocation2 + $0xc8] sm:$0xff] %vm139, %v593
    %v602 = vld [vmem:[%s508 + $0x3] sm:$0xff]
    %v603 = vld [vmem:[%s508 + $0xb] sm:$0xff]
    %v604 = vld [vmem:[%s508 + $0x13] sm:$0xff]
    %v605 = vld [vmem:[%s508 + $0x1b] sm:$0xf]
    %v610 = vrot.slane %v602, 4
    %v611 = vrot.slane %v603, 4
    %v612 = vsel %vm372, %v610, %v611
    %v613 = vrot.slane %v604, 4
    %v614 = vsel %vm372, %v611, %v613
    %v615 = vrot.slane %v605, 4
    %v616 = vsel %vm372, %v613, %v615
    %621 = vst.msk [vmem:[#allocation2 + $0x70] sm:$0xf0] %vm384, %v610
    %622 = vst.msk [vmem:[#allocation2 + $0x90] sm:$0xff] %vm61, %v612
    %623 = vst.msk [vmem:[#allocation2 + $0xb0] sm:$0xff] %vm61, %v614
    %624 = vst.msk [vmem:[#allocation2 + $0xd0] sm:$0xff] %vm61, %v616
    %v625 = vld [vmem:[%s508 + $0x4] sm:$0xff]
    %v626 = vld [vmem:[%s508 + $0xc] sm:$0xff]
    %v627 = vld [vmem:[%s508 + $0x14] sm:$0xff]
    %v628 = vld [vmem:[%s508 + $0x1c] sm:$0xf]
    %v633 = vrot.slane %v625, 4
    %v634 = vrot.slane %v626, 4
    %v635 = vsel %vm372, %v633, %v634
    %v636 = vrot.slane %v627, 4
    %v637 = vsel %vm372, %v634, %v636
    %v638 = vrot.slane %v628, 4
    %v639 = vsel %vm372, %v636, %v638
    %640 = vrot.lane.b32.xlu0 %v633, 32
    %v641 = vpop.permute.xlu0 %640
    %642 = vrot.lane.b32.xlu0 %v635, 32
    %v643 = vpop.permute.xlu0 %642
    %644 = vrot.lane.b32.xlu0 %v637, 32
    %v645 = vpop.permute.xlu0 %644
    %646 = vrot.lane.b32.xlu0 %v639, 32
    %v647 = vpop.permute.xlu0 %646
    %652 = vst.msk [vmem:[#allocation2 + $0x70] sm:$0xf0] %vm416, %v641
    %653 = vst.msk [vmem:[#allocation2 + $0x90] sm:$0xff] %vm87, %v643
    %654 = vst.msk [vmem:[#allocation2 + $0xb0] sm:$0xff] %vm87, %v645
    %655 = vst.msk [vmem:[#allocation2 + $0xd0] sm:$0xff] %vm87, %v647
    %s656 = scalar_lea.vmem %s0, 160
    %v657 = vld [vmem:[%s656] sm:$0xff]
    %v658 = vld [vmem:[%s656 + $0x8] sm:$0xff]
    %v659 = vld [vmem:[%s656 + $0x10] sm:$0xff]
    %v660 = vld [vmem:[%s656 + $0x18] sm:$0xf]
    %v665 = vrot.slane %v657, 4
    %v666 = vrot.slane %v658, 4
    %v667 = vsel %vm372, %v665, %v666
    %v668 = vrot.slane %v659, 4
    %v669 = vsel %vm372, %v666, %v668
    %v670 = vrot.slane %v660, 4
    %v671 = vsel %vm372, %v668, %v670
    %672 = vrot.lane.b32.xlu0 %v665, 64
    %v673 = vpop.permute.xlu0 %672
    %674 = vrot.lane.b32.xlu0 %v667, 64
    %v675 = vpop.permute.xlu0 %674
    %676 = vrot.lane.b32.xlu0 %v669, 64
    %v677 = vpop.permute.xlu0 %676
    %678 = vrot.lane.b32.xlu0 %v671, 64
    %v679 = vpop.permute.xlu0 %678
    %684 = vst.msk [vmem:[#allocation2 + $0x70] sm:$0xf0] %vm448, %v673
    %685 = vst.msk [vmem:[#allocation2 + $0x90] sm:$0xff] %vm113, %v675
    %686 = vst.msk [vmem:[#allocation2 + $0xb0] sm:$0xff] %vm113, %v677
    %687 = vst.msk [vmem:[#allocation2 + $0xd0] sm:$0xff] %vm113, %v679
    %v688 = vld [vmem:[%s656 + $0x1] sm:$0xff]
    %v689 = vld [vmem:[%s656 + $0x9] sm:$0xff]
    %v690 = vld [vmem:[%s656 + $0x11] sm:$0xff]
    %v691 = vld [vmem:[%s656 + $0x19] sm:$0xf]
    %v696 = vrot.slane %v688, 4
    %v697 = vrot.slane %v689, 4
    %v698 = vsel %vm372, %v696, %v697
    %v699 = vrot.slane %v690, 4
    %v700 = vsel %vm372, %v697, %v699
    %v701 = vrot.slane %v691, 4
    %v702 = vsel %vm372, %v699, %v701
    %703 = vrot.lane.b32.xlu0 %v696, 96
    %v704 = vpop.permute.xlu0 %703
    %705 = vrot.lane.b32.xlu0 %v698, 96
    %v706 = vpop.permute.xlu0 %705
    %707 = vrot.lane.b32.xlu0 %v700, 96
    %v708 = vpop.permute.xlu0 %707
    %709 = vrot.lane.b32.xlu0 %v702, 96
    %v710 = vpop.permute.xlu0 %709
    %715 = vst.msk [vmem:[#allocation2 + $0x70] sm:$0xf0] %vm480, %v704
    %716 = vst.msk [vmem:[#allocation2 + $0x90] sm:$0xff] %vm139, %v706
    %717 = vst.msk [vmem:[#allocation2 + $0xb0] sm:$0xff] %vm139, %v708
    %718 = vst.msk [vmem:[#allocation2 + $0xd0] sm:$0xff] %vm139, %v710
    %v719 = vld [vmem:[%s656 + $0x2] sm:$0xff]
    %v720 = vld [vmem:[%s656 + $0xa] sm:$0xff]
    %v721 = vld [vmem:[%s656 + $0x12] sm:$0xff]
    %v722 = vld [vmem:[%s656 + $0x1a] sm:$0xf]
    %v727 = vrot.slane %v719, 4
    %v728 = vrot.slane %v720, 4
    %v729 = vsel %vm372, %v727, %v728
    %v730 = vrot.slane %v721, 4
    %v731 = vsel %vm372, %v728, %v730
    %v732 = vrot.slane %v722, 4
    %v733 = vsel %vm372, %v730, %v732
    %738 = vst.msk [vmem:[#allocation2 + $0x78] sm:$0xf0] %vm384, %v727
    %739 = vst.msk [vmem:[#allocation2 + $0x98] sm:$0xff] %vm61, %v729
    %740 = vst.msk [vmem:[#allocation2 + $0xb8] sm:$0xff] %vm61, %v731
    %741 = vst.msk [vmem:[#allocation2 + $0xd8] sm:$0xff] %vm61, %v733
    %v742 = vld [vmem:[%s656 + $0x3] sm:$0xff]
    %v743 = vld [vmem:[%s656 + $0xb] sm:$0xff]
    %v744 = vld [vmem:[%s656 + $0x13] sm:$0xff]
    %v745 = vld [vmem:[%s656 + $0x1b] sm:$0xf]
    %v750 = vrot.slane %v742, 4
    %v751 = vrot.slane %v743, 4
    %v752 = vsel %vm372, %v750, %v751
    %v753 = vrot.slane %v744, 4
    %v754 = vsel %vm372, %v751, %v753
    %v755 = vrot.slane %v745, 4
    %v756 = vsel %vm372, %v753, %v755
    %757 = vrot.lane.b32.xlu0 %v750, 32
    %v758 = vpop.permute.xlu0 %757
    %759 = vrot.lane.b32.xlu0 %v752, 32
    %v760 = vpop.permute.xlu0 %759
    %761 = vrot.lane.b32.xlu0 %v754, 32
    %v762 = vpop.permute.xlu0 %761
    %763 = vrot.lane.b32.xlu0 %v756, 32
    %v764 = vpop.permute.xlu0 %763
    %769 = vst.msk [vmem:[#allocation2 + $0x78] sm:$0xf0] %vm416, %v758
    %770 = vst.msk [vmem:[#allocation2 + $0x98] sm:$0xff] %vm87, %v760
    %771 = vst.msk [vmem:[#allocation2 + $0xb8] sm:$0xff] %vm87, %v762
    %772 = vst.msk [vmem:[#allocation2 + $0xd8] sm:$0xff] %vm87, %v764
    %v773 = vld [vmem:[%s656 + $0x4] sm:$0xff]
    %v774 = vld [vmem:[%s656 + $0xc] sm:$0xff]
    %v775 = vld [vmem:[%s656 + $0x14] sm:$0xff]
    %v776 = vld [vmem:[%s656 + $0x1c] sm:$0xf]
    %v781 = vrot.slane %v773, 4
    %v782 = vrot.slane %v774, 4
    %v783 = vsel %vm372, %v781, %v782
    %v784 = vrot.slane %v775, 4
    %v785 = vsel %vm372, %v782, %v784
    %v786 = vrot.slane %v776, 4
    %v787 = vsel %vm372, %v784, %v786
    %788 = vrot.lane.b32.xlu0 %v781, 64
    %v789 = vpop.permute.xlu0 %788
    %790 = vrot.lane.b32.xlu0 %v783, 64
    %v791 = vpop.permute.xlu0 %790
    %792 = vrot.lane.b32.xlu0 %v785, 64
    %v793 = vpop.permute.xlu0 %792
    %794 = vrot.lane.b32.xlu0 %v787, 64
    %v795 = vpop.permute.xlu0 %794
    %800 = vst.msk [vmem:[#allocation2 + $0x78] sm:$0xf0] %vm448, %v789
    %801 = vst.msk [vmem:[#allocation2 + $0x98] sm:$0xff] %vm113, %v791
    %802 = vst.msk [vmem:[#allocation2 + $0xb8] sm:$0xff] %vm113, %v793
    %803 = vst.msk [vmem:[#allocation2 + $0xd8] sm:$0xff] %vm113, %v795
    %v804 = vld [vmem:[#allocation2] sm:$0xff]
    %v805 = vld [vmem:[#allocation2 + $0x8] sm:$0xff]
    %v806 = vld [vmem:[#allocation2 + $0x10] sm:$0xff]
    %v807 = vld [vmem:[#allocation2 + $0x18] sm:$0xff]
    %v808 = vld [vmem:[#allocation2 + $0x20] sm:$0xff]
    %v809 = vld [vmem:[#allocation2 + $0x28] sm:$0xff]
    %v810 = vld [vmem:[#allocation2 + $0x30] sm:$0xff]
    %v811 = vld [vmem:[#allocation2 + $0x38] sm:$0xff]
    %v812 = vld [vmem:[#allocation2 + $0x40] sm:$0xff]
    %v813 = vld [vmem:[#allocation2 + $0x48] sm:$0xff]
    %v814 = vld [vmem:[#allocation2 + $0x50] sm:$0xff]
    %v815 = vld [vmem:[#allocation2 + $0x58] sm:$0xff]
    %v816 = vld [vmem:[#allocation2 + $0x60] sm:$0xff]
    %v817 = vld [vmem:[#allocation2 + $0x68] sm:$0xff]
    %v818 = vld [vmem:[#allocation2 + $0x70] sm:$0xff]
    %v819 = vld [vmem:[#allocation2 + $0x78] sm:$0xff]
    %v820 = vld [vmem:[#allocation2 + $0x80] sm:$0xff]
    %v821 = vld [vmem:[#allocation2 + $0x88] sm:$0xff]
    %v822 = vld [vmem:[#allocation2 + $0x90] sm:$0xff]
    %v823 = vld [vmem:[#allocation2 + $0x98] sm:$0xff]
    %v824 = vld [vmem:[#allocation2 + $0xa0] sm:$0xff]
    %v825 = vld [vmem:[#allocation2 + $0xa8] sm:$0xff]
    %v826 = vld [vmem:[#allocation2 + $0xb0] sm:$0xff]
    %v827 = vld [vmem:[#allocation2 + $0xb8] sm:$0xff]
    %v828 = vld [vmem:[#allocation2 + $0xc0] sm:$0xff]
    %v829 = vld [vmem:[#allocation2 + $0xc8] sm:$0xff]
    %v830 = vld [vmem:[#allocation2 + $0xd0] sm:$0xff]
    %v831 = vld [vmem:[#allocation2 + $0xd8] sm:$0xff]
    %v832 = vld [vmem:[%s1] sm:$0xff]
    %v833 = vld [vmem:[%s1 + $0x8] sm:$0xff]
    %v834 = vld [vmem:[%s1 + $0x10] sm:$0xff]
    %v835 = vld [vmem:[%s1 + $0x18] sm:$0xff]
    %v836 = vld [vmem:[%s1 + $0x20] sm:$0xff]
    %v837 = vld [vmem:[%s1 + $0x28] sm:$0xff]
    %v838 = vld [vmem:[%s1 + $0x30] sm:$0xff]
    %v839 = vld [vmem:[%s1 + $0x38] sm:$0xff]
    %v840 = vld [vmem:[%s1 + $0x40] sm:$0xff]
    %v841 = vld [vmem:[%s1 + $0x48] sm:$0xff]
    %v842 = vld [vmem:[%s1 + $0x50] sm:$0xff]
    %v843 = vld [vmem:[%s1 + $0x58] sm:$0xff]
    %v844 = vld [vmem:[%s1 + $0x60] sm:$0xff]
    %v845 = vld [vmem:[%s1 + $0x68] sm:$0xff]
    %v846 = vld [vmem:[%s1 + $0x70] sm:$0xff]
    %v847 = vld [vmem:[%s1 + $0x78] sm:$0xff]
    %v848 = vld [vmem:[%s1 + $0x80] sm:$0xff]
    %v849 = vld [vmem:[%s1 + $0x88] sm:$0xff]
    %v850 = vld [vmem:[%s1 + $0x90] sm:$0xff]
    %v851 = vld [vmem:[%s1 + $0x98] sm:$0xff]
    %v852 = vld [vmem:[%s1 + $0xa0] sm:$0xff]
    %v853 = vld [vmem:[%s1 + $0xa8] sm:$0xff]
    %v854 = vld [vmem:[%s1 + $0xb0] sm:$0xff]
    %v855 = vld [vmem:[%s1 + $0xb8] sm:$0xff]
    %v856 = vld [vmem:[%s1 + $0xc0] sm:$0xff]
    %v857 = vld [vmem:[%s1 + $0xc8] sm:$0xff]
    %v858 = vld [vmem:[%s1 + $0xd0] sm:$0xff]
    %v859 = vld [vmem:[%s1 + $0xd8] sm:$0xff]
    %v860 = vld [vmem:[%s1 + $0xe0] sm:$0xff]
    %v861 = vld [vmem:[%s1 + $0xe8] sm:$0xff]
    %v862 = vld [vmem:[%s1 + $0xf0] sm:$0xff]
    %v863 = vld [vmem:[%s1 + $0xf8] sm:$0xff]
    %v864 = vld [vmem:[%s1 + $0x100] sm:$0xff]
    %v865 = vld [vmem:[%s1 + $0x108] sm:$0xff]
    %v866 = vld [vmem:[%s1 + $0x110] sm:$0xff]
    %v867 = vld [vmem:[%s1 + $0x118] sm:$0xff]
    %v868 = vld [vmem:[%s1 + $0x120] sm:$0xff]
    %v869 = vld [vmem:[%s1 + $0x128] sm:$0xff]
    %v870 = vld [vmem:[%s1 + $0x130] sm:$0xff]
    %v871 = vld [vmem:[%s1 + $0x138] sm:$0xff]
    %v872 = vld [vmem:[%s1 + $0x140] sm:$0xff]
    %v873 = vld [vmem:[%s1 + $0x148] sm:$0xff]
    %v874 = vld [vmem:[%s1 + $0x150] sm:$0xff]
    %v875 = vld [vmem:[%s1 + $0x158] sm:$0xff]
    %v876 = vld [vmem:[%s1 + $0x160] sm:$0xff]
    %v877 = vld [vmem:[%s1 + $0x168] sm:$0xff]
    %v878 = vld [vmem:[%s1 + $0x170] sm:$0xff]
    %v879 = vld [vmem:[%s1 + $0x178] sm:$0xff]
    %v880 = vld [vmem:[%s1 + $0x180] sm:$0xff]
    %v881 = vld [vmem:[%s1 + $0x188] sm:$0xff]
    %v882 = vld [vmem:[%s1 + $0x190] sm:$0xff]
    %v883 = vld [vmem:[%s1 + $0x198] sm:$0xff]
    %v884 = vld [vmem:[%s1 + $0x1a0] sm:$0xff]
    %v885 = vld [vmem:[%s1 + $0x1a8] sm:$0xff]
    %v886 = vld [vmem:[%s1 + $0x1b0] sm:$0xff]
    %v887 = vld [vmem:[%s1 + $0x1b8] sm:$0xff]
    %v888 = vld [vmem:[%s1 + $0x1c0] sm:$0xff]
    %v889 = vld [vmem:[%s1 + $0x1c8] sm:$0xff]
    %v890 = vld [vmem:[%s1 + $0x1d0] sm:$0xff]
    %v891 = vld [vmem:[%s1 + $0x1d8] sm:$0xff]
    %vm892 = vcmask 785408
    %v894 = vsel %vm892, %v807, 0
    %v897 = vsel %vm892, %v811, 0
    %v900 = vsel %vm892, %v815, 0
    %v903 = vsel %vm892, %v819, 0
    %v906 = vsel %vm892, %v823, 0
    %v909 = vsel %vm892, %v827, 0
    %v912 = vsel %vm892, %v831, 0
    %914 = vmatprep.subr.mxu0 0.0
    %915 = vmatpush1.msra.mxu0 %v832
    %916 = vmatprep.subr.mxu0 0.0
    %917 = vmatpush1.msra.mxu0 %v833
    %918 = vmatprep.subr.mxu0 0.0
    %919 = vmatpush1.msra.mxu0 %v834
    %920 = vmatprep.subr.mxu0 0.0
    %921 = vmatpush1.msra.mxu0 %v835
    %922 = vmatprep.subr.mxu0 0.0
    %923 = vmatpush1.msra.mxu0 %v836
    %924 = vmatprep.subr.mxu0 0.0
    %925 = vmatpush1.msra.mxu0 %v837
    %926 = vmatprep.subr.mxu0 0.0
    %927 = vmatpush1.msra.mxu0 %v838
    %928 = vmatprep.subr.mxu0 0.0
    %929 = vmatpush1.msra.mxu0 %v839
    %930 = vmatprep.subr.mxu0 0.0
    %931 = vmatpush1.msra.mxu0 %v840
    %932 = vmatprep.subr.mxu0 0.0
    %933 = vmatpush1.msra.mxu0 %v841
    %934 = vmatprep.subr.mxu0 0.0
    %935 = vmatpush1.msra.mxu0 %v842
    %936 = vmatprep.subr.mxu0 0.0
    %937 = vmatpush1.msra.mxu0 %v843
    %938 = vmatprep.subr.mxu0 0.0
    %939 = vmatpush1.msra.mxu0 %v844
    %940 = vmatprep.subr.mxu0 0.0
    %941 = vmatpush1.msra.mxu0 %v845
    %942 = vmatprep.subr.mxu0 0.0
    %943 = vmatpush1.msra.mxu0 %v846
    %944 = vmatprep.subr.mxu0 0.0
    %945 = vmatpush1.msra.mxu0 %v847
    %946 = vmatprep.subr.mxu0 0.0
    %947 = vmatpush1.msra.mxu0 %v848
    %948 = vmatprep.subr.mxu0 0.0
    %949 = vmatpush1.msra.mxu0 %v849
    %950 = vmatprep.subr.mxu0 0.0
    %951 = vmatpush1.msra.mxu0 %v850
    %952 = vmatprep.subr.mxu0 0.0
    %953 = vmatpush1.msra.mxu0 %v851
    %954 = vmatprep.subr.mxu0 0.0
    %955 = vmatpush1.msra.mxu0 %v852
    %956 = vmatprep.subr.mxu0 0.0
    %957 = vmatpush1.msra.mxu0 %v853
    %958 = vmatprep.subr.mxu0 0.0
    %959 = vmatpush1.msra.mxu0 %v854
    %960 = vmatprep.subr.mxu0 0.0
    %961 = vmatpush1.msra.mxu0 %v855
    %962 = vmatprep.subr.mxu0 0.0
    %963 = vmatpush1.msra.mxu0 %v856
    %964 = vmatprep.subr.mxu0 0.0
    %965 = vmatpush1.msra.mxu0 %v857
    %966 = vmatprep.subr.mxu0 0.0
    %967 = vmatpush1.msra.mxu0 %v858
    %968 = vmatprep.subr.mxu0 0.0
    %969 = vmatpush1.msra.mxu0 %v859
    %970 = vmatprep.subr.mxu0 0.0
    %971 = vmatpush1.msra.mxu0 %v860
    %972 = vmatprep.subr.mxu0 0.0
    %973 = vmatpush1.msra.mxu0 %v861
    %974 = vmatprep.subr.mxu0 0.0
    %975 = vmatpush1.msra.mxu0 %v862
    %976 = vmatprep.subr.mxu0 0.0
    %977 = vmatpush1.msra.mxu0 %v863
    %978 = vmatprep.mubr.f32.mxu0 %v805
    %979 = vmatmul.mubr.f32.gmra.mrb[0].mxu0 %v804
    %v980 = vpop.f32.mrb[0].mxu0
    %v981 = vadd.f32 0.0, %v980
    %v982 = vpop.f32.mrb[0].mxu0
    %983 = vmatprep.mubr.f32.mxu0 %v809
    %984 = vmatmul.mubr.f32.gmra.mrb[0].mxu0 %v808
    %v985 = vpop.f32.mrb[0].mxu0
    %v986 = vadd.f32 0.0, %v985
    %v987 = vpop.f32.mrb[0].mxu0
    %988 = vmatprep.mubr.f32.mxu0 %v813
    %989 = vmatmul.mubr.f32.gmra.mrb[0].mxu0 %v812
    %v990 = vpop.f32.mrb[0].mxu0
    %v991 = vadd.f32 0.0, %v990
    %v992 = vpop.f32.mrb[0].mxu0
    %993 = vmatprep.mubr.f32.mxu0 %v817
    %994 = vmatmul.mubr.f32.gmra.mrb[0].mxu0 %v816
    %v995 = vpop.f32.mrb[0].mxu0
    %v996 = vadd.f32 0.0, %v995
    %v997 = vpop.f32.mrb[0].mxu0
    %998 = vmatprep.mubr.f32.mxu0 %v821
    %999 = vmatmul.mubr.f32.gmra.mrb[0].mxu0 %v820
    %v1000 = vpop.f32.mrb[0].mxu0
    %v1001 = vadd.f32 0.0, %v1000
    %v1002 = vpop.f32.mrb[0].mxu0
    %1003 = vmatprep.mubr.f32.mxu0 %v825
    %1004 = vmatmul.mubr.f32.gmra.mrb[0].mxu0 %v824
    %v1005 = vpop.f32.mrb[0].mxu0
    %v1006 = vadd.f32 0.0, %v1005
    %v1007 = vpop.f32.mrb[0].mxu0
    %1008 = vmatprep.mubr.f32.mxu0 %v829
    %1009 = vmatmul.mubr.f32.gmra.mrb[0].mxu0 %v828
    %v1010 = vpop.f32.mrb[0].mxu0
    %v1011 = vadd.f32 0.0, %v1010
    %v1012 = vpop.f32.mrb[0].mxu0
    %1013 = vdwg.mxu0
    %1014 = vmatprep.subr.mxu0 0.0
    %1015 = vmatpush1.msra.mxu0 %v864
    %1016 = vmatprep.subr.mxu0 0.0
    %1017 = vmatpush1.msra.mxu0 %v865
    %1018 = vmatprep.subr.mxu0 0.0
    %1019 = vmatpush1.msra.mxu0 %v866
    %1020 = vmatprep.subr.mxu0 0.0
    %1021 = vmatpush1.msra.mxu0 %v867
    %1022 = vmatprep.subr.mxu0 0.0
    %1023 = vmatpush1.msra.mxu0 %v868
    %1024 = vmatprep.subr.mxu0 0.0
    %1025 = vmatpush1.msra.mxu0 %v869
    %1026 = vmatprep.subr.mxu0 0.0
    %1027 = vmatpush1.msra.mxu0 %v870
    %1028 = vmatprep.subr.mxu0 0.0
    %1029 = vmatpush1.msra.mxu0 %v871
    %1030 = vmatprep.subr.mxu0 0.0
    %1031 = vmatpush1.msra.mxu0 %v872
    %1032 = vmatprep.subr.mxu0 0.0
    %1033 = vmatpush1.msra.mxu0 %v873
    %1034 = vmatprep.subr.mxu0 0.0
    %1035 = vmatpush1.msra.mxu0 %v874
    %1036 = vmatprep.subr.mxu0 0.0
    %1037 = vmatpush1.msra.mxu0 %v875
    %1038 = vmatprep.subr.mxu0 0.0
    %1039 = vmatpush1.msra.mxu0 %v876
    %1040 = vmatprep.subr.mxu0 0.0
    %1041 = vmatpush1.msra.mxu0 %v877
    %1042 = vmatprep.subr.mxu0 0.0
    %1043 = vmatpush1.msra.mxu0 %v878
    %1044 = vmatprep.subr.mxu0 0.0
    %1045 = vmatpush1.msra.mxu0 %v879
    %1046 = vmatprep.subr.mxu0 0.0
    %1047 = vmatpush1.msra.mxu0 %v880
    %1048 = vmatprep.subr.mxu0 0.0
    %1049 = vmatpush1.msra.mxu0 %v881
    %1050 = vmatprep.subr.mxu0 0.0
    %1051 = vmatpush1.msra.mxu0 %v882
    %1052 = vmatprep.subr.mxu0 0.0
    %1053 = vmatpush1.msra.mxu0 %v883
    %1054 = vmatprep.subr.mxu0 0.0
    %1055 = vmatpush1.msra.mxu0 %v884
    %1056 = vmatprep.subr.mxu0 0.0
    %1057 = vmatpush1.msra.mxu0 %v885
    %1058 = vmatprep.subr.mxu0 0.0
    %1059 = vmatpush1.msra.mxu0 %v886
    %1060 = vmatprep.subr.mxu0 0.0
    %1061 = vmatpush1.msra.mxu0 %v887
    %1062 = vmatprep.subr.mxu0 0.0
    %1063 = vmatpush1.msra.mxu0 %v888
    %1064 = vmatprep.subr.mxu0 0.0
    %1065 = vmatpush1.msra.mxu0 %v889
    %1066 = vmatprep.subr.mxu0 0.0
    %1067 = vmatpush1.msra.mxu0 %v890
    %1068 = vmatprep.subr.mxu0 0.0
    %1069 = vmatpush1.msra.mxu0 %v891
    %1070 = vmatprep.subr.mxu0 0.0
    %1071 = vmatpush1.msra.mxu0 0.0
    %1072 = vmatprep.subr.mxu0 0.0
    %1073 = vmatpush1.msra.mxu0 0.0
    %1074 = vmatprep.subr.mxu0 0.0
    %1075 = vmatpush1.msra.mxu0 0.0
    %1076 = vmatprep.subr.mxu0 0.0
    %1077 = vmatpush1.msra.mxu0 0.0
    %1078 = vmatprep.mubr.f32.mxu0 %v894
    %1079 = vmatmul.mubr.f32.gmra.mrb[0].mxu0 %v806
    %v1080 = vpop.f32.mrb[0].mxu0
    %v1081 = vadd.f32 %v981, %v1080
    %v1082 = vpop.f32.mrb[0].mxu0
    %1083 = vmatprep.mubr.f32.mxu0 %v897
    %1084 = vmatmul.mubr.f32.gmra.mrb[0].mxu0 %v810
    %v1085 = vpop.f32.mrb[0].mxu0
    %v1086 = vadd.f32 %v986, %v1085
    %v1087 = vpop.f32.mrb[0].mxu0
    %1088 = vmatprep.mubr.f32.mxu0 %v900
    %1089 = vmatmul.mubr.f32.gmra.mrb[0].mxu0 %v814
    %v1090 = vpop.f32.mrb[0].mxu0
    %v1091 = vadd.f32 %v991, %v1090
    %v1092 = vpop.f32.mrb[0].mxu0
    %1093 = vmatprep.mubr.f32.mxu0 %v903
    %1094 = vmatmul.mubr.f32.gmra.mrb[0].mxu0 %v818
    %v1095 = vpop.f32.mrb[0].mxu0
    %v1096 = vadd.f32 %v996, %v1095
    %v1097 = vpop.f32.mrb[0].mxu0
    %1098 = vmatprep.mubr.f32.mxu0 %v906
    %1099 = vmatmul.mubr.f32.gmra.mrb[0].mxu0 %v822
    %v1100 = vpop.f32.mrb[0].mxu0
    %v1101 = vadd.f32 %v1001, %v1100
    %v1102 = vpop.f32.mrb[0].mxu0
    %1103 = vmatprep.mubr.f32.mxu0 %v909
    %1104 = vmatmul.mubr.f32.gmra.mrb[0].mxu0 %v826
    %v1105 = vpop.f32.mrb[0].mxu0
    %v1106 = vadd.f32 %v1006, %v1105
    %v1107 = vpop.f32.mrb[0].mxu0
    %1108 = vmatprep.mubr.f32.mxu0 %v912
    %1109 = vmatmul.mubr.f32.gmra.mrb[0].mxu0 %v830
    %v1110 = vpop.f32.mrb[0].mxu0
    %v1111 = vadd.f32 %v1011, %v1110
    %v1112 = vpop.f32.mrb[0].mxu0
    %1113 = vdwg.mxu0
    %v1114 = vld [vmem:[%s2] sm:$0xff]
    %v1115 = vld [vmem:[%s2 + $0x8] sm:$0xff]
    %v1116 = vld [vmem:[%s2 + $0x10] sm:$0xff]
    %v1117 = vld [vmem:[%s2 + $0x18] sm:$0xff]
    %v1118 = vld [vmem:[%s2 + $0x20] sm:$0xff]
    %v1119 = vld [vmem:[%s2 + $0x28] sm:$0xff]
    %v1120 = vld [vmem:[%s2 + $0x30] sm:$0xff]
    %v1121 = vld [vmem:[%s2 + $0x38] sm:$0xff]
    %v1122 = vld [vmem:[%s2 + $0x40] sm:$0xff]
    %v1123 = vld [vmem:[%s2 + $0x48] sm:$0xff]
    %v1124 = vld [vmem:[%s2 + $0x50] sm:$0xff]
    %v1125 = vld [vmem:[%s2 + $0x58] sm:$0xff]
    %v1126 = vld [vmem:[%s2 + $0x60] sm:$0xff]
    %v1127 = vld [vmem:[%s2 + $0x68] sm:$0xff]
    %v1128 = vld [vmem:[%s2 + $0x70] sm:$0xff]
    %v1129 = vld [vmem:[%s2 + $0x78] sm:$0xff]
    %v1130 = vld [vmem:[%s2 + $0x80] sm:$0xff]
    %v1131 = vld [vmem:[%s2 + $0x88] sm:$0xff]
    %v1132 = vld [vmem:[%s2 + $0x90] sm:$0xff]
    %v1133 = vld [vmem:[%s2 + $0x98] sm:$0xff]
    %v1134 = vld [vmem:[%s2 + $0xa0] sm:$0xff]
    %v1135 = vld [vmem:[%s2 + $0xa8] sm:$0xff]
    %v1136 = vld [vmem:[%s2 + $0xb0] sm:$0xff]
    %v1137 = vld [vmem:[%s2 + $0xb8] sm:$0xff]
    %v1138 = vld [vmem:[%s2 + $0xc0] sm:$0xff]
    %v1139 = vld [vmem:[%s2 + $0xc8] sm:$0xff]
    %v1140 = vld [vmem:[%s2 + $0xd0] sm:$0xff]
    %v1141 = vld [vmem:[%s2 + $0xd8] sm:$0xff]
    %v1142 = vld [vmem:[%s2 + $0xe0] sm:$0xff]
    %v1143 = vld [vmem:[%s2 + $0xe8] sm:$0xff]
    %v1144 = vld [vmem:[%s2 + $0xf0] sm:$0xff]
    %v1145 = vld [vmem:[%s2 + $0xf8] sm:$0xff]
    %v1146 = vld [vmem:[%s2 + $0x100] sm:$0xff]
    %v1147 = vld [vmem:[%s2 + $0x108] sm:$0xff]
    %v1148 = vld [vmem:[%s2 + $0x110] sm:$0xff]
    %v1149 = vld [vmem:[%s2 + $0x118] sm:$0xff]
    %v1150 = vld [vmem:[%s2 + $0x120] sm:$0xff]
    %v1151 = vld [vmem:[%s2 + $0x128] sm:$0xff]
    %v1152 = vld [vmem:[%s2 + $0x130] sm:$0xff]
    %v1153 = vld [vmem:[%s2 + $0x138] sm:$0xff]
    %v1154 = vld [vmem:[%s2 + $0x140] sm:$0xff]
    %v1155 = vld [vmem:[%s2 + $0x148] sm:$0xff]
    %v1156 = vld [vmem:[%s2 + $0x150] sm:$0xff]
    %v1157 = vld [vmem:[%s2 + $0x158] sm:$0xff]
    %v1158 = vld [vmem:[%s2 + $0x160] sm:$0xff]
    %v1159 = vld [vmem:[%s2 + $0x168] sm:$0xff]
    %v1160 = vld [vmem:[%s2 + $0x170] sm:$0xff]
    %v1161 = vld [vmem:[%s2 + $0x178] sm:$0xff]
    %v1162 = vld [vmem:[%s2 + $0x180] sm:$0xff]
    %v1163 = vld [vmem:[%s2 + $0x188] sm:$0xff]
    %v1164 = vld [vmem:[%s2 + $0x190] sm:$0xff]
    %v1165 = vld [vmem:[%s2 + $0x198] sm:$0xff]
    %v1166 = vld [vmem:[%s2 + $0x1a0] sm:$0xff]
    %v1167 = vld [vmem:[%s2 + $0x1a8] sm:$0xff]
    %v1168 = vld [vmem:[%s2 + $0x1b0] sm:$0xff]
    %v1169 = vld [vmem:[%s2 + $0x1b8] sm:$0xff]
    %v1170 = vld [vmem:[%s2 + $0x1c0] sm:$0xff]
    %v1171 = vld [vmem:[%s2 + $0x1c8] sm:$0xff]
    %v1172 = vld [vmem:[%s2 + $0x1d0] sm:$0xff]
    %v1173 = vld [vmem:[%s2 + $0x1d8] sm:$0xff]
    %1174 = vmatprep.subr.mxu0 0.0
    %1175 = vmatpush1.msra.mxu0 %v1114
    %1176 = vmatprep.subr.mxu0 0.0
    %1177 = vmatpush1.msra.mxu0 %v1115
    %1178 = vmatprep.subr.mxu0 0.0
    %1179 = vmatpush1.msra.mxu0 %v1116
    %1180 = vmatprep.subr.mxu0 0.0
    %1181 = vmatpush1.msra.mxu0 %v1117
    %1182 = vmatprep.subr.mxu0 0.0
    %1183 = vmatpush1.msra.mxu0 %v1118
    %1184 = vmatprep.subr.mxu0 0.0
    %1185 = vmatpush1.msra.mxu0 %v1119
    %1186 = vmatprep.subr.mxu0 0.0
    %1187 = vmatpush1.msra.mxu0 %v1120
    %1188 = vmatprep.subr.mxu0 0.0
    %1189 = vmatpush1.msra.mxu0 %v1121
    %1190 = vmatprep.subr.mxu0 0.0
    %1191 = vmatpush1.msra.mxu0 %v1122
    %1192 = vmatprep.subr.mxu0 0.0
    %1193 = vmatpush1.msra.mxu0 %v1123
    %1194 = vmatprep.subr.mxu0 0.0
    %1195 = vmatpush1.msra.mxu0 %v1124
    %1196 = vmatprep.subr.mxu0 0.0
    %1197 = vmatpush1.msra.mxu0 %v1125
    %1198 = vmatprep.subr.mxu0 0.0
    %1199 = vmatpush1.msra.mxu0 %v1126
    %1200 = vmatprep.subr.mxu0 0.0
    %1201 = vmatpush1.msra.mxu0 %v1127
    %1202 = vmatprep.subr.mxu0 0.0
    %1203 = vmatpush1.msra.mxu0 %v1128
    %1204 = vmatprep.subr.mxu0 0.0
    %1205 = vmatpush1.msra.mxu0 %v1129
    %1206 = vmatprep.subr.mxu0 0.0
    %1207 = vmatpush1.msra.mxu0 %v1130
    %1208 = vmatprep.subr.mxu0 0.0
    %1209 = vmatpush1.msra.mxu0 %v1131
    %1210 = vmatprep.subr.mxu0 0.0
    %1211 = vmatpush1.msra.mxu0 %v1132
    %1212 = vmatprep.subr.mxu0 0.0
    %1213 = vmatpush1.msra.mxu0 %v1133
    %1214 = vmatprep.subr.mxu0 0.0
    %1215 = vmatpush1.msra.mxu0 %v1134
    %1216 = vmatprep.subr.mxu0 0.0
    %1217 = vmatpush1.msra.mxu0 %v1135
    %1218 = vmatprep.subr.mxu0 0.0
    %1219 = vmatpush1.msra.mxu0 %v1136
    %1220 = vmatprep.subr.mxu0 0.0
    %1221 = vmatpush1.msra.mxu0 %v1137
    %1222 = vmatprep.subr.mxu0 0.0
    %1223 = vmatpush1.msra.mxu0 %v1138
    %1224 = vmatprep.subr.mxu0 0.0
    %1225 = vmatpush1.msra.mxu0 %v1139
    %1226 = vmatprep.subr.mxu0 0.0
    %1227 = vmatpush1.msra.mxu0 %v1140
    %1228 = vmatprep.subr.mxu0 0.0
    %1229 = vmatpush1.msra.mxu0 %v1141
    %1230 = vmatprep.subr.mxu0 0.0
    %1231 = vmatpush1.msra.mxu0 %v1142
    %1232 = vmatprep.subr.mxu0 0.0
    %1233 = vmatpush1.msra.mxu0 %v1143
    %1234 = vmatprep.subr.mxu0 0.0
    %1235 = vmatpush1.msra.mxu0 %v1144
    %1236 = vmatprep.subr.mxu0 0.0
    %1237 = vmatpush1.msra.mxu0 %v1145
    %1238 = vmatprep.mubr.f32.mxu0 %v805
    %1239 = vmatmul.mubr.f32.gmra.mrb[0].mxu0 %v804
    %v1240 = vpop.f32.mrb[0].mxu0
    %v1241 = vadd.f32 0.0, %v1240
    %v1242 = vpop.f32.mrb[0].mxu0
    %1243 = vmatprep.mubr.f32.mxu0 %v809
    %1244 = vmatmul.mubr.f32.gmra.mrb[0].mxu0 %v808
    %v1245 = vpop.f32.mrb[0].mxu0
    %v1246 = vadd.f32 0.0, %v1245
    %v1247 = vpop.f32.mrb[0].mxu0
    %1248 = vmatprep.mubr.f32.mxu0 %v813
    %1249 = vmatmul.mubr.f32.gmra.mrb[0].mxu0 %v812
    %v1250 = vpop.f32.mrb[0].mxu0
    %v1251 = vadd.f32 0.0, %v1250
    %v1252 = vpop.f32.mrb[0].mxu0
    %1253 = vmatprep.mubr.f32.mxu0 %v817
    %1254 = vmatmul.mubr.f32.gmra.mrb[0].mxu0 %v816
    %v1255 = vpop.f32.mrb[0].mxu0
    %v1256 = vadd.f32 0.0, %v1255
    %v1257 = vpop.f32.mrb[0].mxu0
    %1258 = vmatprep.mubr.f32.mxu0 %v821
    %1259 = vmatmul.mubr.f32.gmra.mrb[0].mxu0 %v820
    %v1260 = vpop.f32.mrb[0].mxu0
    %v1261 = vadd.f32 0.0, %v1260
    %v1262 = vpop.f32.mrb[0].mxu0
    %1263 = vmatprep.mubr.f32.mxu0 %v825
    %1264 = vmatmul.mubr.f32.gmra.mrb[0].mxu0 %v824
    %v1265 = vpop.f32.mrb[0].mxu0
    %v1266 = vadd.f32 0.0, %v1265
    %v1267 = vpop.f32.mrb[0].mxu0
    %1268 = vmatprep.mubr.f32.mxu0 %v829
    %1269 = vmatmul.mubr.f32.gmra.mrb[0].mxu0 %v828
    %v1270 = vpop.f32.mrb[0].mxu0
    %v1271 = vadd.f32 0.0, %v1270
    %v1272 = vpop.f32.mrb[0].mxu0
    %1273 = vdwg.mxu0
    %1274 = vmatprep.subr.mxu0 0.0
    %1275 = vmatpush1.msra.mxu0 %v1146
    %1276 = vmatprep.subr.mxu0 0.0
    %1277 = vmatpush1.msra.mxu0 %v1147
    %1278 = vmatprep.subr.mxu0 0.0
    %1279 = vmatpush1.msra.mxu0 %v1148
    %1280 = vmatprep.subr.mxu0 0.0
    %1281 = vmatpush1.msra.mxu0 %v1149
    %1282 = vmatprep.subr.mxu0 0.0
    %1283 = vmatpush1.msra.mxu0 %v1150
    %1284 = vmatprep.subr.mxu0 0.0
    %1285 = vmatpush1.msra.mxu0 %v1151
    %1286 = vmatprep.subr.mxu0 0.0
    %1287 = vmatpush1.msra.mxu0 %v1152
    %1288 = vmatprep.subr.mxu0 0.0
    %1289 = vmatpush1.msra.mxu0 %v1153
    %1290 = vmatprep.subr.mxu0 0.0
    %1291 = vmatpush1.msra.mxu0 %v1154
    %1292 = vmatprep.subr.mxu0 0.0
    %1293 = vmatpush1.msra.mxu0 %v1155
    %1294 = vmatprep.subr.mxu0 0.0
    %1295 = vmatpush1.msra.mxu0 %v1156
    %1296 = vmatprep.subr.mxu0 0.0
    %1297 = vmatpush1.msra.mxu0 %v1157
    %1298 = vmatprep.subr.mxu0 0.0
    %1299 = vmatpush1.msra.mxu0 %v1158
    %1300 = vmatprep.subr.mxu0 0.0
    %1301 = vmatpush1.msra.mxu0 %v1159
    %1302 = vmatprep.subr.mxu0 0.0
    %1303 = vmatpush1.msra.mxu0 %v1160
    %1304 = vmatprep.subr.mxu0 0.0
    %1305 = vmatpush1.msra.mxu0 %v1161
    %1306 = vmatprep.subr.mxu0 0.0
    %1307 = vmatpush1.msra.mxu0 %v1162
    %1308 = vmatprep.subr.mxu0 0.0
    %1309 = vmatpush1.msra.mxu0 %v1163
    %1310 = vmatprep.subr.mxu0 0.0
    %1311 = vmatpush1.msra.mxu0 %v1164
    %1312 = vmatprep.subr.mxu0 0.0
    %1313 = vmatpush1.msra.mxu0 %v1165
    %1314 = vmatprep.subr.mxu0 0.0
    %1315 = vmatpush1.msra.mxu0 %v1166
    %1316 = vmatprep.subr.mxu0 0.0
    %1317 = vmatpush1.msra.mxu0 %v1167
    %1318 = vmatprep.subr.mxu0 0.0
    %1319 = vmatpush1.msra.mxu0 %v1168
    %1320 = vmatprep.subr.mxu0 0.0
    %1321 = vmatpush1.msra.mxu0 %v1169
    %1322 = vmatprep.subr.mxu0 0.0
    %1323 = vmatpush1.msra.mxu0 %v1170
    %1324 = vmatprep.subr.mxu0 0.0
    %1325 = vmatpush1.msra.mxu0 %v1171
    %1326 = vmatprep.subr.mxu0 0.0
    %1327 = vmatpush1.msra.mxu0 %v1172
    %1328 = vmatprep.subr.mxu0 0.0
    %1329 = vmatpush1.msra.mxu0 %v1173
    %1330 = vmatprep.subr.mxu0 0.0
    %1331 = vmatpush1.msra.mxu0 0.0
    %1332 = vmatprep.subr.mxu0 0.0
    %1333 = vmatpush1.msra.mxu0 0.0
    %1334 = vmatprep.subr.mxu0 0.0
    %1335 = vmatpush1.msra.mxu0 0.0
    %1336 = vmatprep.subr.mxu0 0.0
    %1337 = vmatpush1.msra.mxu0 0.0
    %1338 = vmatprep.mubr.f32.mxu0 %v894
    %1339 = vmatmul.mubr.f32.gmra.mrb[0].mxu0 %v806
    %v1340 = vpop.f32.mrb[0].mxu0
    %v1341 = vadd.f32 %v1241, %v1340
    %v1342 = vpop.f32.mrb[0].mxu0
    %1343 = vmatprep.mubr.f32.mxu0 %v897
    %1344 = vmatmul.mubr.f32.gmra.mrb[0].mxu0 %v810
    %v1345 = vpop.f32.mrb[0].mxu0
    %v1346 = vadd.f32 %v1246, %v1345
    %v1347 = vpop.f32.mrb[0].mxu0
    %1348 = vmatprep.mubr.f32.mxu0 %v900
    %1349 = vmatmul.mubr.f32.gmra.mrb[0].mxu0 %v814
    %v1350 = vpop.f32.mrb[0].mxu0
    %v1351 = vadd.f32 %v1251, %v1350
    %v1352 = vpop.f32.mrb[0].mxu0
    %1353 = vmatprep.mubr.f32.mxu0 %v903
    %1354 = vmatmul.mubr.f32.gmra.mrb[0].mxu0 %v818
    %v1355 = vpop.f32.mrb[0].mxu0
    %v1356 = vadd.f32 %v1256, %v1355
    %v1357 = vpop.f32.mrb[0].mxu0
    %1358 = vmatprep.mubr.f32.mxu0 %v906
    %1359 = vmatmul.mubr.f32.gmra.mrb[0].mxu0 %v822
    %v1360 = vpop.f32.mrb[0].mxu0
    %v1361 = vadd.f32 %v1261, %v1360
    %v1362 = vpop.f32.mrb[0].mxu0
    %1363 = vmatprep.mubr.f32.mxu0 %v909
    %1364 = vmatmul.mubr.f32.gmra.mrb[0].mxu0 %v826
    %v1365 = vpop.f32.mrb[0].mxu0
    %v1366 = vadd.f32 %v1266, %v1365
    %v1367 = vpop.f32.mrb[0].mxu0
    %1368 = vmatprep.mubr.f32.mxu0 %v912
    %1369 = vmatmul.mubr.f32.gmra.mrb[0].mxu0 %v830
    %v1370 = vpop.f32.mrb[0].mxu0
    %v1371 = vadd.f32 %v1271, %v1370
    %v1372 = vpop.f32.mrb[0].mxu0
    %1373 = vdwg.mxu0
    %v1374 = vmax.f32 %v1081, %v1341
    %v1375 = vmax.f32 %v1086, %v1346
    %v1376 = vmax.f32 %v1091, %v1351
    %v1377 = vmax.f32 %v1096, %v1356
    %v1378 = vmax.f32 %v1101, %v1361
    %v1379 = vmax.f32 %v1106, %v1366
    %v1380 = vmax.f32 %v1111, %v1371
    %v1381 = vld [vmem:[%s3] sm:$0xff]
    %v1382 = vld [vmem:[%s3 + $0x8] sm:$0xff]
    %v1383 = vld [vmem:[%s3 + $0x10] sm:$0xff]
    %v1384 = vld [vmem:[%s3 + $0x18] sm:$0xf]
    %vm1385 = vcmask 457728
    %v1387 = vsel %vm1385, %v1381, 0
    %v1390 = vsel %vm1385, %v1382, 0
    %v1393 = vsel %vm1385, %v1383, 0
    %v1396 = vsel %vm1385, %v1384, 0
    %1398 = vmatprep.subr.mxu0 0.0
    %1399 = vmatpush1.msra.mxu0 %v1374
    %1400 = vmatprep.subr.mxu0 0.0
    %1401 = vmatpush1.msra.mxu0 %v1375
    %1402 = vmatprep.subr.mxu0 0.0
    %1403 = vmatpush1.msra.mxu0 %v1376
    %1404 = vmatprep.subr.mxu0 0.0
    %1405 = vmatpush1.msra.mxu0 %v1377
    %1406 = vmatprep.subr.mxu0 0.0
    %1407 = vmatpush1.msra.mxu0 %v1378
    %1408 = vmatprep.subr.mxu0 0.0
    %1409 = vmatpush1.msra.mxu0 %v1379
    %1410 = vmatprep.subr.mxu0 0.0
    %1411 = vmatpush1.msra.mxu0 %v1380
    %1412 = vmatprep.subr.mxu0 0.0
    %1413 = vmatpush1.msra.mxu0 0.0
    %1414 = vmatprep.subr.mxu0 0.0
    %1415 = vmatpush1.msra.mxu0 0.0
    %1416 = vmatprep.subr.mxu0 0.0
    %1417 = vmatpush1.msra.mxu0 0.0
    %1418 = vmatprep.subr.mxu0 0.0
    %1419 = vmatpush1.msra.mxu0 0.0
    %1420 = vmatprep.subr.mxu0 0.0
    %1421 = vmatpush1.msra.mxu0 0.0
    %1422 = vmatprep.subr.mxu0 0.0
    %1423 = vmatpush1.msra.mxu0 0.0
    %1424 = vmatprep.subr.mxu0 0.0
    %1425 = vmatpush1.msra.mxu0 0.0
    %1426 = vmatprep.subr.mxu0 0.0
    %1427 = vmatpush1.msra.mxu0 0.0
    %1428 = vmatprep.subr.mxu0 0.0
    %1429 = vmatpush1.msra.mxu0 0.0
    %1430 = vmatprep.subr.mxu0 0.0
    %1431 = vmatpush1.msra.mxu0 0.0
    %1432 = vmatprep.subr.mxu0 0.0
    %1433 = vmatpush1.msra.mxu0 0.0
    %1434 = vmatprep.subr.mxu0 0.0
    %1435 = vmatpush1.msra.mxu0 0.0
    %1436 = vmatprep.subr.mxu0 0.0
    %1437 = vmatpush1.msra.mxu0 0.0
    %1438 = vmatprep.subr.mxu0 0.0
    %1439 = vmatpush1.msra.mxu0 0.0
    %1440 = vmatprep.subr.mxu0 0.0
    %1441 = vmatpush1.msra.mxu0 0.0
    %1442 = vmatprep.subr.mxu0 0.0
    %1443 = vmatpush1.msra.mxu0 0.0
    %1444 = vmatprep.subr.mxu0 0.0
    %1445 = vmatpush1.msra.mxu0 0.0
    %1446 = vmatprep.subr.mxu0 0.0
    %1447 = vmatpush1.msra.mxu0 0.0
    %1448 = vmatprep.subr.mxu0 0.0
    %1449 = vmatpush1.msra.mxu0 0.0
    %1450 = vmatprep.subr.mxu0 0.0
    %1451 = vmatpush1.msra.mxu0 0.0
    %1452 = vmatprep.subr.mxu0 0.0
    %1453 = vmatpush1.msra.mxu0 0.0
    %1454 = vmatprep.subr.mxu0 0.0
    %1455 = vmatpush1.msra.mxu0 0.0
    %1456 = vmatprep.subr.mxu0 0.0
    %1457 = vmatpush1.msra.mxu0 0.0
    %1458 = vmatprep.subr.mxu0 0.0
    %1459 = vmatpush1.msra.mxu0 0.0
    %1460 = vmatprep.subr.mxu0 0.0
    %1461 = vmatpush1.msra.mxu0 0.0
    %1462 = vmatprep.mubr.f32.mxu0 0.0
    %1463 = vmatmul.mubr.f32.gmra.mrb[0].mxu0 %v1387
    %v1464 = vpop.f32.mrb[0].mxu0
    %v1465 = vadd.f32 0.0, %v1464
    %v1466 = vpop.f32.mrb[0].mxu0
    %1467 = vmatprep.mubr.f32.mxu0 0.0
    %1468 = vmatmul.mubr.f32.gmra.mrb[0].mxu0 %v1390
    %v1469 = vpop.f32.mrb[0].mxu0
    %v1470 = vadd.f32 0.0, %v1469
    %v1471 = vpop.f32.mrb[0].mxu0
    %1472 = vmatprep.mubr.f32.mxu0 0.0
    %1473 = vmatmul.mubr.f32.gmra.mrb[0].mxu0 %v1393
    %v1474 = vpop.f32.mrb[0].mxu0
    %v1475 = vadd.f32 0.0, %v1474
    %v1476 = vpop.f32.mrb[0].mxu0
    %1477 = vmatprep.mubr.f32.mxu0 0.0
    %1478 = vmatmul.mubr.f32.gmra.mrb[0].mxu0 %v1396
    %v1479 = vpop.f32.mrb[0].mxu0
    %v1480 = vadd.f32 0.0, %v1479
    %v1481 = vpop.f32.mrb[0].mxu0
    %1482 = vdwg.mxu0
    %v1483 = vld [vmem:[%s4] sm:$0xff]
    %v1484 = vld [vmem:[%s4 + $0x8] sm:$0xff]
    %v1485 = vld [vmem:[%s4 + $0x10] sm:$0xff]
    %v1486 = vld [vmem:[%s4 + $0x18] sm:$0xf]
    %v1488 = vsel %vm1385, %v1483, 0
    %v1491 = vsel %vm1385, %v1484, 0
    %v1494 = vsel %vm1385, %v1485, 0
    %v1497 = vsel %vm1385, %v1486, 0
    %1499 = vmatprep.subr.mxu0 0.0
    %1500 = vmatpush1.msra.mxu0 %v1374
    %1501 = vmatprep.subr.mxu0 0.0
    %1502 = vmatpush1.msra.mxu0 %v1375
    %1503 = vmatprep.subr.mxu0 0.0
    %1504 = vmatpush1.msra.mxu0 %v1376
    %1505 = vmatprep.subr.mxu0 0.0
    %1506 = vmatpush1.msra.mxu0 %v1377
    %1507 = vmatprep.subr.mxu0 0.0
    %1508 = vmatpush1.msra.mxu0 %v1378
    %1509 = vmatprep.subr.mxu0 0.0
    %1510 = vmatpush1.msra.mxu0 %v1379
    %1511 = vmatprep.subr.mxu0 0.0
    %1512 = vmatpush1.msra.mxu0 %v1380
    %1513 = vmatprep.subr.mxu0 0.0
    %1514 = vmatpush1.msra.mxu0 0.0
    %1515 = vmatprep.subr.mxu0 0.0
    %1516 = vmatpush1.msra.mxu0 0.0
    %1517 = vmatprep.subr.mxu0 0.0
    %1518 = vmatpush1.msra.mxu0 0.0
    %1519 = vmatprep.subr.mxu0 0.0
    %1520 = vmatpush1.msra.mxu0 0.0
    %1521 = vmatprep.subr.mxu0 0.0
    %1522 = vmatpush1.msra.mxu0 0.0
    %1523 = vmatprep.subr.mxu0 0.0
    %1524 = vmatpush1.msra.mxu0 0.0
    %1525 = vmatprep.subr.mxu0 0.0
    %1526 = vmatpush1.msra.mxu0 0.0
    %1527 = vmatprep.subr.mxu0 0.0
    %1528 = vmatpush1.msra.mxu0 0.0
    %1529 = vmatprep.subr.mxu0 0.0
    %1530 = vmatpush1.msra.mxu0 0.0
    %1531 = vmatprep.subr.mxu0 0.0
    %1532 = vmatpush1.msra.mxu0 0.0
    %1533 = vmatprep.subr.mxu0 0.0
    %1534 = vmatpush1.msra.mxu0 0.0
    %1535 = vmatprep.subr.mxu0 0.0
    %1536 = vmatpush1.msra.mxu0 0.0
    %1537 = vmatprep.subr.mxu0 0.0
    %1538 = vmatpush1.msra.mxu0 0.0
    %1539 = vmatprep.subr.mxu0 0.0
    %1540 = vmatpush1.msra.mxu0 0.0
    %1541 = vmatprep.subr.mxu0 0.0
    %1542 = vmatpush1.msra.mxu0 0.0
    %1543 = vmatprep.subr.mxu0 0.0
    %1544 = vmatpush1.msra.mxu0 0.0
    %1545 = vmatprep.subr.mxu0 0.0
    %1546 = vmatpush1.msra.mxu0 0.0
    %1547 = vmatprep.subr.mxu0 0.0
    %1548 = vmatpush1.msra.mxu0 0.0
    %1549 = vmatprep.subr.mxu0 0.0
    %1550 = vmatpush1.msra.mxu0 0.0
    %1551 = vmatprep.subr.mxu0 0.0
    %1552 = vmatpush1.msra.mxu0 0.0
    %1553 = vmatprep.subr.mxu0 0.0
    %1554 = vmatpush1.msra.mxu0 0.0
    %1555 = vmatprep.subr.mxu0 0.0
    %1556 = vmatpush1.msra.mxu0 0.0
    %1557 = vmatprep.subr.mxu0 0.0
    %1558 = vmatpush1.msra.mxu0 0.0
    %1559 = vmatprep.subr.mxu0 0.0
    %1560 = vmatpush1.msra.mxu0 0.0
    %1561 = vmatprep.subr.mxu0 0.0
    %1562 = vmatpush1.msra.mxu0 0.0
    %1563 = vmatprep.mubr.f32.mxu0 0.0
    %1564 = vmatmul.mubr.f32.gmra.mrb[0].mxu0 %v1488
    %v1565 = vpop.f32.mrb[0].mxu0
    %v1566 = vadd.f32 0.0, %v1565
    %v1567 = vpop.f32.mrb[0].mxu0
    %1568 = vmatprep.mubr.f32.mxu0 0.0
    %1569 = vmatmul.mubr.f32.gmra.mrb[0].mxu0 %v1491
    %v1570 = vpop.f32.mrb[0].mxu0
    %v1571 = vadd.f32 0.0, %v1570
    %v1572 = vpop.f32.mrb[0].mxu0
    %1573 = vmatprep.mubr.f32.mxu0 0.0
    %1574 = vmatmul.mubr.f32.gmra.mrb[0].mxu0 %v1494
    %v1575 = vpop.f32.mrb[0].mxu0
    %v1576 = vadd.f32 0.0, %v1575
    %v1577 = vpop.f32.mrb[0].mxu0
    %1578 = vmatprep.mubr.f32.mxu0 0.0
    %1579 = vmatmul.mubr.f32.gmra.mrb[0].mxu0 %v1497
    %v1580 = vpop.f32.mrb[0].mxu0
    %v1581 = vadd.f32 0.0, %v1580
    %v1582 = vpop.f32.mrb[0].mxu0
    %1583 = vdwg.mxu0
    %v1584 = vmax.f32 %v1465, %v1566
    %v1585 = vmax.f32 %v1470, %v1571
    %v1586 = vmax.f32 %v1475, %v1576
    %v1587 = vmax.f32 %v1480, %v1581
    %v1588 = vld [vmem:[%s5] sm:$0x1]
    %v1590 = vlaneseq
    %v1591 = vshrl.u32 %v1590, 7
    %v1592 = vsub.s32 0, %v1591
    %v1593 = vrot.slane %v1588, %v1592
    %v1595 = vadd.f32 %v1584, %v1593
    %v1596 = vadd.f32 %v1585, %v1593
    %v1597 = vadd.f32 %v1586, %v1593
    %v1598 = vadd.f32 %v1587, %v1593
    %v1599 = vmax.f32 %v1595, 0.0
    %v1600 = vmax.f32 %v1596, 0.0
    %v1601 = vmax.f32 %v1597, 0.0
    %v1602 = vmax.f32 %v1598, 0.0
    %vm1603 = vcmask 687104
    %1604 = vst.msk [vmem:[#allocation3] sm:$0xff] %vm1603, %v1599
    %1605 = vst.msk [vmem:[#allocation3 + $0x8] sm:$0xff] %vm1603, %v1600
    %1606 = vst.msk [vmem:[#allocation3 + $0x10] sm:$0xff] %vm1603, %v1601
    %vm1607 = vcmask 683008
    %1608 = vst.msk [vmem:[#allocation3 + $0x18] sm:$0xf] %vm1607, %v1602
    %v1609 = vld [vmem:[#allocation3] sm:$0xff]
    %v1610 = vld [vmem:[#allocation3 + $0x8] sm:$0xff]
    %v1611 = vld [vmem:[#allocation3 + $0x10] sm:$0xf]
    %vm1612 = vcmask 113664
    %1613 = vst.msk [vmem:[#allocation4] sm:$0xff] %vm1612, %v1609
    %1614 = vst.msk [vmem:[#allocation4 + $0x20] sm:$0xff] %vm1612, %v1610
    %vm1615 = vcmask 109568
    %1616 = vst.msk [vmem:[#allocation4 + $0x40] sm:$0xf] %vm1615, %v1611
    %v1617 = vld [vmem:[#allocation3 + $0x2] sm:$0xff]
    %v1618 = vld [vmem:[#allocation3 + $0xa] sm:$0xff]
    %v1619 = vld [vmem:[#allocation3 + $0x12] sm:$0xf]
    %1623 = vrot.lane.b32.xlu0 %v1617, 14
    %v1624 = vpop.permute.xlu0 %1623
    %1625 = vrot.lane.b32.xlu0 %v1618, 14
    %v1626 = vpop.permute.xlu0 %1625
    %1627 = vrot.lane.b32.xlu0 %v1619, 14
    %v1628 = vpop.permute.xlu0 %1627
    %vm1632 = vcmask 228464
    %1633 = vst.msk [vmem:[#allocation4] sm:$0xff] %vm1632, %v1624
    %1634 = vst.msk [vmem:[#allocation4 + $0x20] sm:$0xff] %vm1632, %v1626
    %vm1635 = vcmask 224368
    %1636 = vst.msk [vmem:[#allocation4 + $0x40] sm:$0xf] %vm1635, %v1628
    %v1637 = vld [vmem:[#allocation3 + $0x4] sm:$0xff]
    %v1638 = vld [vmem:[#allocation3 + $0xc] sm:$0xff]
    %v1639 = vld [vmem:[#allocation3 + $0x14] sm:$0xf]
    %1643 = vrot.lane.b32.xlu0 %v1637, 28
    %v1644 = vpop.permute.xlu0 %1643
    %1645 = vrot.lane.b32.xlu0 %v1638, 28
    %v1646 = vpop.permute.xlu0 %1645
    %1647 = vrot.lane.b32.xlu0 %v1639, 28
    %v1648 = vpop.permute.xlu0 %1647
    %vm1652 = vcmask 343264
    %1653 = vst.msk [vmem:[#allocation4] sm:$0xff] %vm1652, %v1644
    %1654 = vst.msk [vmem:[#allocation4 + $0x20] sm:$0xff] %vm1652, %v1646
    %vm1655 = vcmask 339168
    %1656 = vst.msk [vmem:[#allocation4 + $0x40] sm:$0xf] %vm1655, %v1648
    %v1657 = vld [vmem:[#allocation3 + $0x6] sm:$0xff]
    %v1658 = vld [vmem:[#allocation3 + $0xe] sm:$0xff]
    %v1659 = vld [vmem:[#allocation3 + $0x16] sm:$0xf]
    %1663 = vrot.lane.b32.xlu0 %v1657, 42
    %v1664 = vpop.permute.xlu0 %1663
    %1665 = vrot.lane.b32.xlu0 %v1658, 42
    %v1666 = vpop.permute.xlu0 %1665
    %1667 = vrot.lane.b32.xlu0 %v1659, 42
    %v1668 = vpop.permute.xlu0 %1667
    %vm1672 = vcmask 458064
    %1673 = vst.msk [vmem:[#allocation4] sm:$0xff] %vm1672, %v1664
    %1674 = vst.msk [vmem:[#allocation4 + $0x20] sm:$0xff] %vm1672, %v1666
    %vm1675 = vcmask 453968
    %1676 = vst.msk [vmem:[#allocation4 + $0x40] sm:$0xf] %vm1675, %v1668
    %v1677 = vld [vmem:[#allocation3 + $0x8] sm:$0xff]
    %v1678 = vld [vmem:[#allocation3 + $0x10] sm:$0xff]
    %v1679 = vld [vmem:[#allocation3 + $0x18] sm:$0xf]
    %1683 = vrot.lane.b32.xlu0 %v1677, 56
    %v1684 = vpop.permute.xlu0 %1683
    %1685 = vrot.lane.b32.xlu0 %v1678, 56
    %v1686 = vpop.permute.xlu0 %1685
    %1687 = vrot.lane.b32.xlu0 %v1679, 56
    %v1688 = vpop.permute.xlu0 %1687
    %vm1692 = vcmask 572864
    %1693 = vst.msk [vmem:[#allocation4] sm:$0xff] %vm1692, %v1684
    %1694 = vst.msk [vmem:[#allocation4 + $0x20] sm:$0xff] %vm1692, %v1686
    %vm1695 = vcmask 568768
    %1696 = vst.msk [vmem:[#allocation4 + $0x40] sm:$0xf] %vm1695, %v1688
    %v1697 = vld [vmem:[#allocation3] sm:$0xff]
    %v1698 = vld [vmem:[#allocation3 + $0x8] sm:$0xff]
    %v1699 = vld [vmem:[#allocation3 + $0x10] sm:$0xf]
    %1703 = vrot.lane.b32.xlu0 %v1697, 56
    %v1704 = vpop.permute.xlu0 %1703
    %1705 = vrot.lane.b32.xlu0 %v1698, 56
    %v1706 = vpop.permute.xlu0 %1705
    %1707 = vrot.lane.b32.xlu0 %v1699, 56
    %v1708 = vpop.permute.xlu0 %1707
    %vm1712 = vcmask 687664
    %1713 = vst.msk [vmem:[#allocation4] sm:$0xff] %vm1712, %v1704
    %1714 = vst.msk [vmem:[#allocation4 + $0x20] sm:$0xff] %vm1712, %v1706
    %vm1715 = vcmask 683568
    %1716 = vst.msk [vmem:[#allocation4 + $0x40] sm:$0xf] %vm1715, %v1708
    %v1717 = vld [vmem:[#allocation3 + $0x2] sm:$0xff]
    %v1718 = vld [vmem:[#allocation3 + $0xa] sm:$0xff]
    %v1719 = vld [vmem:[#allocation3 + $0x12] sm:$0xf]
    %1723 = vrot.lane.b32.xlu0 %v1717, 70
    %v1724 = vpop.permute.xlu0 %1723
    %1725 = vrot.lane.b32.xlu0 %v1718, 70
    %v1726 = vpop.permute.xlu0 %1725
    %1727 = vrot.lane.b32.xlu0 %v1719, 70
    %v1728 = vpop.permute.xlu0 %1727
    %vm1732 = vcmask 802464
    %1733 = vst.msk [vmem:[#allocation4] sm:$0xff] %vm1732, %v1724
    %1734 = vst.msk [vmem:[#allocation4 + $0x20] sm:$0xff] %vm1732, %v1726
    %vm1735 = vcmask 798368
    %1736 = vst.msk [vmem:[#allocation4 + $0x40] sm:$0xf] %vm1735, %v1728
    %v1737 = vld [vmem:[#allocation3 + $0x4] sm:$0xff]
    %v1738 = vld [vmem:[#allocation3 + $0xc] sm:$0xff]
    %v1739 = vld [vmem:[#allocation3 + $0x14] sm:$0xf]
    %1743 = vrot.lane.b32.xlu0 %v1737, 84
    %v1744 = vpop.permute.xlu0 %1743
    %1745 = vrot.lane.b32.xlu0 %v1738, 84
    %v1746 = vpop.permute.xlu0 %1745
    %1747 = vrot.lane.b32.xlu0 %v1739, 84
    %v1748 = vpop.permute.xlu0 %1747
    %vm1752 = vcmask 917264
    %1753 = vst.msk [vmem:[#allocation4] sm:$0xff] %vm1752, %v1744
    %1754 = vst.msk [vmem:[#allocation4 + $0x20] sm:$0xff] %vm1752, %v1746
    %vm1755 = vcmask 913168
    %1756 = vst.msk [vmem:[#allocation4 + $0x40] sm:$0xf] %vm1755, %v1748
    %v1757 = vld [vmem:[#allocation3 + $0x6] sm:$0xff]
    %v1758 = vld [vmem:[#allocation3 + $0xe] sm:$0xff]
    %v1759 = vld [vmem:[#allocation3 + $0x16] sm:$0xf]
    %1763 = vrot.lane.b32.xlu0 %v1757, 98
    %v1764 = vpop.permute.xlu0 %1763
    %1765 = vrot.lane.b32.xlu0 %v1758, 98
    %v1766 = vpop.permute.xlu0 %1765
    %1767 = vrot.lane.b32.xlu0 %v1759, 98
    %v1768 = vpop.permute.xlu0 %1767
    %vm1772 = vcmask 1032064
    %1773 = vst.msk [vmem:[#allocation4] sm:$0xff] %vm1772, %v1764
    %1774 = vst.msk [vmem:[#allocation4 + $0x20] sm:$0xff] %vm1772, %v1766
    %vm1775 = vcmask 1027968
    %1776 = vst.msk [vmem:[#allocation4 + $0x40] sm:$0xf] %vm1775, %v1768
    %v1777 = vld [vmem:[#allocation3 + $0x8] sm:$0xff]
    %v1778 = vld [vmem:[#allocation3 + $0x10] sm:$0xff]
    %v1779 = vld [vmem:[#allocation3 + $0x18] sm:$0xf]
    %1783 = vrot.lane.b32.xlu0 %v1777, 112
    %v1784 = vpop.permute.xlu0 %1783
    %1785 = vrot.lane.b32.xlu0 %v1778, 112
    %v1786 = vpop.permute.xlu0 %1785
    %1787 = vrot.lane.b32.xlu0 %v1779, 112
    %v1788 = vpop.permute.xlu0 %1787
    %vm1792 = vcmask 1048560
    %1793 = vst.msk [vmem:[#allocation4] sm:$0xff] %vm1792, %v1784
    %vm1794 = vcmask 97280
    %1795 = vst.msk [vmem:[#allocation4 + $0x8] sm:$0xff] %vm1794, %v1784
    %1796 = vst.msk [vmem:[#allocation4 + $0x20] sm:$0xff] %vm1792, %v1786
    %1797 = vst.msk [vmem:[#allocation4 + $0x28] sm:$0xff] %vm1794, %v1786
    %vm1798 = vcmask 1044464
    %1799 = vst.msk [vmem:[#allocation4 + $0x40] sm:$0xf] %vm1798, %v1788
    %vm1800 = vcmask 93184
    %1801 = vst.msk [vmem:[#allocation4 + $0x48] sm:$0xf] %vm1800, %v1788
    %v1802 = vld [vmem:[#allocation3] sm:$0xff]
    %v1803 = vld [vmem:[#allocation3 + $0x8] sm:$0xff]
    %v1804 = vld [vmem:[#allocation3 + $0x10] sm:$0xf]
    %1808 = vrot.lane.b32.xlu0 %v1802, 112
    %v1809 = vpop.permute.xlu0 %1808
    %1810 = vrot.lane.b32.xlu0 %v1803, 112
    %v1811 = vpop.permute.xlu0 %1810
    %1812 = vrot.lane.b32.xlu0 %v1804, 112
    %v1813 = vpop.permute.xlu0 %1812
    %vm1817 = vcmask 212064
    %1818 = vst.msk [vmem:[#allocation4 + $0x8] sm:$0xff] %vm1817, %v1809
    %1819 = vst.msk [vmem:[#allocation4 + $0x28] sm:$0xff] %vm1817, %v1811
    %vm1820 = vcmask 207968
    %1821 = vst.msk [vmem:[#allocation4 + $0x48] sm:$0xf] %vm1820, %v1813
    %v1822 = vld [vmem:[#allocation3 + $0x2] sm:$0xff]
    %v1823 = vld [vmem:[#allocation3 + $0xa] sm:$0xff]
    %v1824 = vld [vmem:[#allocation3 + $0x12] sm:$0xf]
    %1828 = vrot.lane.b32.xlu0 %v1822, 126
    %v1829 = vpop.permute.xlu0 %1828
    %1830 = vrot.lane.b32.xlu0 %v1823, 126
    %v1831 = vpop.permute.xlu0 %1830
    %1832 = vrot.lane.b32.xlu0 %v1824, 126
    %v1833 = vpop.permute.xlu0 %1832
    %vm1837 = vcmask 326864
    %1838 = vst.msk [vmem:[#allocation4 + $0x8] sm:$0xff] %vm1837, %v1829
    %1839 = vst.msk [vmem:[#allocation4 + $0x28] sm:$0xff] %vm1837, %v1831
    %vm1840 = vcmask 322768
    %1841 = vst.msk [vmem:[#allocation4 + $0x48] sm:$0xf] %vm1840, %v1833
    %v1842 = vld [vmem:[#allocation3 + $0x4] sm:$0xff]
    %v1843 = vld [vmem:[#allocation3 + $0xc] sm:$0xff]
    %v1844 = vld [vmem:[#allocation3 + $0x14] sm:$0xf]
    %1848 = vrot.lane.b32.xlu0 %v1842, 12
    %v1849 = vpop.permute.xlu0 %1848
    %1850 = vrot.lane.b32.xlu0 %v1843, 12
    %v1851 = vpop.permute.xlu0 %1850
    %1852 = vrot.lane.b32.xlu0 %v1844, 12
    %v1853 = vpop.permute.xlu0 %1852
    %vm1857 = vcmask 441664
    %1858 = vst.msk [vmem:[#allocation4 + $0x8] sm:$0xff] %vm1857, %v1849
    %1859 = vst.msk [vmem:[#allocation4 + $0x28] sm:$0xff] %vm1857, %v1851
    %vm1860 = vcmask 437568
    %1861 = vst.msk [vmem:[#allocation4 + $0x48] sm:$0xf] %vm1860, %v1853
    %v1862 = vld [vmem:[#allocation3 + $0x6] sm:$0xff]
    %v1863 = vld [vmem:[#allocation3 + $0xe] sm:$0xff]
    %v1864 = vld [vmem:[#allocation3 + $0x16] sm:$0xf]
    %1868 = vrot.lane.b32.xlu0 %v1862, 26
    %v1869 = vpop.permute.xlu0 %1868
    %1870 = vrot.lane.b32.xlu0 %v1863, 26
    %v1871 = vpop.permute.xlu0 %1870
    %1872 = vrot.lane.b32.xlu0 %v1864, 26
    %v1873 = vpop.permute.xlu0 %1872
    %vm1877 = vcmask 556464
    %1878 = vst.msk [vmem:[#allocation4 + $0x8] sm:$0xff] %vm1877, %v1869
    %1879 = vst.msk [vmem:[#allocation4 + $0x28] sm:$0xff] %vm1877, %v1871
    %vm1880 = vcmask 552368
    %1881 = vst.msk [vmem:[#allocation4 + $0x48] sm:$0xf] %vm1880, %v1873
    %v1882 = vld [vmem:[#allocation3 + $0x8] sm:$0xff]
    %v1883 = vld [vmem:[#allocation3 + $0x10] sm:$0xff]
    %v1884 = vld [vmem:[#allocation3 + $0x18] sm:$0xf]
    %1888 = vrot.lane.b32.xlu0 %v1882, 40
    %v1889 = vpop.permute.xlu0 %1888
    %1890 = vrot.lane.b32.xlu0 %v1883, 40
    %v1891 = vpop.permute.xlu0 %1890
    %1892 = vrot.lane.b32.xlu0 %v1884, 40
    %v1893 = vpop.permute.xlu0 %1892
    %vm1897 = vcmask 671264
    %1898 = vst.msk [vmem:[#allocation4 + $0x8] sm:$0xff] %vm1897, %v1889
    %1899 = vst.msk [vmem:[#allocation4 + $0x28] sm:$0xff] %vm1897, %v1891
    %vm1900 = vcmask 667168
    %1901 = vst.msk [vmem:[#allocation4 + $0x48] sm:$0xf] %vm1900, %v1893
    %v1902 = vld [vmem:[#allocation3] sm:$0xff]
    %v1903 = vld [vmem:[#allocation3 + $0x8] sm:$0xff]
    %v1904 = vld [vmem:[#allocation3 + $0x10] sm:$0xf]
    %1908 = vrot.lane.b32.xlu0 %v1902, 40
    %v1909 = vpop.permute.xlu0 %1908
    %1910 = vrot.lane.b32.xlu0 %v1903, 40
    %v1911 = vpop.permute.xlu0 %1910
    %1912 = vrot.lane.b32.xlu0 %v1904, 40
    %v1913 = vpop.permute.xlu0 %1912
    %vm1917 = vcmask 786064
    %1918 = vst.msk [vmem:[#allocation4 + $0x8] sm:$0xff] %vm1917, %v1909
    %1919 = vst.msk [vmem:[#allocation4 + $0x28] sm:$0xff] %vm1917, %v1911
    %vm1920 = vcmask 781968
    %1921 = vst.msk [vmem:[#allocation4 + $0x48] sm:$0xf] %vm1920, %v1913
    %v1922 = vld [vmem:[#allocation3 + $0x2] sm:$0xff]
    %v1923 = vld [vmem:[#allocation3 + $0xa] sm:$0xff]
    %v1924 = vld [vmem:[#allocation3 + $0x12] sm:$0xf]
    %1928 = vrot.lane.b32.xlu0 %v1922, 54
    %v1929 = vpop.permute.xlu0 %1928
    %1930 = vrot.lane.b32.xlu0 %v1923, 54
    %v1931 = vpop.permute.xlu0 %1930
    %1932 = vrot.lane.b32.xlu0 %v1924, 54
    %v1933 = vpop.permute.xlu0 %1932
    %vm1937 = vcmask 900864
    %1938 = vst.msk [vmem:[#allocation4 + $0x8] sm:$0xff] %vm1937, %v1929
    %1939 = vst.msk [vmem:[#allocation4 + $0x28] sm:$0xff] %vm1937, %v1931
    %vm1940 = vcmask 896768
    %1941 = vst.msk [vmem:[#allocation4 + $0x48] sm:$0xf] %vm1940, %v1933
    %v1942 = vld [vmem:[#allocation3 + $0x4] sm:$0xff]
    %v1943 = vld [vmem:[#allocation3 + $0xc] sm:$0xff]
    %v1944 = vld [vmem:[#allocation3 + $0x14] sm:$0xf]
    %1948 = vrot.lane.b32.xlu0 %v1942, 68
    %v1949 = vpop.permute.xlu0 %1948
    %1950 = vrot.lane.b32.xlu0 %v1943, 68
    %v1951 = vpop.permute.xlu0 %1950
    %1952 = vrot.lane.b32.xlu0 %v1944, 68
    %v1953 = vpop.permute.xlu0 %1952
    %vm1957 = vcmask 1015664
    %1958 = vst.msk [vmem:[#allocation4 + $0x8] sm:$0xff] %vm1957, %v1949
    %1959 = vst.msk [vmem:[#allocation4 + $0x28] sm:$0xff] %vm1957, %v1951
    %vm1960 = vcmask 1011568
    %1961 = vst.msk [vmem:[#allocation4 + $0x48] sm:$0xf] %vm1960, %v1953
    %v1962 = vld [vmem:[#allocation3 + $0x6] sm:$0xff]
    %v1963 = vld [vmem:[#allocation3 + $0xe] sm:$0xff]
    %v1964 = vld [vmem:[#allocation3 + $0x16] sm:$0xf]
    %1968 = vrot.lane.b32.xlu0 %v1962, 82
    %v1969 = vpop.permute.xlu0 %1968
    %1970 = vrot.lane.b32.xlu0 %v1963, 82
    %v1971 = vpop.permute.xlu0 %1970
    %1972 = vrot.lane.b32.xlu0 %v1964, 82
    %v1973 = vpop.permute.xlu0 %1972
    %vm1977 = vcmask 1048544
    %1978 = vst.msk [vmem:[#allocation4 + $0x8] sm:$0xff] %vm1977, %v1969
    %vm1979 = vcmask 80896
    %1980 = vst.msk [vmem:[#allocation4 + $0x10] sm:$0xff] %vm1979, %v1969
    %1981 = vst.msk [vmem:[#allocation4 + $0x28] sm:$0xff] %vm1977, %v1971
    %1982 = vst.msk [vmem:[#allocation4 + $0x30] sm:$0xff] %vm1979, %v1971
    %vm1983 = vcmask 1044448
    %1984 = vst.msk [vmem:[#allocation4 + $0x48] sm:$0xf] %vm1983, %v1973
    %vm1985 = vcmask 76800
    %1986 = vst.msk [vmem:[#allocation4 + $0x50] sm:$0xf] %vm1985, %v1973
    %v1987 = vld [vmem:[#allocation3 + $0x8] sm:$0xff]
    %v1988 = vld [vmem:[#allocation3 + $0x10] sm:$0xff]
    %v1989 = vld [vmem:[#allocation3 + $0x18] sm:$0xf]
    %1993 = vrot.lane.b32.xlu0 %v1987, 96
    %v1994 = vpop.permute.xlu0 %1993
    %1995 = vrot.lane.b32.xlu0 %v1988, 96
    %v1996 = vpop.permute.xlu0 %1995
    %1997 = vrot.lane.b32.xlu0 %v1989, 96
    %v1998 = vpop.permute.xlu0 %1997
    %vm2002 = vcmask 195664
    %2003 = vst.msk [vmem:[#allocation4 + $0x10] sm:$0xff] %vm2002, %v1994
    %2004 = vst.msk [vmem:[#allocation4 + $0x30] sm:$0xff] %vm2002, %v1996
    %vm2005 = vcmask 191568
    %2006 = vst.msk [vmem:[#allocation4 + $0x50] sm:$0xf] %vm2005, %v1998
    %v2007 = vld [vmem:[#allocation3] sm:$0xff]
    %v2008 = vld [vmem:[#allocation3 + $0x8] sm:$0xff]
    %v2009 = vld [vmem:[#allocation3 + $0x10] sm:$0xf]
    %2013 = vrot.lane.b32.xlu0 %v2007, 96
    %v2014 = vpop.permute.xlu0 %2013
    %2015 = vrot.lane.b32.xlu0 %v2008, 96
    %v2016 = vpop.permute.xlu0 %2015
    %2017 = vrot.lane.b32.xlu0 %v2009, 96
    %v2018 = vpop.permute.xlu0 %2017
    %vm2022 = vcmask 310464
    %2023 = vst.msk [vmem:[#allocation4 + $0x10] sm:$0xff] %vm2022, %v2014
    %2024 = vst.msk [vmem:[#allocation4 + $0x30] sm:$0xff] %vm2022, %v2016
    %vm2025 = vcmask 306368
    %2026 = vst.msk [vmem:[#allocation4 + $0x50] sm:$0xf] %vm2025, %v2018
    %v2027 = vld [vmem:[#allocation3 + $0x2] sm:$0xff]
    %v2028 = vld [vmem:[#allocation3 + $0xa] sm:$0xff]
    %v2029 = vld [vmem:[#allocation3 + $0x12] sm:$0xf]
    %2033 = vrot.lane.b32.xlu0 %v2027, 110
    %v2034 = vpop.permute.xlu0 %2033
    %2035 = vrot.lane.b32.xlu0 %v2028, 110
    %v2036 = vpop.permute.xlu0 %2035
    %2037 = vrot.lane.b32.xlu0 %v2029, 110
    %v2038 = vpop.permute.xlu0 %2037
    %vm2042 = vcmask 425264
    %2043 = vst.msk [vmem:[#allocation4 + $0x10] sm:$0xff] %vm2042, %v2034
    %2044 = vst.msk [vmem:[#allocation4 + $0x30] sm:$0xff] %vm2042, %v2036
    %vm2045 = vcmask 421168
    %2046 = vst.msk [vmem:[#allocation4 + $0x50] sm:$0xf] %vm2045, %v2038
    %v2047 = vld [vmem:[#allocation3 + $0x4] sm:$0xff]
    %v2048 = vld [vmem:[#allocation3 + $0xc] sm:$0xff]
    %v2049 = vld [vmem:[#allocation3 + $0x14] sm:$0xf]
    %2053 = vrot.lane.b32.xlu0 %v2047, 124
    %v2054 = vpop.permute.xlu0 %2053
    %2055 = vrot.lane.b32.xlu0 %v2048, 124
    %v2056 = vpop.permute.xlu0 %2055
    %2057 = vrot.lane.b32.xlu0 %v2049, 124
    %v2058 = vpop.permute.xlu0 %2057
    %vm2062 = vcmask 540064
    %2063 = vst.msk [vmem:[#allocation4 + $0x10] sm:$0xff] %vm2062, %v2054
    %2064 = vst.msk [vmem:[#allocation4 + $0x30] sm:$0xff] %vm2062, %v2056
    %vm2065 = vcmask 535968
    %2066 = vst.msk [vmem:[#allocation4 + $0x50] sm:$0xf] %vm2065, %v2058
    %v2067 = vld [vmem:[#allocation3 + $0x6] sm:$0xff]
    %v2068 = vld [vmem:[#allocation3 + $0xe] sm:$0xff]
    %v2069 = vld [vmem:[#allocation3 + $0x16] sm:$0xf]
    %2073 = vrot.lane.b32.xlu0 %v2067, 10
    %v2074 = vpop.permute.xlu0 %2073
    %2075 = vrot.lane.b32.xlu0 %v2068, 10
    %v2076 = vpop.permute.xlu0 %2075
    %2077 = vrot.lane.b32.xlu0 %v2069, 10
    %v2078 = vpop.permute.xlu0 %2077
    %vm2082 = vcmask 654864
    %2083 = vst.msk [vmem:[#allocation4 + $0x10] sm:$0xff] %vm2082, %v2074
    %2084 = vst.msk [vmem:[#allocation4 + $0x30] sm:$0xff] %vm2082, %v2076
    %vm2085 = vcmask 650768
    %2086 = vst.msk [vmem:[#allocation4 + $0x50] sm:$0xf] %vm2085, %v2078
    %v2087 = vld [vmem:[#allocation3 + $0x8] sm:$0xff]
    %v2088 = vld [vmem:[#allocation3 + $0x10] sm:$0xff]
    %v2089 = vld [vmem:[#allocation3 + $0x18] sm:$0xf]
    %2093 = vrot.lane.b32.xlu0 %v2087, 24
    %v2094 = vpop.permute.xlu0 %2093
    %2095 = vrot.lane.b32.xlu0 %v2088, 24
    %v2096 = vpop.permute.xlu0 %2095
    %2097 = vrot.lane.b32.xlu0 %v2089, 24
    %v2098 = vpop.permute.xlu0 %2097
    %vm2102 = vcmask 769664
    %2103 = vst.msk [vmem:[#allocation4 + $0x10] sm:$0xff] %vm2102, %v2094
    %2104 = vst.msk [vmem:[#allocation4 + $0x30] sm:$0xff] %vm2102, %v2096
    %vm2105 = vcmask 765568
    %2106 = vst.msk [vmem:[#allocation4 + $0x50] sm:$0xf] %vm2105, %v2098
    %v2107 = vld [vmem:[#allocation3] sm:$0xff]
    %v2108 = vld [vmem:[#allocation3 + $0x8] sm:$0xff]
    %v2109 = vld [vmem:[#allocation3 + $0x10] sm:$0xf]
    %2113 = vrot.lane.b32.xlu0 %v2107, 24
    %v2114 = vpop.permute.xlu0 %2113
    %2115 = vrot.lane.b32.xlu0 %v2108, 24
    %v2116 = vpop.permute.xlu0 %2115
    %2117 = vrot.lane.b32.xlu0 %v2109, 24
    %v2118 = vpop.permute.xlu0 %2117
    %vm2122 = vcmask 884464
    %2123 = vst.msk [vmem:[#allocation4 + $0x10] sm:$0xff] %vm2122, %v2114
    %2124 = vst.msk [vmem:[#allocation4 + $0x30] sm:$0xff] %vm2122, %v2116
    %vm2125 = vcmask 880368
    %2126 = vst.msk [vmem:[#allocation4 + $0x50] sm:$0xf] %vm2125, %v2118
    %v2127 = vld [vmem:[#allocation3 + $0x2] sm:$0xff]
    %v2128 = vld [vmem:[#allocation3 + $0xa] sm:$0xff]
    %v2129 = vld [vmem:[#allocation3 + $0x12] sm:$0xf]
    %2133 = vrot.lane.b32.xlu0 %v2127, 38
    %v2134 = vpop.permute.xlu0 %2133
    %2135 = vrot.lane.b32.xlu0 %v2128, 38
    %v2136 = vpop.permute.xlu0 %2135
    %2137 = vrot.lane.b32.xlu0 %v2129, 38
    %v2138 = vpop.permute.xlu0 %2137
    %vm2142 = vcmask 999264
    %2143 = vst.msk [vmem:[#allocation4 + $0x10] sm:$0xff] %vm2142, %v2134
    %2144 = vst.msk [vmem:[#allocation4 + $0x30] sm:$0xff] %vm2142, %v2136
    %vm2145 = vcmask 995168
    %2146 = vst.msk [vmem:[#allocation4 + $0x50] sm:$0xf] %vm2145, %v2138
    %v2147 = vld [vmem:[#allocation3 + $0x4] sm:$0xff]
    %v2148 = vld [vmem:[#allocation3 + $0xc] sm:$0xff]
    %v2149 = vld [vmem:[#allocation3 + $0x14] sm:$0xf]
    %2153 = vrot.lane.b32.xlu0 %v2147, 52
    %v2154 = vpop.permute.xlu0 %2153
    %2155 = vrot.lane.b32.xlu0 %v2148, 52
    %v2156 = vpop.permute.xlu0 %2155
    %2157 = vrot.lane.b32.xlu0 %v2149, 52
    %v2158 = vpop.permute.xlu0 %2157
    %vm2162 = vcmask 1048528
    %2163 = vst.msk [vmem:[#allocation4 + $0x10] sm:$0xff] %vm2162, %v2154
    %vm2164 = vcmask 64512
    %2165 = vst.msk [vmem:[#allocation4 + $0x18] sm:$0xff] %vm2164, %v2154
    %2166 = vst.msk [vmem:[#allocation4 + $0x30] sm:$0xff] %vm2162, %v2156
    %2167 = vst.msk [vmem:[#allocation4 + $0x38] sm:$0xff] %vm2164, %v2156
    %vm2168 = vcmask 1044432
    %2169 = vst.msk [vmem:[#allocation4 + $0x50] sm:$0xf] %vm2168, %v2158
    %vm2170 = vcmask 60416
    %2171 = vst.msk [vmem:[#allocation4 + $0x58] sm:$0xf] %vm2170, %v2158
    %v2172 = vld [vmem:[#allocation3 + $0x6] sm:$0xff]
    %v2173 = vld [vmem:[#allocation3 + $0xe] sm:$0xff]
    %v2174 = vld [vmem:[#allocation3 + $0x16] sm:$0xf]
    %2178 = vrot.lane.b32.xlu0 %v2172, 66
    %v2179 = vpop.permute.xlu0 %2178
    %2180 = vrot.lane.b32.xlu0 %v2173, 66
    %v2181 = vpop.permute.xlu0 %2180
    %2182 = vrot.lane.b32.xlu0 %v2174, 66
    %v2183 = vpop.permute.xlu0 %2182
    %vm2187 = vcmask 179264
    %2188 = vst.msk [vmem:[#allocation4 + $0x18] sm:$0xff] %vm2187, %v2179
    %2189 = vst.msk [vmem:[#allocation4 + $0x38] sm:$0xff] %vm2187, %v2181
    %vm2190 = vcmask 175168
    %2191 = vst.msk [vmem:[#allocation4 + $0x58] sm:$0xf] %vm2190, %v2183
    %v2192 = vld [vmem:[#allocation3 + $0x8] sm:$0xff]
    %v2193 = vld [vmem:[#allocation3 + $0x10] sm:$0xff]
    %v2194 = vld [vmem:[#allocation3 + $0x18] sm:$0xf]
    %2198 = vrot.lane.b32.xlu0 %v2192, 80
    %v2199 = vpop.permute.xlu0 %2198
    %2200 = vrot.lane.b32.xlu0 %v2193, 80
    %v2201 = vpop.permute.xlu0 %2200
    %2202 = vrot.lane.b32.xlu0 %v2194, 80
    %v2203 = vpop.permute.xlu0 %2202
    %vm2207 = vcmask 294064
    %2208 = vst.msk [vmem:[#allocation4 + $0x18] sm:$0xff] %vm2207, %v2199
    %2209 = vst.msk [vmem:[#allocation4 + $0x38] sm:$0xff] %vm2207, %v2201
    %vm2210 = vcmask 289968
    %2211 = vst.msk [vmem:[#allocation4 + $0x58] sm:$0xf] %vm2210, %v2203
    %v2212 = vld [vmem:[#allocation4] sm:$0xff]
    %v2213 = vld [vmem:[#allocation4 + $0x8] sm:$0xff]
    %v2214 = vld [vmem:[#allocation4 + $0x10] sm:$0xff]
    %v2215 = vld [vmem:[#allocation4 + $0x18] sm:$0xff]
    %v2216 = vld [vmem:[#allocation4 + $0x20] sm:$0xff]
    %v2217 = vld [vmem:[#allocation4 + $0x28] sm:$0xff]
    %v2218 = vld [vmem:[#allocation4 + $0x30] sm:$0xff]
    %v2219 = vld [vmem:[#allocation4 + $0x38] sm:$0xff]
    %v2220 = vld [vmem:[#allocation4 + $0x40] sm:$0xf]
    %v2221 = vld [vmem:[#allocation4 + $0x48] sm:$0xf]
    %v2222 = vld [vmem:[#allocation4 + $0x50] sm:$0xf]
    %v2223 = vld [vmem:[#allocation4 + $0x58] sm:$0xf]
    %v2224 = vld [vmem:[%s6] sm:$0xff]
    %v2225 = vld [vmem:[%s6 + $0x8] sm:$0xff]
    %v2226 = vld [vmem:[%s6 + $0x10] sm:$0xff]
    %v2227 = vld [vmem:[%s6 + $0x18] sm:$0xff]
    %v2228 = vld [vmem:[%s6 + $0x20] sm:$0xff]
    %v2229 = vld [vmem:[%s6 + $0x28] sm:$0xff]
    %v2230 = vld [vmem:[%s6 + $0x30] sm:$0xff]
    %v2231 = vld [vmem:[%s6 + $0x38] sm:$0xff]
    %v2232 = vld [vmem:[%s6 + $0x40] sm:$0xff]
    %v2233 = vld [vmem:[%s6 + $0x48] sm:$0xff]
    %v2234 = vld [vmem:[%s6 + $0x50] sm:$0xff]
    %v2235 = vld [vmem:[%s6 + $0x58] sm:$0xff]
    %v2236 = vld [vmem:[%s6 + $0x60] sm:$0xff]
    %v2237 = vld [vmem:[%s6 + $0x68] sm:$0xff]
    %v2238 = vld [vmem:[%s6 + $0x70] sm:$0xff]
    %v2239 = vld [vmem:[%s6 + $0x78] sm:$0xff]
    %v2240 = vld [vmem:[%s6 + $0x80] sm:$0xff]
    %v2241 = vld [vmem:[%s6 + $0x88] sm:$0xff]
    %v2242 = vld [vmem:[%s6 + $0x90] sm:$0xff]
    %v2243 = vld [vmem:[%s6 + $0x98] sm:$0xff]
    %v2244 = vld [vmem:[%s6 + $0xa0] sm:$0xff]
    %v2245 = vld [vmem:[%s6 + $0xa8] sm:$0xff]
    %v2246 = vld [vmem:[%s6 + $0xb0] sm:$0xff]
    %v2247 = vld [vmem:[%s6 + $0xb8] sm:$0xff]
    %v2248 = vld [vmem:[%s6 + $0xc0] sm:$0xff]
    %v2249 = vld [vmem:[%s6 + $0xc8] sm:$0xff]
    %v2250 = vld [vmem:[%s6 + $0xd0] sm:$0xff]
    %v2251 = vld [vmem:[%s6 + $0xd8] sm:$0xff]
    %v2252 = vld [vmem:[%s6 + $0xe0] sm:$0xff]
    %v2253 = vld [vmem:[%s6 + $0xe8] sm:$0xff]
    %v2254 = vld [vmem:[%s6 + $0xf0] sm:$0xff]
    %v2255 = vld [vmem:[%s6 + $0xf8] sm:$0xff]
    %v2256 = vld [vmem:[%s6 + $0x100] sm:$0xff]
    %v2257 = vld [vmem:[%s6 + $0x108] sm:$0xff]
    %v2258 = vld [vmem:[%s6 + $0x110] sm:$0xff]
    %v2259 = vld [vmem:[%s6 + $0x118] sm:$0xff]
    %v2260 = vld [vmem:[%s6 + $0x120] sm:$0xff]
    %v2261 = vld [vmem:[%s6 + $0x128] sm:$0xff]
    %v2262 = vld [vmem:[%s6 + $0x130] sm:$0xff]
    %v2263 = vld [vmem:[%s6 + $0x138] sm:$0xff]
    %v2264 = vld [vmem:[%s6 + $0x140] sm:$0xff]
    %v2265 = vld [vmem:[%s6 + $0x148] sm:$0xff]
    %v2266 = vld [vmem:[%s6 + $0x150] sm:$0xff]
    %v2267 = vld [vmem:[%s6 + $0x158] sm:$0xff]
    %v2268 = vld [vmem:[%s6 + $0x160] sm:$0xff]
    %v2269 = vld [vmem:[%s6 + $0x168] sm:$0xff]
    %v2270 = vld [vmem:[%s6 + $0x170] sm:$0xff]
    %v2271 = vld [vmem:[%s6 + $0x178] sm:$0xff]
    %v2272 = vld [vmem:[%s6 + $0x180] sm:$0xff]
    %v2273 = vld [vmem:[%s6 + $0x188] sm:$0xff]
    %v2274 = vld [vmem:[%s6 + $0x190] sm:$0xff]
    %v2275 = vld [vmem:[%s6 + $0x198] sm:$0xff]
    %v2276 = vld [vmem:[%s6 + $0x1a0] sm:$0xf]
    %vm2277 = vcmask 293888
    %v2279 = vsel %vm2277, %v2215, 0
    %v2282 = vsel %vm2277, %v2219, 0
    %v2285 = vsel %vm2277, %v2223, 0
    %v2288 = vsel %vm372, %v2276, 0
    %2290 = vmatprep.subr.mxu0 0.0
    %2291 = vmatpush1.msra.mxu0 %v2224
    %2292 = vmatprep.subr.mxu0 0.0
    %2293 = vmatpush1.msra.mxu0 %v2225
    %2294 = vmatprep.subr.mxu0 0.0
    %2295 = vmatpush1.msra.mxu0 %v2226
    %2296 = vmatprep.subr.mxu0 0.0
    %2297 = vmatpush1.msra.mxu0 %v2227
    %2298 = vmatprep.subr.mxu0 0.0
    %2299 = vmatpush1.msra.mxu0 %v2228
    %2300 = vmatprep.subr.mxu0 0.0
    %2301 = vmatpush1.msra.mxu0 %v2229
    %2302 = vmatprep.subr.mxu0 0.0
    %2303 = vmatpush1.msra.mxu0 %v2230
    %2304 = vmatprep.subr.mxu0 0.0
    %2305 = vmatpush1.msra.mxu0 %v2231
    %2306 = vmatprep.subr.mxu0 0.0
    %2307 = vmatpush1.msra.mxu0 %v2232
    %2308 = vmatprep.subr.mxu0 0.0
    %2309 = vmatpush1.msra.mxu0 %v2233
    %2310 = vmatprep.subr.mxu0 0.0
    %2311 = vmatpush1.msra.mxu0 %v2234
    %2312 = vmatprep.subr.mxu0 0.0
    %2313 = vmatpush1.msra.mxu0 %v2235
    %2314 = vmatprep.subr.mxu0 0.0
    %2315 = vmatpush1.msra.mxu0 %v2236
    %2316 = vmatprep.subr.mxu0 0.0
    %2317 = vmatpush1.msra.mxu0 %v2237
    %2318 = vmatprep.subr.mxu0 0.0
    %2319 = vmatpush1.msra.mxu0 %v2238
    %2320 = vmatprep.subr.mxu0 0.0
    %2321 = vmatpush1.msra.mxu0 %v2239
    %2322 = vmatprep.subr.mxu0 0.0
    %2323 = vmatpush1.msra.mxu0 %v2240
    %2324 = vmatprep.subr.mxu0 0.0
    %2325 = vmatpush1.msra.mxu0 %v2241
    %2326 = vmatprep.subr.mxu0 0.0
    %2327 = vmatpush1.msra.mxu0 %v2242
    %2328 = vmatprep.subr.mxu0 0.0
    %2329 = vmatpush1.msra.mxu0 %v2243
    %2330 = vmatprep.subr.mxu0 0.0
    %2331 = vmatpush1.msra.mxu0 %v2244
    %2332 = vmatprep.subr.mxu0 0.0
    %2333 = vmatpush1.msra.mxu0 %v2245
    %2334 = vmatprep.subr.mxu0 0.0
    %2335 = vmatpush1.msra.mxu0 %v2246
    %2336 = vmatprep.subr.mxu0 0.0
    %2337 = vmatpush1.msra.mxu0 %v2247
    %2338 = vmatprep.subr.mxu0 0.0
    %2339 = vmatpush1.msra.mxu0 %v2248
    %2340 = vmatprep.subr.mxu0 0.0
    %2341 = vmatpush1.msra.mxu0 %v2249
    %2342 = vmatprep.subr.mxu0 0.0
    %2343 = vmatpush1.msra.mxu0 %v2250
    %2344 = vmatprep.subr.mxu0 0.0
    %2345 = vmatpush1.msra.mxu0 %v2251
    %2346 = vmatprep.subr.mxu0 0.0
    %2347 = vmatpush1.msra.mxu0 %v2252
    %2348 = vmatprep.subr.mxu0 0.0
    %2349 = vmatpush1.msra.mxu0 %v2253
    %2350 = vmatprep.subr.mxu0 0.0
    %2351 = vmatpush1.msra.mxu0 %v2254
    %2352 = vmatprep.subr.mxu0 0.0
    %2353 = vmatpush1.msra.mxu0 %v2255
    %2354 = vmatprep.mubr.f32.mxu0 %v2213
    %2355 = vmatmul.mubr.f32.gmra.mrb[0].mxu0 %v2212
    %v2356 = vpop.f32.mrb[0].mxu0
    %v2357 = vadd.f32 0.0, %v2356
    %v2358 = vpop.f32.mrb[0].mxu0
    %2359 = vmatprep.mubr.f32.mxu0 %v2217
    %2360 = vmatmul.mubr.f32.gmra.mrb[0].mxu0 %v2216
    %v2361 = vpop.f32.mrb[0].mxu0
    %v2362 = vadd.f32 0.0, %v2361
    %v2363 = vpop.f32.mrb[0].mxu0
    %2364 = vmatprep.mubr.f32.mxu0 %v2221
    %2365 = vmatmul.mubr.f32.gmra.mrb[0].mxu0 %v2220
    %v2366 = vpop.f32.mrb[0].mxu0
    %v2367 = vadd.f32 0.0, %v2366
    %v2368 = vpop.f32.mrb[0].mxu0
    %2369 = vdwg.mxu0
    %2370 = vmatprep.subr.mxu0 0.0
    %2371 = vmatpush1.msra.mxu0 %v2256
    %2372 = vmatprep.subr.mxu0 0.0
    %2373 = vmatpush1.msra.mxu0 %v2257
    %2374 = vmatprep.subr.mxu0 0.0
    %2375 = vmatpush1.msra.mxu0 %v2258
    %2376 = vmatprep.subr.mxu0 0.0
    %2377 = vmatpush1.msra.mxu0 %v2259
    %2378 = vmatprep.subr.mxu0 0.0
    %2379 = vmatpush1.msra.mxu0 %v2260
    %2380 = vmatprep.subr.mxu0 0.0
    %2381 = vmatpush1.msra.mxu0 %v2261
    %2382 = vmatprep.subr.mxu0 0.0
    %2383 = vmatpush1.msra.mxu0 %v2262
    %2384 = vmatprep.subr.mxu0 0.0
    %2385 = vmatpush1.msra.mxu0 %v2263
    %2386 = vmatprep.subr.mxu0 0.0
    %2387 = vmatpush1.msra.mxu0 %v2264
    %2388 = vmatprep.subr.mxu0 0.0
    %2389 = vmatpush1.msra.mxu0 %v2265
    %2390 = vmatprep.subr.mxu0 0.0
    %2391 = vmatpush1.msra.mxu0 %v2266
    %2392 = vmatprep.subr.mxu0 0.0
    %2393 = vmatpush1.msra.mxu0 %v2267
    %2394 = vmatprep.subr.mxu0 0.0
    %2395 = vmatpush1.msra.mxu0 %v2268
    %2396 = vmatprep.subr.mxu0 0.0
    %2397 = vmatpush1.msra.mxu0 %v2269
    %2398 = vmatprep.subr.mxu0 0.0
    %2399 = vmatpush1.msra.mxu0 %v2270
    %2400 = vmatprep.subr.mxu0 0.0
    %2401 = vmatpush1.msra.mxu0 %v2271
    %2402 = vmatprep.subr.mxu0 0.0
    %2403 = vmatpush1.msra.mxu0 %v2272
    %2404 = vmatprep.subr.mxu0 0.0
    %2405 = vmatpush1.msra.mxu0 %v2273
    %2406 = vmatprep.subr.mxu0 0.0
    %2407 = vmatpush1.msra.mxu0 %v2274
    %2408 = vmatprep.subr.mxu0 0.0
    %2409 = vmatpush1.msra.mxu0 %v2275
    %2410 = vmatprep.subr.mxu0 0.0
    %2411 = vmatpush1.msra.mxu0 %v2288
    %2412 = vmatprep.subr.mxu0 0.0
    %2413 = vmatpush1.msra.mxu0 0.0
    %2414 = vmatprep.subr.mxu0 0.0
    %2415 = vmatpush1.msra.mxu0 0.0
    %2416 = vmatprep.subr.mxu0 0.0
    %2417 = vmatpush1.msra.mxu0 0.0
    %2418 = vmatprep.subr.mxu0 0.0
    %2419 = vmatpush1.msra.mxu0 0.0
    %2420 = vmatprep.subr.mxu0 0.0
    %2421 = vmatpush1.msra.mxu0 0.0
    %2422 = vmatprep.subr.mxu0 0.0
    %2423 = vmatpush1.msra.mxu0 0.0
    %2424 = vmatprep.subr.mxu0 0.0
    %2425 = vmatpush1.msra.mxu0 0.0
    %2426 = vmatprep.subr.mxu0 0.0
    %2427 = vmatpush1.msra.mxu0 0.0
    %2428 = vmatprep.subr.mxu0 0.0
    %2429 = vmatpush1.msra.mxu0 0.0
    %2430 = vmatprep.subr.mxu0 0.0
    %2431 = vmatpush1.msra.mxu0 0.0
    %2432 = vmatprep.subr.mxu0 0.0
    %2433 = vmatpush1.msra.mxu0 0.0
    %2434 = vmatprep.mubr.f32.mxu0 %v2279
    %2435 = vmatmul.mubr.f32.gmra.mrb[0].mxu0 %v2214
    %v2436 = vpop.f32.mrb[0].mxu0
    %v2437 = vadd.f32 %v2357, %v2436
    %v2438 = vpop.f32.mrb[0].mxu0
    %2439 = vmatprep.mubr.f32.mxu0 %v2282
    %2440 = vmatmul.mubr.f32.gmra.mrb[0].mxu0 %v2218
    %v2441 = vpop.f32.mrb[0].mxu0
    %v2442 = vadd.f32 %v2362, %v2441
    %v2443 = vpop.f32.mrb[0].mxu0
    %2444 = vmatprep.mubr.f32.mxu0 %v2285
    %2445 = vmatmul.mubr.f32.gmra.mrb[0].mxu0 %v2222
    %v2446 = vpop.f32.mrb[0].mxu0
    %v2447 = vadd.f32 %v2367, %v2446
    %v2448 = vpop.f32.mrb[0].mxu0
    %2449 = vdwg.mxu0
    %v2450 = vld [vmem:[%s7] sm:$0xff]
    %v2451 = vld [vmem:[%s7 + $0x8] sm:$0xff]
    %v2452 = vld [vmem:[%s7 + $0x10] sm:$0xff]
    %v2453 = vld [vmem:[%s7 + $0x18] sm:$0xff]
    %v2454 = vld [vmem:[%s7 + $0x20] sm:$0xff]
    %v2455 = vld [vmem:[%s7 + $0x28] sm:$0xff]
    %v2456 = vld [vmem:[%s7 + $0x30] sm:$0xff]
    %v2457 = vld [vmem:[%s7 + $0x38] sm:$0xff]
    %v2458 = vld [vmem:[%s7 + $0x40] sm:$0xff]
    %v2459 = vld [vmem:[%s7 + $0x48] sm:$0xff]
    %v2460 = vld [vmem:[%s7 + $0x50] sm:$0xff]
    %v2461 = vld [vmem:[%s7 + $0x58] sm:$0xff]
    %v2462 = vld [vmem:[%s7 + $0x60] sm:$0xff]
    %v2463 = vld [vmem:[%s7 + $0x68] sm:$0xff]
    %v2464 = vld [vmem:[%s7 + $0x70] sm:$0xff]
    %v2465 = vld [vmem:[%s7 + $0x78] sm:$0xff]
    %v2466 = vld [vmem:[%s7 + $0x80] sm:$0xff]
    %v2467 = vld [vmem:[%s7 + $0x88] sm:$0xff]
    %v2468 = vld [vmem:[%s7 + $0x90] sm:$0xff]
    %v2469 = vld [vmem:[%s7 + $0x98] sm:$0xff]
    %v2470 = vld [vmem:[%s7 + $0xa0] sm:$0xff]
    %v2471 = vld [vmem:[%s7 + $0xa8] sm:$0xff]
    %v2472 = vld [vmem:[%s7 + $0xb0] sm:$0xff]
    %v2473 = vld [vmem:[%s7 + $0xb8] sm:$0xff]
    %v2474 = vld [vmem:[%s7 + $0xc0] sm:$0xff]
    %v2475 = vld [vmem:[%s7 + $0xc8] sm:$0xff]
    %v2476 = vld [vmem:[%s7 + $0xd0] sm:$0xff]
    %v2477 = vld [vmem:[%s7 + $0xd8] sm:$0xff]
    %v2478 = vld [vmem:[%s7 + $0xe0] sm:$0xff]
    %v2479 = vld [vmem:[%s7 + $0xe8] sm:$0xff]
    %v2480 = vld [vmem:[%s7 + $0xf0] sm:$0xff]
    %v2481 = vld [vmem:[%s7 + $0xf8] sm:$0xff]
    %v2482 = vld [vmem:[%s7 + $0x100] sm:$0xff]
    %v2483 = vld [vmem:[%s7 + $0x108] sm:$0xff]
    %v2484 = vld [vmem:[%s7 + $0x110] sm:$0xff]
    %v2485 = vld [vmem:[%s7 + $0x118] sm:$0xff]
    %v2486 = vld [vmem:[%s7 + $0x120] sm:$0xff]
    %v2487 = vld [vmem:[%s7 + $0x128] sm:$0xff]
    %v2488 = vld [vmem:[%s7 + $0x130] sm:$0xff]
    %v2489 = vld [vmem:[%s7 + $0x138] sm:$0xff]
    %v2490 = vld [vmem:[%s7 + $0x140] sm:$0xff]
    %v2491 = vld [vmem:[%s7 + $0x148] sm:$0xff]
    %v2492 = vld [vmem:[%s7 + $0x150] sm:$0xff]
    %v2493 = vld [vmem:[%s7 + $0x158] sm:$0xff]
    %v2494 = vld [vmem:[%s7 + $0x160] sm:$0xff]
    %v2495 = vld [vmem:[%s7 + $0x168] sm:$0xff]
    %v2496 = vld [vmem:[%s7 + $0x170] sm:$0xff]
    %v2497 = vld [vmem:[%s7 + $0x178] sm:$0xff]
    %v2498 = vld [vmem:[%s7 + $0x180] sm:$0xff]
    %v2499 = vld [vmem:[%s7 + $0x188] sm:$0xff]
    %v2500 = vld [vmem:[%s7 + $0x190] sm:$0xff]
    %v2501 = vld [vmem:[%s7 + $0x198] sm:$0xff]
    %v2502 = vld [vmem:[%s7 + $0x1a0] sm:$0xf]
    %v2504 = vsel %vm372, %v2502, 0
    %2506 = vmatprep.subr.mxu0 0.0
    %2507 = vmatpush1.msra.mxu0 %v2450
    %2508 = vmatprep.subr.mxu0 0.0
    %2509 = vmatpush1.msra.mxu0 %v2451
    %2510 = vmatprep.subr.mxu0 0.0
    %2511 = vmatpush1.msra.mxu0 %v2452
    %2512 = vmatprep.subr.mxu0 0.0
    %2513 = vmatpush1.msra.mxu0 %v2453
    %2514 = vmatprep.subr.mxu0 0.0
    %2515 = vmatpush1.msra.mxu0 %v2454
    %2516 = vmatprep.subr.mxu0 0.0
    %2517 = vmatpush1.msra.mxu0 %v2455
    %2518 = vmatprep.subr.mxu0 0.0
    %2519 = vmatpush1.msra.mxu0 %v2456
    %2520 = vmatprep.subr.mxu0 0.0
    %2521 = vmatpush1.msra.mxu0 %v2457
    %2522 = vmatprep.subr.mxu0 0.0
    %2523 = vmatpush1.msra.mxu0 %v2458
    %2524 = vmatprep.subr.mxu0 0.0
    %2525 = vmatpush1.msra.mxu0 %v2459
    %2526 = vmatprep.subr.mxu0 0.0
    %2527 = vmatpush1.msra.mxu0 %v2460
    %2528 = vmatprep.subr.mxu0 0.0
    %2529 = vmatpush1.msra.mxu0 %v2461
    %2530 = vmatprep.subr.mxu0 0.0
    %2531 = vmatpush1.msra.mxu0 %v2462
    %2532 = vmatprep.subr.mxu0 0.0
    %2533 = vmatpush1.msra.mxu0 %v2463
    %2534 = vmatprep.subr.mxu0 0.0
    %2535 = vmatpush1.msra.mxu0 %v2464
    %2536 = vmatprep.subr.mxu0 0.0
    %2537 = vmatpush1.msra.mxu0 %v2465
    %2538 = vmatprep.subr.mxu0 0.0
    %2539 = vmatpush1.msra.mxu0 %v2466
    %2540 = vmatprep.subr.mxu0 0.0
    %2541 = vmatpush1.msra.mxu0 %v2467
    %2542 = vmatprep.subr.mxu0 0.0
    %2543 = vmatpush1.msra.mxu0 %v2468
    %2544 = vmatprep.subr.mxu0 0.0
    %2545 = vmatpush1.msra.mxu0 %v2469
    %2546 = vmatprep.subr.mxu0 0.0
    %2547 = vmatpush1.msra.mxu0 %v2470
    %2548 = vmatprep.subr.mxu0 0.0
    %2549 = vmatpush1.msra.mxu0 %v2471
    %2550 = vmatprep.subr.mxu0 0.0
    %2551 = vmatpush1.msra.mxu0 %v2472
    %2552 = vmatprep.subr.mxu0 0.0
    %2553 = vmatpush1.msra.mxu0 %v2473
    %2554 = vmatprep.subr.mxu0 0.0
    %2555 = vmatpush1.msra.mxu0 %v2474
    %2556 = vmatprep.subr.mxu0 0.0
    %2557 = vmatpush1.msra.mxu0 %v2475
    %2558 = vmatprep.subr.mxu0 0.0
    %2559 = vmatpush1.msra.mxu0 %v2476
    %2560 = vmatprep.subr.mxu0 0.0
    %2561 = vmatpush1.msra.mxu0 %v2477
    %2562 = vmatprep.subr.mxu0 0.0
    %2563 = vmatpush1.msra.mxu0 %v2478
    %2564 = vmatprep.subr.mxu0 0.0
    %2565 = vmatpush1.msra.mxu0 %v2479
    %2566 = vmatprep.subr.mxu0 0.0
    %2567 = vmatpush1.msra.mxu0 %v2480
    %2568 = vmatprep.subr.mxu0 0.0
    %2569 = vmatpush1.msra.mxu0 %v2481
    %2570 = vmatprep.mubr.f32.mxu0 %v2213
    %2571 = vmatmul.mubr.f32.gmra.mrb[0].mxu0 %v2212
    %v2572 = vpop.f32.mrb[0].mxu0
    %v2573 = vadd.f32 0.0, %v2572
    %v2574 = vpop.f32.mrb[0].mxu0
    %2575 = vmatprep.mubr.f32.mxu0 %v2217
    %2576 = vmatmul.mubr.f32.gmra.mrb[0].mxu0 %v2216
    %v2577 = vpop.f32.mrb[0].mxu0
    %v2578 = vadd.f32 0.0, %v2577
    %v2579 = vpop.f32.mrb[0].mxu0
    %2580 = vmatprep.mubr.f32.mxu0 %v2221
    %2581 = vmatmul.mubr.f32.gmra.mrb[0].mxu0 %v2220
    %v2582 = vpop.f32.mrb[0].mxu0
    %v2583 = vadd.f32 0.0, %v2582
    %v2584 = vpop.f32.mrb[0].mxu0
    %2585 = vdwg.mxu0
    %2586 = vmatprep.subr.mxu0 0.0
    %2587 = vmatpush1.msra.mxu0 %v2482
    %2588 = vmatprep.subr.mxu0 0.0
    %2589 = vmatpush1.msra.mxu0 %v2483
    %2590 = vmatprep.subr.mxu0 0.0
    %2591 = vmatpush1.msra.mxu0 %v2484
    %2592 = vmatprep.subr.mxu0 0.0
    %2593 = vmatpush1.msra.mxu0 %v2485
    %2594 = vmatprep.subr.mxu0 0.0
    %2595 = vmatpush1.msra.mxu0 %v2486
    %2596 = vmatprep.subr.mxu0 0.0
    %2597 = vmatpush1.msra.mxu0 %v2487
    %2598 = vmatprep.subr.mxu0 0.0
    %2599 = vmatpush1.msra.mxu0 %v2488
    %2600 = vmatprep.subr.mxu0 0.0
    %2601 = vmatpush1.msra.mxu0 %v2489
    %2602 = vmatprep.subr.mxu0 0.0
    %2603 = vmatpush1.msra.mxu0 %v2490
    %2604 = vmatprep.subr.mxu0 0.0
    %2605 = vmatpush1.msra.mxu0 %v2491
    %2606 = vmatprep.subr.mxu0 0.0
    %2607 = vmatpush1.msra.mxu0 %v2492
    %2608 = vmatprep.subr.mxu0 0.0
    %2609 = vmatpush1.msra.mxu0 %v2493
    %2610 = vmatprep.subr.mxu0 0.0
    %2611 = vmatpush1.msra.mxu0 %v2494
    %2612 = vmatprep.subr.mxu0 0.0
    %2613 = vmatpush1.msra.mxu0 %v2495
    %2614 = vmatprep.subr.mxu0 0.0
    %2615 = vmatpush1.msra.mxu0 %v2496
    %2616 = vmatprep.subr.mxu0 0.0
    %2617 = vmatpush1.msra.mxu0 %v2497
    %2618 = vmatprep.subr.mxu0 0.0
    %2619 = vmatpush1.msra.mxu0 %v2498
    %2620 = vmatprep.subr.mxu0 0.0
    %2621 = vmatpush1.msra.mxu0 %v2499
    %2622 = vmatprep.subr.mxu0 0.0
    %2623 = vmatpush1.msra.mxu0 %v2500
    %2624 = vmatprep.subr.mxu0 0.0
    %2625 = vmatpush1.msra.mxu0 %v2501
    %2626 = vmatprep.subr.mxu0 0.0
    %2627 = vmatpush1.msra.mxu0 %v2504
    %2628 = vmatprep.subr.mxu0 0.0
    %2629 = vmatpush1.msra.mxu0 0.0
    %2630 = vmatprep.subr.mxu0 0.0
    %2631 = vmatpush1.msra.mxu0 0.0
    %2632 = vmatprep.subr.mxu0 0.0
    %2633 = vmatpush1.msra.mxu0 0.0
    %2634 = vmatprep.subr.mxu0 0.0
    %2635 = vmatpush1.msra.mxu0 0.0
    %2636 = vmatprep.subr.mxu0 0.0
    %2637 = vmatpush1.msra.mxu0 0.0
    %2638 = vmatprep.subr.mxu0 0.0
    %2639 = vmatpush1.msra.mxu0 0.0
    %2640 = vmatprep.subr.mxu0 0.0
    %2641 = vmatpush1.msra.mxu0 0.0
    %2642 = vmatprep.subr.mxu0 0.0
    %2643 = vmatpush1.msra.mxu0 0.0
    %2644 = vmatprep.subr.mxu0 0.0
    %2645 = vmatpush1.msra.mxu0 0.0
    %2646 = vmatprep.subr.mxu0 0.0
    %2647 = vmatpush1.msra.mxu0 0.0
    %2648 = vmatprep.subr.mxu0 0.0
    %2649 = vmatpush1.msra.mxu0 0.0
    %2650 = vmatprep.mubr.f32.mxu0 %v2279
    %2651 = vmatmul.mubr.f32.gmra.mrb[0].mxu0 %v2214
    %v2652 = vpop.f32.mrb[0].mxu0
    %v2653 = vadd.f32 %v2573, %v2652
    %v2654 = vpop.f32.mrb[0].mxu0
    %2655 = vmatprep.mubr.f32.mxu0 %v2282
    %2656 = vmatmul.mubr.f32.gmra.mrb[0].mxu0 %v2218
    %v2657 = vpop.f32.mrb[0].mxu0
    %v2658 = vadd.f32 %v2578, %v2657
    %v2659 = vpop.f32.mrb[0].mxu0
    %2660 = vmatprep.mubr.f32.mxu0 %v2285
    %2661 = vmatmul.mubr.f32.gmra.mrb[0].mxu0 %v2222
    %v2662 = vpop.f32.mrb[0].mxu0
    %v2663 = vadd.f32 %v2583, %v2662
    %v2664 = vpop.f32.mrb[0].mxu0
    %2665 = vdwg.mxu0
    %v2666 = vmax.f32 %v2437, %v2653
    %v2667 = vmax.f32 %v2442, %v2658
    %v2668 = vmax.f32 %v2447, %v2663
    %v2669 = vld [vmem:[%s8] sm:$0xff]
    %v2670 = vld [vmem:[%s8 + $0x8] sm:$0x3]
    %vm2671 = vcmask 162816
    %v2673 = vsel %vm2671, %v2669, 0
    %v2676 = vsel %vm2671, %v2670, 0
    %v2679 = vsel %vm372, %v2668, 0
    %2681 = vmatprep.subr.mxu0 0.0
    %2682 = vmatpush1.msra.mxu0 %v2666
    %2683 = vmatprep.subr.mxu0 0.0
    %2684 = vmatpush1.msra.mxu0 %v2667
    %2685 = vmatprep.subr.mxu0 0.0
    %2686 = vmatpush1.msra.mxu0 %v2679
    %2687 = vmatprep.subr.mxu0 0.0
    %2688 = vmatpush1.msra.mxu0 0.0
    %2689 = vmatprep.subr.mxu0 0.0
    %2690 = vmatpush1.msra.mxu0 0.0
    %2691 = vmatprep.subr.mxu0 0.0
    %2692 = vmatpush1.msra.mxu0 0.0
    %2693 = vmatprep.subr.mxu0 0.0
    %2694 = vmatpush1.msra.mxu0 0.0
    %2695 = vmatprep.subr.mxu0 0.0
    %2696 = vmatpush1.msra.mxu0 0.0
    %2697 = vmatprep.subr.mxu0 0.0
    %2698 = vmatpush1.msra.mxu0 0.0
    %2699 = vmatprep.subr.mxu0 0.0
    %2700 = vmatpush1.msra.mxu0 0.0
    %2701 = vmatprep.subr.mxu0 0.0
    %2702 = vmatpush1.msra.mxu0 0.0
    %2703 = vmatprep.subr.mxu0 0.0
    %2704 = vmatpush1.msra.mxu0 0.0
    %2705 = vmatprep.subr.mxu0 0.0
    %2706 = vmatpush1.msra.mxu0 0.0
    %2707 = vmatprep.subr.mxu0 0.0
    %2708 = vmatpush1.msra.mxu0 0.0
    %2709 = vmatprep.subr.mxu0 0.0
    %2710 = vmatpush1.msra.mxu0 0.0
    %2711 = vmatprep.subr.mxu0 0.0
    %2712 = vmatpush1.msra.mxu0 0.0
    %2713 = vmatprep.subr.mxu0 0.0
    %2714 = vmatpush1.msra.mxu0 0.0
    %2715 = vmatprep.subr.mxu0 0.0
    %2716 = vmatpush1.msra.mxu0 0.0
    %2717 = vmatprep.subr.mxu0 0.0
    %2718 = vmatpush1.msra.mxu0 0.0
    %2719 = vmatprep.subr.mxu0 0.0
    %2720 = vmatpush1.msra.mxu0 0.0
    %2721 = vmatprep.subr.mxu0 0.0
    %2722 = vmatpush1.msra.mxu0 0.0
    %2723 = vmatprep.subr.mxu0 0.0
    %2724 = vmatpush1.msra.mxu0 0.0
    %2725 = vmatprep.subr.mxu0 0.0
    %2726 = vmatpush1.msra.mxu0 0.0
    %2727 = vmatprep.subr.mxu0 0.0
    %2728 = vmatpush1.msra.mxu0 0.0
    %2729 = vmatprep.subr.mxu0 0.0
    %2730 = vmatpush1.msra.mxu0 0.0
    %2731 = vmatprep.subr.mxu0 0.0
    %2732 = vmatpush1.msra.mxu0 0.0
    %2733 = vmatprep.subr.mxu0 0.0
    %2734 = vmatpush1.msra.mxu0 0.0
    %2735 = vmatprep.subr.mxu0 0.0
    %2736 = vmatpush1.msra.mxu0 0.0
    %2737 = vmatprep.subr.mxu0 0.0
    %2738 = vmatpush1.msra.mxu0 0.0
    %2739 = vmatprep.subr.mxu0 0.0
    %2740 = vmatpush1.msra.mxu0 0.0
    %2741 = vmatprep.subr.mxu0 0.0
    %2742 = vmatpush1.msra.mxu0 0.0
    %2743 = vmatprep.subr.mxu0 0.0
    %2744 = vmatpush1.msra.mxu0 0.0
    %2745 = vmatprep.mubr.f32.mxu0 0.0
    %2746 = vmatmul.mubr.f32.gmra.mrb[0].mxu0 %v2673
    %v2747 = vpop.f32.mrb[0].mxu0
    %v2748 = vadd.f32 0.0, %v2747
    %v2749 = vpop.f32.mrb[0].mxu0
    %2750 = vmatprep.mubr.f32.mxu0 0.0
    %2751 = vmatmul.mubr.f32.gmra.mrb[0].mxu0 %v2676
    %v2752 = vpop.f32.mrb[0].mxu0
    %v2753 = vadd.f32 0.0, %v2752
    %v2754 = vpop.f32.mrb[0].mxu0
    %2755 = vdwg.mxu0
    %v2756 = vld [vmem:[%s9] sm:$0xff]
    %v2757 = vld [vmem:[%s9 + $0x8] sm:$0x3]
    %v2759 = vsel %vm2671, %v2756, 0
    %v2762 = vsel %vm2671, %v2757, 0
    %2764 = vmatprep.subr.mxu0 0.0
    %2765 = vmatpush1.msra.mxu0 %v2666
    %2766 = vmatprep.subr.mxu0 0.0
    %2767 = vmatpush1.msra.mxu0 %v2667
    %2768 = vmatprep.subr.mxu0 0.0
    %2769 = vmatpush1.msra.mxu0 %v2679
    %2770 = vmatprep.subr.mxu0 0.0
    %2771 = vmatpush1.msra.mxu0 0.0
    %2772 = vmatprep.subr.mxu0 0.0
    %2773 = vmatpush1.msra.mxu0 0.0
    %2774 = vmatprep.subr.mxu0 0.0
    %2775 = vmatpush1.msra.mxu0 0.0
    %2776 = vmatprep.subr.mxu0 0.0
    %2777 = vmatpush1.msra.mxu0 0.0
    %2778 = vmatprep.subr.mxu0 0.0
    %2779 = vmatpush1.msra.mxu0 0.0
    %2780 = vmatprep.subr.mxu0 0.0
    %2781 = vmatpush1.msra.mxu0 0.0
    %2782 = vmatprep.subr.mxu0 0.0
    %2783 = vmatpush1.msra.mxu0 0.0
    %2784 = vmatprep.subr.mxu0 0.0
    %2785 = vmatpush1.msra.mxu0 0.0
    %2786 = vmatprep.subr.mxu0 0.0
    %2787 = vmatpush1.msra.mxu0 0.0
    %2788 = vmatprep.subr.mxu0 0.0
    %2789 = vmatpush1.msra.mxu0 0.0
    %2790 = vmatprep.subr.mxu0 0.0
    %2791 = vmatpush1.msra.mxu0 0.0
    %2792 = vmatprep.subr.mxu0 0.0
    %2793 = vmatpush1.msra.mxu0 0.0
    %2794 = vmatprep.subr.mxu0 0.0
    %2795 = vmatpush1.msra.mxu0 0.0
    %2796 = vmatprep.subr.mxu0 0.0
    %2797 = vmatpush1.msra.mxu0 0.0
    %2798 = vmatprep.subr.mxu0 0.0
    %2799 = vmatpush1.msra.mxu0 0.0
    %2800 = vmatprep.subr.mxu0 0.0
    %2801 = vmatpush1.msra.mxu0 0.0
    %2802 = vmatprep.subr.mxu0 0.0
    %2803 = vmatpush1.msra.mxu0 0.0
    %2804 = vmatprep.subr.mxu0 0.0
    %2805 = vmatpush1.msra.mxu0 0.0
    %2806 = vmatprep.subr.mxu0 0.0
    %2807 = vmatpush1.msra.mxu0 0.0
    %2808 = vmatprep.subr.mxu0 0.0
    %2809 = vmatpush1.msra.mxu0 0.0
    %2810 = vmatprep.subr.mxu0 0.0
    %2811 = vmatpush1.msra.mxu0 0.0
    %2812 = vmatprep.subr.mxu0 0.0
    %2813 = vmatpush1.msra.mxu0 0.0
    %2814 = vmatprep.subr.mxu0 0.0
    %2815 = vmatpush1.msra.mxu0 0.0
    %2816 = vmatprep.subr.mxu0 0.0
    %2817 = vmatpush1.msra.mxu0 0.0
    %2818 = vmatprep.subr.mxu0 0.0
    %2819 = vmatpush1.msra.mxu0 0.0
    %2820 = vmatprep.subr.mxu0 0.0
    %2821 = vmatpush1.msra.mxu0 0.0
    %2822 = vmatprep.subr.mxu0 0.0
    %2823 = vmatpush1.msra.mxu0 0.0
    %2824 = vmatprep.subr.mxu0 0.0
    %2825 = vmatpush1.msra.mxu0 0.0
    %2826 = vmatprep.subr.mxu0 0.0
    %2827 = vmatpush1.msra.mxu0 0.0
    %2828 = vmatprep.mubr.f32.mxu0 0.0
    %2829 = vmatmul.mubr.f32.gmra.mrb[0].mxu0 %v2759
    %v2830 = vpop.f32.mrb[0].mxu0
    %v2831 = vadd.f32 0.0, %v2830
    %v2832 = vpop.f32.mrb[0].mxu0
    %2833 = vmatprep.mubr.f32.mxu0 0.0
    %2834 = vmatmul.mubr.f32.gmra.mrb[0].mxu0 %v2762
    %v2835 = vpop.f32.mrb[0].mxu0
    %v2836 = vadd.f32 0.0, %v2835
    %v2837 = vpop.f32.mrb[0].mxu0
    %2838 = vdwg.mxu0
    %v2839 = vmax.f32 %v2748, %v2831
    %v2840 = vmax.f32 %v2753, %v2836
    %v2841 = vld [vmem:[%s10] sm:$0x1]
    %v2843 = vlaneseq
    %v2844 = vshrl.u32 %v2843, 7
    %v2845 = vsub.s32 0, %v2844
    %v2846 = vrot.slane %v2841, %v2845
    %v2848 = vadd.f32 %v2839, %v2846
    %v2849 = vadd.f32 %v2840, %v2846
    %v2850 = vmax.f32 %v2848, 0.0
    %v2851 = vmax.f32 %v2849, 0.0
    %vm2852 = vcmask 648192
    %2853 = vst.msk [vmem:[#allocation5] sm:$0x3] %vm2852, %v2850
    %v2856 = vunpack.c.l.s4 1983009808
    %v2857 = vunpack.c.0.s8 %v2856
    %v2858 = vlaneseq
    %v2859 = vshrl.u32 %v2858, 7
    %v2860 = vsub.s32 %v2857, %v2859
    %v2861 = vrot.slane %v2850, %v2860
    %v2862 = vcombine.high %v2861, %v2861
    %2863 = vrot.lane.b32.xlu0 %v2862, 80
    %v2864 = vpop.permute.xlu0 %2863
    %v2865 = vrot.slane %v2864, 6
    %vm2866 = vcmask 654336
    %v2867 = vsel %vm2866, %v2865, %v2864
    %vm2869 = vcmask 1042048
    %vm2870 = vcmask 257026
    %vm2871 = vmor %vm2870, %vm2869
    %2872 = vst.msk [vmem:[#allocation5] sm:$0xf] %vm2871, %v2867
    %v2873 = vcombine.high %v2850, %v2850
    %v2875 = vunpack.c.l.s4 1983009808
    %v2876 = vunpack.c.0.s8 %v2875
    %v2877 = vlaneseq
    %v2878 = vshrl.u32 %v2877, 7
    %v2879 = vsub.s32 %v2876, %v2878
    %v2880 = vrot.slane %v2873, %v2879
    %2881 = vrot.lane.b32.xlu0 %v2880, 32
    %v2882 = vpop.permute.xlu0 %2881
    %vm2884 = vcmask 910592
    %2885 = vst.msk [vmem:[#allocation5 + $0x2] sm:$0x3] %vm2884, %v2882
    %v2886 = vcombine.high %v2880, %v2880
    %2887 = vrot.lane.b32.xlu0 %v2886, 112
    %v2888 = vpop.permute.xlu0 %2887
    %v2889 = vrot.slane %v2888, 6
    %vm2890 = vcmask 916480
    %v2891 = vsel %vm2890, %v2889, %v2888
    %vm2893 = vcmask 1042304
    %vm2894 = vcmask 519170
    %vm2895 = vmor %vm2894, %vm2893
    %2896 = vst.msk [vmem:[#allocation5 + $0x2] sm:$0xf] %vm2895, %v2891
    %v2899 = vunpack.c.l.s4 1983009808
    %v2900 = vunpack.c.0.s8 %v2899
    %v2901 = vlaneseq
    %v2902 = vshrl.u32 %v2901, 7
    %v2903 = vsub.s32 %v2900, %v2902
    %v2904 = vrot.slane %v2851, %v2903
    %2905 = vrot.lane.b32.xlu0 %v2904, 64
    %v2906 = vpop.permute.xlu0 %2905
    %v2907 = vrot.slane %v2906, 6
    %vm2908 = vcmask 523264
    %v2909 = vsel %vm2908, %v2907, %v2906
    %vm2911 = vcmask 1041920
    %vm2912 = vcmask 125954
    %vm2913 = vmor %vm2912, %vm2911
    %2914 = vst.msk [vmem:[#allocation5 + $0x4] sm:$0xf] %vm2913, %v2909
    %v2915 = vld [vmem:[#allocation5] sm:$0xff]
    %v2916 = vld [vmem:[%s11] sm:$0xff]
    %v2917 = vld [vmem:[%s11 + $0x8] sm:$0xff]
    %v2918 = vld [vmem:[%s11 + $0x10] sm:$0xff]
    %v2919 = vld [vmem:[%s11 + $0x18] sm:$0xff]
    %v2920 = vld [vmem:[%s11 + $0x20] sm:$0xff]
    %v2921 = vld [vmem:[%s11 + $0x28] sm:$0xff]
    %v2922 = vld [vmem:[%s11 + $0x30] sm:$0xff]
    %v2923 = vld [vmem:[%s11 + $0x38] sm:$0xff]
    %v2924 = vld [vmem:[%s11 + $0x40] sm:$0xff]
    %v2925 = vld [vmem:[%s11 + $0x48] sm:$0xff]
    %v2926 = vld [vmem:[%s11 + $0x50] sm:$0xff]
    %v2927 = vld [vmem:[%s11 + $0x58] sm:$0xff]
    %v2928 = vld [vmem:[%s11 + $0x60] sm:$0xff]
    %v2929 = vld [vmem:[%s11 + $0x68] sm:$0xff]
    %v2930 = vld [vmem:[%s11 + $0x70] sm:$0xff]
    %v2931 = vld [vmem:[%s11 + $0x78] sm:$0xff]
    %v2932 = vld [vmem:[%s11 + $0x80] sm:$0xff]
    %v2933 = vld [vmem:[%s11 + $0x88] sm:$0xff]
    %v2934 = vld [vmem:[%s11 + $0x90] sm:$0xff]
    %v2935 = vld [vmem:[%s11 + $0x98] sm:$0xff]
    %v2936 = vld [vmem:[%s11 + $0xa0] sm:$0xff]
    %v2937 = vld [vmem:[%s11 + $0xa8] sm:$0xff]
    %v2938 = vld [vmem:[%s11 + $0xb0] sm:$0xff]
    %v2939 = vld [vmem:[%s11 + $0xb8] sm:$0xff]
    %v2940 = vld [vmem:[%s11 + $0xc0] sm:$0xff]
    %v2941 = vld [vmem:[%s11 + $0xc8] sm:$0xff]
    %v2942 = vld [vmem:[%s11 + $0xd0] sm:$0xff]
    %v2943 = vld [vmem:[%s11 + $0xd8] sm:$0xff]
    %v2944 = vld [vmem:[%s11 + $0xe0] sm:$0xff]
    %v2945 = vld [vmem:[%s11 + $0xe8] sm:$0xff]
    %v2946 = vld [vmem:[%s11 + $0xf0] sm:$0xff]
    %v2947 = vld [vmem:[%s11 + $0xf8] sm:$0xff]
    %v2948 = vld [vmem:[%s11 + $0x100] sm:$0xff]
    %v2949 = vld [vmem:[%s11 + $0x108] sm:$0xff]
    %v2950 = vld [vmem:[%s11 + $0x110] sm:$0xff]
    %v2951 = vld [vmem:[%s11 + $0x118] sm:$0xff]
    %v2952 = vld [vmem:[%s11 + $0x120] sm:$0xff]
    %v2953 = vld [vmem:[%s11 + $0x128] sm:$0xff]
    %v2954 = vld [vmem:[%s11 + $0x130] sm:$0xff]
    %v2955 = vld [vmem:[%s11 + $0x138] sm:$0xff]
    %v2956 = vld [vmem:[%s11 + $0x140] sm:$0xff]
    %v2957 = vld [vmem:[%s11 + $0x148] sm:$0xff]
    %v2958 = vld [vmem:[%s11 + $0x150] sm:$0xff]
    %v2959 = vld [vmem:[%s11 + $0x158] sm:$0xff]
    %v2960 = vld [vmem:[%s11 + $0x160] sm:$0xff]
    %v2961 = vld [vmem:[%s11 + $0x168] sm:$0xff]
    %v2962 = vld [vmem:[%s11 + $0x170] sm:$0xff]
    %v2963 = vld [vmem:[%s11 + $0x178] sm:$0xff]
    %v2964 = vld [vmem:[%s11 + $0x180] sm:$0xff]
    %v2965 = vld [vmem:[%s11 + $0x188] sm:$0xff]
    %v2966 = vld [vmem:[%s12] sm:$0x1]
    %v2968 = vlaneseq
    %v2969 = vshrl.u32 %v2968, 7
    %v2970 = vsub.s32 0, %v2969
    %v2971 = vrot.slane %v2966, %v2970
    %v2974 = vcombine.high %v2915, %v2915
    %v2976 = vunpack.c.l.s4 1983009808
    %v2977 = vunpack.c.0.s8 %v2976
    %v2978 = vlaneseq
    %v2979 = vshrl.u32 %v2978, 7
    %v2980 = vsub.s32 %v2977, %v2979
    %v2981 = vrot.slane %v2915, %v2980
    %v2983 = vunpack.c.l.s4 1983009808
    %v2984 = vunpack.c.0.s8 %v2983
    %v2985 = vlaneseq
    %v2986 = vshrl.u32 %v2985, 7
    %v2987 = vsub.s32 %v2984, %v2986
    %v2988 = vrot.slane %v2974, %v2987
    %v2989 = vcombine.high %v2981, %v2981
    %v2990 = vcombine.high %v2988, %v2988
    %vm2994 = vcmask 130048
    %v2995 = vsel %vm2994, %v2990, 0
    %2997 = vmatprep.subr.mxu0 0.0
    %2998 = vmatpush1.msra.mxu0 %v2916
    %2999 = vmatprep.subr.mxu0 0.0
    %3000 = vmatpush1.msra.mxu0 %v2917
    %3001 = vmatprep.subr.mxu0 0.0
    %3002 = vmatpush1.msra.mxu0 %v2918
    %3003 = vmatprep.subr.mxu0 0.0
    %3004 = vmatpush1.msra.mxu0 %v2919
    %3005 = vmatprep.subr.mxu0 0.0
    %3006 = vmatpush1.msra.mxu0 %v2920
    %3007 = vmatprep.subr.mxu0 0.0
    %3008 = vmatpush1.msra.mxu0 %v2921
    %3009 = vmatprep.subr.mxu0 0.0
    %3010 = vmatpush1.msra.mxu0 %v2922
    %3011 = vmatprep.subr.mxu0 0.0
    %3012 = vmatpush1.msra.mxu0 %v2923
    %3013 = vmatprep.subr.mxu0 0.0
    %3014 = vmatpush1.msra.mxu0 %v2924
    %3015 = vmatprep.subr.mxu0 0.0
    %3016 = vmatpush1.msra.mxu0 %v2925
    %3017 = vmatprep.subr.mxu0 0.0
    %3018 = vmatpush1.msra.mxu0 %v2926
    %3019 = vmatprep.subr.mxu0 0.0
    %3020 = vmatpush1.msra.mxu0 %v2927
    %3021 = vmatprep.subr.mxu0 0.0
    %3022 = vmatpush1.msra.mxu0 %v2928
    %3023 = vmatprep.subr.mxu0 0.0
    %3024 = vmatpush1.msra.mxu0 %v2929
    %3025 = vmatprep.subr.mxu0 0.0
    %3026 = vmatpush1.msra.mxu0 %v2930
    %3027 = vmatprep.subr.mxu0 0.0
    %3028 = vmatpush1.msra.mxu0 %v2931
    %3029 = vmatprep.subr.mxu0 0.0
    %3030 = vmatpush1.msra.mxu0 %v2932
    %3031 = vmatprep.subr.mxu0 0.0
    %3032 = vmatpush1.msra.mxu0 %v2933
    %3033 = vmatprep.subr.mxu0 0.0
    %3034 = vmatpush1.msra.mxu0 %v2934
    %3035 = vmatprep.subr.mxu0 0.0
    %3036 = vmatpush1.msra.mxu0 %v2935
    %3037 = vmatprep.subr.mxu0 0.0
    %3038 = vmatpush1.msra.mxu0 %v2936
    %3039 = vmatprep.subr.mxu0 0.0
    %3040 = vmatpush1.msra.mxu0 %v2937
    %3041 = vmatprep.subr.mxu0 0.0
    %3042 = vmatpush1.msra.mxu0 %v2938
    %3043 = vmatprep.subr.mxu0 0.0
    %3044 = vmatpush1.msra.mxu0 %v2939
    %3045 = vmatprep.subr.mxu0 0.0
    %3046 = vmatpush1.msra.mxu0 %v2940
    %3047 = vmatprep.subr.mxu0 0.0
    %3048 = vmatpush1.msra.mxu0 %v2941
    %3049 = vmatprep.subr.mxu0 0.0
    %3050 = vmatpush1.msra.mxu0 %v2942
    %3051 = vmatprep.subr.mxu0 0.0
    %3052 = vmatpush1.msra.mxu0 %v2943
    %3053 = vmatprep.subr.mxu0 0.0
    %3054 = vmatpush1.msra.mxu0 %v2944
    %3055 = vmatprep.subr.mxu0 0.0
    %3056 = vmatpush1.msra.mxu0 %v2945
    %3057 = vmatprep.subr.mxu0 0.0
    %3058 = vmatpush1.msra.mxu0 %v2946
    %3059 = vmatprep.subr.mxu0 0.0
    %3060 = vmatpush1.msra.mxu0 %v2947
    %3061 = vmatprep.mubr.f32.mxu0 %v2989
    %3062 = vmatmul.mubr.f32.gmra.mrb[0].mxu0 %v2981
    %v3063 = vpop.f32.mrb[0].mxu0
    %v3064 = vadd.f32 %v2971, %v3063
    %v3065 = vpop.f32.mrb[0].mxu0
    %3066 = vdwg.mxu0
    %3067 = vmatprep.subr.mxu0 0.0
    %3068 = vmatpush1.msra.mxu0 %v2948
    %3069 = vmatprep.subr.mxu0 0.0
    %3070 = vmatpush1.msra.mxu0 %v2949
    %3071 = vmatprep.subr.mxu0 0.0
    %3072 = vmatpush1.msra.mxu0 %v2950
    %3073 = vmatprep.subr.mxu0 0.0
    %3074 = vmatpush1.msra.mxu0 %v2951
    %3075 = vmatprep.subr.mxu0 0.0
    %3076 = vmatpush1.msra.mxu0 %v2952
    %3077 = vmatprep.subr.mxu0 0.0
    %3078 = vmatpush1.msra.mxu0 %v2953
    %3079 = vmatprep.subr.mxu0 0.0
    %3080 = vmatpush1.msra.mxu0 %v2954
    %3081 = vmatprep.subr.mxu0 0.0
    %3082 = vmatpush1.msra.mxu0 %v2955
    %3083 = vmatprep.subr.mxu0 0.0
    %3084 = vmatpush1.msra.mxu0 %v2956
    %3085 = vmatprep.subr.mxu0 0.0
    %3086 = vmatpush1.msra.mxu0 %v2957
    %3087 = vmatprep.subr.mxu0 0.0
    %3088 = vmatpush1.msra.mxu0 %v2958
    %3089 = vmatprep.subr.mxu0 0.0
    %3090 = vmatpush1.msra.mxu0 %v2959
    %3091 = vmatprep.subr.mxu0 0.0
    %3092 = vmatpush1.msra.mxu0 %v2960
    %3093 = vmatprep.subr.mxu0 0.0
    %3094 = vmatpush1.msra.mxu0 %v2961
    %3095 = vmatprep.subr.mxu0 0.0
    %3096 = vmatpush1.msra.mxu0 %v2962
    %3097 = vmatprep.subr.mxu0 0.0
    %3098 = vmatpush1.msra.mxu0 %v2963
    %3099 = vmatprep.subr.mxu0 0.0
    %3100 = vmatpush1.msra.mxu0 %v2964
    %3101 = vmatprep.subr.mxu0 0.0
    %3102 = vmatpush1.msra.mxu0 %v2965
    %3103 = vmatprep.subr.mxu0 0.0
    %3104 = vmatpush1.msra.mxu0 0.0
    %3105 = vmatprep.subr.mxu0 0.0
    %3106 = vmatpush1.msra.mxu0 0.0
    %3107 = vmatprep.subr.mxu0 0.0
    %3108 = vmatpush1.msra.mxu0 0.0
    %3109 = vmatprep.subr.mxu0 0.0
    %3110 = vmatpush1.msra.mxu0 0.0
    %3111 = vmatprep.subr.mxu0 0.0
    %3112 = vmatpush1.msra.mxu0 0.0
    %3113 = vmatprep.subr.mxu0 0.0
    %3114 = vmatpush1.msra.mxu0 0.0
    %3115 = vmatprep.subr.mxu0 0.0
    %3116 = vmatpush1.msra.mxu0 0.0
    %3117 = vmatprep.subr.mxu0 0.0
    %3118 = vmatpush1.msra.mxu0 0.0
    %3119 = vmatprep.subr.mxu0 0.0
    %3120 = vmatpush1.msra.mxu0 0.0
    %3121 = vmatprep.subr.mxu0 0.0
    %3122 = vmatpush1.msra.mxu0 0.0
    %3123 = vmatprep.subr.mxu0 0.0
    %3124 = vmatpush1.msra.mxu0 0.0
    %3125 = vmatprep.subr.mxu0 0.0
    %3126 = vmatpush1.msra.mxu0 0.0
    %3127 = vmatprep.subr.mxu0 0.0
    %3128 = vmatpush1.msra.mxu0 0.0
    %3129 = vmatprep.subr.mxu0 0.0
    %3130 = vmatpush1.msra.mxu0 0.0
    %3131 = vmatprep.mubr.f32.mxu0 %v2995
    %3132 = vmatmul.mubr.f32.gmra.mrb[0].mxu0 %v2988
    %v3133 = vpop.f32.mrb[0].mxu0
    %v3134 = vadd.f32 %v3064, %v3133
    %v3135 = vpop.f32.mrb[0].mxu0
    %3136 = vdwg.mxu0
    %v3137 = vmax.f32 %v3134, 0.0
    %v3138 = vld [vmem:[%s13] sm:$0xff]
    %v3139 = vld [vmem:[%s13 + $0x8] sm:$0xff]
    %v3140 = vld [vmem:[%s13 + $0x10] sm:$0xff]
    %v3141 = vld [vmem:[%s13 + $0x18] sm:$0xff]
    %v3142 = vld [vmem:[%s13 + $0x20] sm:$0xff]
    %v3143 = vld [vmem:[%s13 + $0x28] sm:$0xff]
    %v3144 = vld [vmem:[%s13 + $0x30] sm:$0xff]
    %v3145 = vld [vmem:[%s13 + $0x38] sm:$0xff]
    %v3146 = vld [vmem:[%s13 + $0x40] sm:$0xff]
    %v3147 = vld [vmem:[%s13 + $0x48] sm:$0xff]
    %v3148 = vld [vmem:[%s13 + $0x50] sm:$0xff]
    %v3149 = vld [vmem:[%s13 + $0x58] sm:$0xff]
    %v3150 = vld [vmem:[%s13 + $0x60] sm:$0xff]
    %v3151 = vld [vmem:[%s13 + $0x68] sm:$0xff]
    %v3152 = vld [vmem:[%s13 + $0x70] sm:$0xff]
    %v3153 = vld [vmem:[%s14] sm:$0x1]
    %v3155 = vlaneseq
    %v3156 = vshrl.u32 %v3155, 7
    %v3157 = vsub.s32 0, %v3156
    %v3158 = vrot.slane %v3153, %v3157
    %vm3160 = vcmask 982016
    %v3162 = vsel %vm3160, %v3137, 0
    %3164 = vmatprep.subr.mxu0 0.0
    %3165 = vmatpush1.msra.mxu0 %v3138
    %3166 = vmatprep.subr.mxu0 0.0
    %3167 = vmatpush1.msra.mxu0 %v3139
    %3168 = vmatprep.subr.mxu0 0.0
    %3169 = vmatpush1.msra.mxu0 %v3140
    %3170 = vmatprep.subr.mxu0 0.0
    %3171 = vmatpush1.msra.mxu0 %v3141
    %3172 = vmatprep.subr.mxu0 0.0
    %3173 = vmatpush1.msra.mxu0 %v3142
    %3174 = vmatprep.subr.mxu0 0.0
    %3175 = vmatpush1.msra.mxu0 %v3143
    %3176 = vmatprep.subr.mxu0 0.0
    %3177 = vmatpush1.msra.mxu0 %v3144
    %3178 = vmatprep.subr.mxu0 0.0
    %3179 = vmatpush1.msra.mxu0 %v3145
    %3180 = vmatprep.subr.mxu0 0.0
    %3181 = vmatpush1.msra.mxu0 %v3146
    %3182 = vmatprep.subr.mxu0 0.0
    %3183 = vmatpush1.msra.mxu0 %v3147
    %3184 = vmatprep.subr.mxu0 0.0
    %3185 = vmatpush1.msra.mxu0 %v3148
    %3186 = vmatprep.subr.mxu0 0.0
    %3187 = vmatpush1.msra.mxu0 %v3149
    %3188 = vmatprep.subr.mxu0 0.0
    %3189 = vmatpush1.msra.mxu0 %v3150
    %3190 = vmatprep.subr.mxu0 0.0
    %3191 = vmatpush1.msra.mxu0 %v3151
    %3192 = vmatprep.subr.mxu0 0.0
    %3193 = vmatpush1.msra.mxu0 %v3152
    %3194 = vmatprep.subr.mxu0 0.0
    %3195 = vmatpush1.msra.mxu0 0.0
    %3196 = vmatprep.subr.mxu0 0.0
    %3197 = vmatpush1.msra.mxu0 0.0
    %3198 = vmatprep.subr.mxu0 0.0
    %3199 = vmatpush1.msra.mxu0 0.0
    %3200 = vmatprep.subr.mxu0 0.0
    %3201 = vmatpush1.msra.mxu0 0.0
    %3202 = vmatprep.subr.mxu0 0.0
    %3203 = vmatpush1.msra.mxu0 0.0
    %3204 = vmatprep.subr.mxu0 0.0
    %3205 = vmatpush1.msra.mxu0 0.0
    %3206 = vmatprep.subr.mxu0 0.0
    %3207 = vmatpush1.msra.mxu0 0.0
    %3208 = vmatprep.subr.mxu0 0.0
    %3209 = vmatpush1.msra.mxu0 0.0
    %3210 = vmatprep.subr.mxu0 0.0
    %3211 = vmatpush1.msra.mxu0 0.0
    %3212 = vmatprep.subr.mxu0 0.0
    %3213 = vmatpush1.msra.mxu0 0.0
    %3214 = vmatprep.subr.mxu0 0.0
    %3215 = vmatpush1.msra.mxu0 0.0
    %3216 = vmatprep.subr.mxu0 0.0
    %3217 = vmatpush1.msra.mxu0 0.0
    %3218 = vmatprep.subr.mxu0 0.0
    %3219 = vmatpush1.msra.mxu0 0.0
    %3220 = vmatprep.subr.mxu0 0.0
    %3221 = vmatpush1.msra.mxu0 0.0
    %3222 = vmatprep.subr.mxu0 0.0
    %3223 = vmatpush1.msra.mxu0 0.0
    %3224 = vmatprep.subr.mxu0 0.0
    %3225 = vmatpush1.msra.mxu0 0.0
    %3226 = vmatprep.subr.mxu0 0.0
    %3227 = vmatpush1.msra.mxu0 0.0
    %3228 = vmatprep.mubr.f32.mxu0 0.0
    %3229 = vmatmul.mubr.f32.gmra.mrb[0].mxu0 %v3162
    %v3230 = vpop.f32.mrb[0].mxu0
    %v3231 = vadd.f32 %v3158, %v3230
    %v3232 = vpop.f32.mrb[0].mxu0
    %3233 = vdwg.mxu0
    %v3234 = vmax.f32 %v3231, 0.0
    %v3235 = vld [vmem:[%s15] sm:$0xff]
    %v3236 = vld [vmem:[%s15 + $0x8] sm:$0xff]
    %v3237 = vld [vmem:[%s15 + $0x10] sm:$0xff]
    %v3238 = vld [vmem:[%s15 + $0x18] sm:$0xff]
    %v3239 = vld [vmem:[%s15 + $0x20] sm:$0xff]
    %v3240 = vld [vmem:[%s15 + $0x28] sm:$0xff]
    %v3241 = vld [vmem:[%s15 + $0x30] sm:$0xff]
    %v3242 = vld [vmem:[%s15 + $0x38] sm:$0xff]
    %v3243 = vld [vmem:[%s15 + $0x40] sm:$0xff]
    %v3244 = vld [vmem:[%s15 + $0x48] sm:$0xff]
    %v3245 = vld [vmem:[%s15 + $0x50] sm:$0xf]
    %v3246 = vld [vmem:[%s16] sm:$0x1]
    %v3248 = vlaneseq
    %v3249 = vshrl.u32 %v3248, 7
    %v3250 = vsub.s32 0, %v3249
    %v3251 = vrot.slane %v3246, %v3250
    %v3254 = vsel %vm1603, %v3234, 0
    %v3257 = vsel %vm372, %v3245, 0
    %3259 = vmatprep.subr.mxu0 0.0
    %3260 = vmatpush1.msra.mxu0 %v3235
    %3261 = vmatprep.subr.mxu0 0.0
    %3262 = vmatpush1.msra.mxu0 %v3236
    %3263 = vmatprep.subr.mxu0 0.0
    %3264 = vmatpush1.msra.mxu0 %v3237
    %3265 = vmatprep.subr.mxu0 0.0
    %3266 = vmatpush1.msra.mxu0 %v3238
    %3267 = vmatprep.subr.mxu0 0.0
    %3268 = vmatpush1.msra.mxu0 %v3239
    %3269 = vmatprep.subr.mxu0 0.0
    %3270 = vmatpush1.msra.mxu0 %v3240
    %3271 = vmatprep.subr.mxu0 0.0
    %3272 = vmatpush1.msra.mxu0 %v3241
    %3273 = vmatprep.subr.mxu0 0.0
    %3274 = vmatpush1.msra.mxu0 %v3242
    %3275 = vmatprep.subr.mxu0 0.0
    %3276 = vmatpush1.msra.mxu0 %v3243
    %3277 = vmatprep.subr.mxu0 0.0
    %3278 = vmatpush1.msra.mxu0 %v3244
    %3279 = vmatprep.subr.mxu0 0.0
    %3280 = vmatpush1.msra.mxu0 %v3257
    %3281 = vmatprep.subr.mxu0 0.0
    %3282 = vmatpush1.msra.mxu0 0.0
    %3283 = vmatprep.subr.mxu0 0.0
    %3284 = vmatpush1.msra.mxu0 0.0
    %3285 = vmatprep.subr.mxu0 0.0
    %3286 = vmatpush1.msra.mxu0 0.0
    %3287 = vmatprep.subr.mxu0 0.0
    %3288 = vmatpush1.msra.mxu0 0.0
    %3289 = vmatprep.subr.mxu0 0.0
    %3290 = vmatpush1.msra.mxu0 0.0
    %3291 = vmatprep.subr.mxu0 0.0
    %3292 = vmatpush1.msra.mxu0 0.0
    %3293 = vmatprep.subr.mxu0 0.0
    %3294 = vmatpush1.msra.mxu0 0.0
    %3295 = vmatprep.subr.mxu0 0.0
    %3296 = vmatpush1.msra.mxu0 0.0
    %3297 = vmatprep.subr.mxu0 0.0
    %3298 = vmatpush1.msra.mxu0 0.0
    %3299 = vmatprep.subr.mxu0 0.0
    %3300 = vmatpush1.msra.mxu0 0.0
    %3301 = vmatprep.subr.mxu0 0.0
    %3302 = vmatpush1.msra.mxu0 0.0
    %3303 = vmatprep.subr.mxu0 0.0
    %3304 = vmatpush1.msra.mxu0 0.0
    %3305 = vmatprep.subr.mxu0 0.0
    %3306 = vmatpush1.msra.mxu0 0.0
    %3307 = vmatprep.subr.mxu0 0.0
    %3308 = vmatpush1.msra.mxu0 0.0
    %3309 = vmatprep.subr.mxu0 0.0
    %3310 = vmatpush1.msra.mxu0 0.0
    %3311 = vmatprep.subr.mxu0 0.0
    %3312 = vmatpush1.msra.mxu0 0.0
    %3313 = vmatprep.subr.mxu0 0.0
    %3314 = vmatpush1.msra.mxu0 0.0
    %3315 = vmatprep.subr.mxu0 0.0
    %3316 = vmatpush1.msra.mxu0 0.0
    %3317 = vmatprep.subr.mxu0 0.0
    %3318 = vmatpush1.msra.mxu0 0.0
    %3319 = vmatprep.subr.mxu0 0.0
    %3320 = vmatpush1.msra.mxu0 0.0
    %3321 = vmatprep.subr.mxu0 0.0
    %3322 = vmatpush1.msra.mxu0 0.0
    %3323 = vmatprep.mubr.f32.mxu0 0.0
    %3324 = vmatmul.mubr.f32.gmra.mrb[0].mxu0 %v3254
    %v3325 = vpop.f32.mrb[0].mxu0
    %v3326 = vadd.f32 %v3251, %v3325
    %v3327 = vpop.f32.mrb[0].mxu0
    %3328 = vdwg.mxu0
    %vm3329 = vcmask 74752
    %3330 = vst.msk [vmem:[#allocation6] sm:$0x3] %vm3329, %v3326
    // Predicated region
    $region70: #{lenet_forward.1} parent=1 // pred_check
      _
    $region71: #{lenet_forward.1} parent=1 // pred_check_branch
      %3332 = sbr.rel (0) target = $region73
    $region72: #{lenet_forward.1} parent=1 // pred_region
      %s3334 = ssub.s32 32, 32
      %3335 = vsyncadd [#allocation7], %s3334
      %s3337 = sshll.u32 [#allocation6], 4
      %s3338 = int_to_ptr.vmem [resolvable:$true] %s3337
      %3340 = dma.vmem_to_hbm [thread:$0]  %s3338, 32, %s17, [#allocation7]
    $region73: #{lenet_forward.1} parent=1 // pred_fallthru
      _
    // Predicated region
    $region74: #{lenet_forward.1} parent=1 // pred_check
      _
    $region75: #{lenet_forward.1} parent=1 // pred_check_branch
      %3342 = sbr.rel (0) target = $region77
    $region76: #{lenet_forward.1} parent=1 // pred_region
      %3343 = dma.done [#allocation7], 32
    $region77: #{lenet_forward.1} parent=1 // pred_fallthru
      _
    %3344 = vsyncpa [#allocation7], 1

</llo_original>
